<compile_context>
chip_gen: v7x
topology: tpu7x:2x2x1
jax: 0.10.0
libtpu: 0.0.40
codegen_flags: <defaults>
</compile_context>

<pallas_src>
import functools
import math
from collections import namedtuple

import jax
import jax.numpy as jnp
from jax.experimental import pallas as pl
from jax.experimental.pallas import tpu as pltpu

NEG = -1e9  # finite "-inf" so fully-masked rows stay finite after softmax


@functools.lru_cache(maxsize=1)
def _vmem_limit_bytes():
    """Scoped-VMEM limit sized from the actual chip (~3/4 of physical VMEM):
    ~96 MiB on v5e/v6e (128 MiB parts), ~48 MiB on v7x (64 MiB per core)."""
    try:
        cap = int(pltpu.get_tpu_info().vmem_capacity_bytes)
    except Exception:
        cap = 64 * 1024 * 1024
    return int(max(32 * 2**20, min(cap * 3 // 4, 100 * 2**20)))


# ----------------------------------------------------------------------------
# In-kernel helpers (traced inside the fused decoder-layer kernel)
# ----------------------------------------------------------------------------
def _ln_f32(x, g, b, eps):
    """LayerNorm over last dim; x [R, D] f32, g/b [1, D] f32."""
    mu = jnp.mean(x, axis=-1, keepdims=True)
    var = jnp.mean((x - mu) ** 2, axis=-1, keepdims=True)
    return (x - mu) * jax.lax.rsqrt(var + eps) * g + b


def _proj(x, w_ref, b_ref):
    """x @ W + b with bf16 operands and f32 MXU accumulation."""
    w = w_ref[...]
    y = jnp.dot(x.astype(w.dtype), w, preferred_element_type=jnp.float32)
    return y + b_ref[...].astype(jnp.float32)


def _mha_fused_oproj(q, k, v, add_mask, w_o_ref, b_o_ref, n_heads):
    """Multi-head attention with each head's context folded directly into the
    output projection:

        out = sum_h softmax(q_h @ k_h^T + add_mask) @ v_h @ W_o[h]  +  b_o

    q: [T, D], k/v: [S, D].  add_mask: [T, S] (or [1, S]) additive float mask
    shared by every head.  w_o_ref: [H, dh, D] head-major output projection.
    The 1/sqrt(dh) softmax scale is already folded into the Q weights.
    No lane-dim concat and no second full [T,D]x[D,D] matmul.
    """
    T, D = q.shape
    dh = D // n_heads
    acc = jnp.zeros((T, D), jnp.float32)
    for h in range(n_heads):
        sl = slice(h * dh, (h + 1) * dh)
        qh = q[:, sl].astype(jnp.bfloat16)
        kh = k[:, sl].astype(jnp.bfloat16)
        vh = v[:, sl].astype(jnp.bfloat16)
        # q_h @ k_h^T via dot_general contracting on dh (no in-kernel k.T).
        s = jax.lax.dot_general(qh, kh, (((1,), (1,)), ((), ())),
                                preferred_element_type=jnp.float32)
        s = s + add_mask
        s = s - jnp.max(s, axis=-1, keepdims=True)
        p = jnp.exp(s)
        p = p * pl.reciprocal(jnp.sum(p, axis=-1, keepdims=True), approx=True)
        o_h = jnp.dot(p.astype(jnp.bfloat16), vh,
                      preferred_element_type=jnp.float32)            # [T, dh]
        # Fold head h straight into the output projection accumulator.
        acc = acc + jnp.dot(o_h.astype(jnp.bfloat16), w_o_ref[h],
                            preferred_element_type=jnp.float32)      # [T, D]
    # TODO(synk): on v6e/v7x at production dh, batch 2-4 heads per score
    # matmul (head-leading batched einsum) to fill the 256-wide MXU contraction.
    return acc + b_o_ref[...].astype(jnp.float32)


# ----------------------------------------------------------------------------
# Fused decoder layer kernel (one grid step per batch element)
# ----------------------------------------------------------------------------
def _decoder_layer_kernel(
    x_ref, mem_ref, sub_ref, tpad_ref, mpad_ref,
    ln1_g_ref, ln1_b_ref, w_qkv_ref, b_qkv_ref, w_o1_ref, b_o1_ref,
    ln2_g_ref, ln2_b_ref, w_q2_ref, b_q2_ref, w_kv2_ref, b_kv2_ref,
    w_o2_ref, b_o2_ref, ln3_g_ref, ln3_b_ref,
    w_f1_ref, b_f1_ref, w_f2_ref, b_f2_ref,
    lnf_g_ref, lnf_b_ref,
    y_ref, *, n_heads, eps, apply_final_ln):
    x = x_ref[0].astype(jnp.float32)          # [T, D]
    mem = mem_ref[0].astype(jnp.float32)      # [S, D]
    D = x.shape[-1]

    # Additive masks built in-kernel from thin inputs (no [B,T,T] HBM traffic):
    #   self : user tgt_mask [T,T] + tgt key-padding row [1,T] -> [T,T]
    #   cross: memory key-padding row [1,S] (broadcasts over the T query rows)
    smask = sub_ref[...] + tpad_ref[0]        # [T, T]
    cmask = mpad_ref[0]                       # [1, S]

    # ----- self attention (pre-LN; 1/sqrt(dh) folded into the Q weights) -----
    h = _ln_f32(x, ln1_g_ref[...], ln1_b_ref[...], eps)
    qkv = _proj(h, w_qkv_ref, b_qkv_ref)                      # [T, 3D]
    x = x + _mha_fused_oproj(qkv[:, :D], qkv[:, D:2 * D], qkv[:, 2 * D:],
                             smask, w_o1_ref, b_o1_ref, n_heads)

    # ----- cross attention (pre-LN) -----
    h = _ln_f32(x, ln2_g_ref[...], ln2_b_ref[...], eps)
    q = _proj(h, w_q2_ref, b_q2_ref)                          # [T, D]
    kv = _proj(mem, w_kv2_ref, b_kv2_ref)                     # [S, 2D]
    x = x + _mha_fused_oproj(q, kv[:, :D], kv[:, D:],
                             cmask, w_o2_ref, b_o2_ref, n_heads)

    # ----- feed forward (pre-LN) -----
    h = _ln_f32(x, ln3_g_ref[...], ln3_b_ref[...], eps)
    h = jnp.maximum(_proj(h, w_f1_ref, b_f1_ref), 0.0)
    x = x + _proj(h, w_f2_ref, b_f2_ref)

    # Final nn.LayerNorm of the TransformerDecoder, fused into the last
    # layer's epilogue (saves one full [B,T,D] HBM read+write round trip).
    if apply_final_ln:
        x = _ln_f32(x, lnf_g_ref[...], lnf_b_ref[...], eps)

    y_ref[0] = x.astype(y_ref.dtype)


def decoder_layer_pallas(x, memory, sub_mask, tpad, mpad, lp, lnf_g, lnf_b,
                         n_heads, apply_final_ln, eps=1e-5):
    """One fused norm_first TransformerDecoderLayer (optionally + final LN).
    Grid: one step per batch element."""
    B, T, D = x.shape
    S = memory.shape[1]
    F = lp["ff_w1"].shape[1]
    dh = D // n_heads

    kernel = functools.partial(_decoder_layer_kernel, n_heads=n_heads, eps=eps,
                               apply_final_ln=apply_final_ln)

    def wspec(shape):
        # Grid-invariant param block: constant index map + single-buffered
        # (double-buffering resident weights only doubles their VMEM).
        n = len(shape)
        return pl.BlockSpec(shape, lambda b, _n=n: (0,) * _n,
                            pipeline_mode=pl.Buffered(1))

    in_specs = [
        pl.BlockSpec((1, T, D), lambda b: (b, 0, 0)),   # x
        pl.BlockSpec((1, S, D), lambda b: (b, 0, 0)),   # memory
        wspec((T, T)),                                  # tgt (sub) additive mask
        pl.BlockSpec((1, 1, T), lambda b: (b, 0, 0)),   # tgt pad additive row
        pl.BlockSpec((1, 1, S), lambda b: (b, 0, 0)),   # mem pad additive row
        wspec((1, D)), wspec((1, D)),                   # ln1 g/b
        wspec((D, 3 * D)), wspec((1, 3 * D)),           # packed qkv
        wspec((n_heads, dh, D)), wspec((1, D)),         # self out proj (head-major)
        wspec((1, D)), wspec((1, D)),                   # ln2 g/b
        wspec((D, D)), wspec((1, D)),                   # cross q proj
        wspec((D, 2 * D)), wspec((1, 2 * D)),           # packed memory kv
        wspec((n_heads, dh, D)), wspec((1, D)),         # cross out proj (head-major)
        wspec((1, D)), wspec((1, D)),                   # ln3 g/b
        wspec((D, F)), wspec((1, F)),                   # ffn w1/b1
        wspec((F, D)), wspec((1, D)),                   # ffn w2/b2
        wspec((1, D)), wspec((1, D)),                   # final LN g/b
    ]

    return pl.pallas_call(
        kernel,
        out_shape=jax.ShapeDtypeStruct((B, T, D), x.dtype),
        grid=(B,),
        in_specs=in_specs,
        out_specs=pl.BlockSpec((1, T, D), lambda b: (b, 0, 0)),
        compiler_params=pltpu.CompilerParams(
            dimension_semantics=("parallel",),
            vmem_limit_bytes=_vmem_limit_bytes(),
        ),
    )(x, memory, sub_mask, tpad, mpad,
      lp["ln1_g"], lp["ln1_b"], lp["w_qkv"], lp["b_qkv"], lp["w_o1"], lp["b_o1"],
      lp["ln2_g"], lp["ln2_b"], lp["w_q2"], lp["b_q2"], lp["w_kv2"], lp["b_kv2"],
      lp["w_o2"], lp["b_o2"], lp["ln3_g"], lp["ln3_b"],
      lp["ff_w1"], lp["ff_b1"], lp["ff_w2"], lp["ff_b2"],
      lnf_g, lnf_b)
    # TODO(synk): at production T/S/F, add a query-tile grid axis and
    # flash-style S/F tiling with VMEM accumulators so v7x's 64 MiB VMEM is
    # respected; at demo shapes the fully-resident layer is the right choice.
    # TODO(synk): production hidden_dim should be a multiple of 128 so the
    # output block is lane-dense (unmasked vst); the demo keeps D=32.


# ----------------------------------------------------------------------------
# Decoder forward (glue in plain JAX)
# ----------------------------------------------------------------------------
def decoder_forward(params, config, x_ids, memory, x_sub_mask, x_pad_mask, m_pad_mask):
    """Mirror of Decoder.forward(x, memory, x_sub_mask, x_pad_mask, m_pad_mask)."""
    B, T = x_ids.shape
    D = config.hidden_dim

    # embeddings lookup (glue, not a hot path)
    x = jnp.take(params["emb"], x_ids, axis=0)                              # [B, T, D]

    # Thin additive-mask inputs; the [T,S]-shaped masks are built in-kernel.
    sub_mask = x_sub_mask.astype(jnp.float32)                               # [T, T]
    tpad = jnp.where(x_pad_mask, NEG, 0.0).astype(jnp.float32)[:, None, :]  # [B, 1, T]
    mpad = jnp.where(m_pad_mask, NEG, 0.0).astype(jnp.float32)[:, None, :]  # [B, 1, S]

    layers = params["layers"]
    for i, lp in enumerate(layers):
        x = decoder_layer_pallas(x, memory, sub_mask, tpad, mpad, lp,
                                 params["ln_f_g"], params["ln_f_b"],
                                 config.n_heads,
                                 apply_final_ln=(i == len(layers) - 1))
    if not layers:  # degenerate n_layers=0: just the final LayerNorm (plain JAX)
        mu = jnp.mean(x, axis=-1, keepdims=True)
        var = jnp.mean((x - mu) ** 2, axis=-1, keepdims=True)
        x = (x - mu) * jax.lax.rsqrt(var + 1e-5) * params["ln_f_g"] + params["ln_f_b"]
    return x


# ----------------------------------------------------------------------------
# Deterministic parameter initialization (weights bf16, norms/biases f32)
# ----------------------------------------------------------------------------
def init_params(key, config, vocab_size):
    D, F, H = config.hidden_dim, config.pff_dim, config.n_heads
    dh = D // H
    scale = 1.0 / math.sqrt(float(dh))

    def nrm(k, shape, s=0.02):
        return s * jax.random.normal(k, shape, dtype=jnp.float32)

    keys = jax.random.split(key, config.n_layers + 1)
    layers = []
    for li in range(config.n_layers):
        ks = jax.random.split(keys[li], 7)
        # Fold the 1/sqrt(dh) softmax scale into the Q projections (one-time
        # weight transform; a nonzero Q bias would need the same scaling).
        w_qkv = nrm(ks[0], (D, 3 * D)).at[:, :D].multiply(scale)
        w_q2 = nrm(ks[2], (D, D)) * scale
        layers.append({
            # self attention: packed QKV + head-major out proj [H, dh, D]
            "w_qkv": w_qkv.astype(jnp.bfloat16),
            "b_qkv": jnp.zeros((1, 3 * D), jnp.float32),
            "w_o1": nrm(ks[1], (D, D)).reshape(H, dh, D).astype(jnp.bfloat16),
            "b_o1": jnp.zeros((1, D), jnp.float32),
            # cross attention: Q proj + packed memory KV + head-major out proj
            "w_q2": w_q2.astype(jnp.bfloat16),
            "b_q2": jnp.zeros((1, D), jnp.float32),
            "w_kv2": nrm(ks[3], (D, 2 * D)).astype(jnp.bfloat16),
            "b_kv2": jnp.zeros((1, 2 * D), jnp.float32),
            "w_o2": nrm(ks[4], (D, D)).reshape(H, dh, D).astype(jnp.bfloat16),
            "b_o2": jnp.zeros((1, D), jnp.float32),
            # feed-forward
            "ff_w1": nrm(ks[5], (D, F)).astype(jnp.bfloat16),
            "ff_b1": jnp.zeros((1, F), jnp.float32),
            "ff_w2": nrm(ks[6], (F, D)).astype(jnp.bfloat16),
            "ff_b2": jnp.zeros((1, D), jnp.float32),
            # layer norms
            "ln1_g": jnp.ones((1, D), jnp.float32), "ln1_b": jnp.zeros((1, D), jnp.float32),
            "ln2_g": jnp.ones((1, D), jnp.float32), "ln2_b": jnp.zeros((1, D), jnp.float32),
            "ln3_g": jnp.ones((1, D), jnp.float32), "ln3_b": jnp.zeros((1, D), jnp.float32),
        })
    return {
        "emb": nrm(keys[-1], (vocab_size, D), s=1.0),
        "layers": layers,
        "ln_f_g": jnp.ones((1, D), jnp.float32),
        "ln_f_b": jnp.zeros((1, D), jnp.float32),
    }


# ----------------------------------------------------------------------------
# Demo
# ----------------------------------------------------------------------------
if __name__ == "__main__":
    Config = namedtuple("Config",
                        ["hidden_dim", "n_heads", "pff_dim", "dropout_ratio", "n_layers"])
    config = Config(hidden_dim=32, n_heads=4, pff_dim=64, dropout_ratio=0.1, n_layers=2)

    B, T, S, V = 2, 8, 8, 50
    key = jax.random.PRNGKey(0)
    k_par, k_ids, k_mem = jax.random.split(key, 3)

    params = init_params(k_par, config, V)

    x_ids = jax.random.randint(k_ids, (B, T), 0, V, dtype=jnp.int32)
    memory = jax.random.normal(k_mem, (B, S, config.hidden_dim), dtype=jnp.float32)

    # causal (subsequent) additive mask, PyTorch convention: -inf above diagonal
    x_sub_mask = jnp.where(jnp.triu(jnp.ones((T, T), jnp.bool_), k=1), NEG, 0.0)
    # key-padding masks (True == pad): last position of batch 1 is padded
    x_pad_mask = jnp.zeros((B, T), jnp.bool_).at[1, T - 1].set(True)
    m_pad_mask = jnp.zeros((B, S), jnp.bool_).at[1, S - 1].set(True)

    out = decoder_forward(params, config, x_ids, memory,
                          x_sub_mask, x_pad_mask, m_pad_mask)
    out = jax.block_until_ready(out)
    assert out.shape == (B, T, config.hidden_dim)
    assert bool(jnp.all(jnp.isfinite(out)))
    print("KERNEL_OK")
</pallas_src>

<mosaic_0001>
module attributes {stable_mosaic.version = 11 : i64} {
  func.func @_decoder_layer_kernel(%arg0: i32, %arg1: memref<1x8x32xf32, #tpu.memory_space<vmem>>, %arg2: memref<1x8x32xf32, #tpu.memory_space<vmem>>, %arg3: memref<8x8xf32, #tpu.memory_space<vmem>>, %arg4: memref<1x1x8xf32, #tpu.memory_space<vmem>>, %arg5: memref<1x1x8xf32, #tpu.memory_space<vmem>>, %arg6: memref<1x32xf32, #tpu.memory_space<vmem>>, %arg7: memref<1x32xf32, #tpu.memory_space<vmem>>, %arg8: memref<32x96xbf16, #tpu.memory_space<vmem>>, %arg9: memref<1x96xf32, #tpu.memory_space<vmem>>, %arg10: memref<4x8x32xbf16, #tpu.memory_space<vmem>>, %arg11: memref<1x32xf32, #tpu.memory_space<vmem>>, %arg12: memref<1x32xf32, #tpu.memory_space<vmem>>, %arg13: memref<1x32xf32, #tpu.memory_space<vmem>>, %arg14: memref<32x32xbf16, #tpu.memory_space<vmem>>, %arg15: memref<1x32xf32, #tpu.memory_space<vmem>>, %arg16: memref<32x64xbf16, #tpu.memory_space<vmem>>, %arg17: memref<1x64xf32, #tpu.memory_space<vmem>>, %arg18: memref<4x8x32xbf16, #tpu.memory_space<vmem>>, %arg19: memref<1x32xf32, #tpu.memory_space<vmem>>, %arg20: memref<1x32xf32, #tpu.memory_space<vmem>>, %arg21: memref<1x32xf32, #tpu.memory_space<vmem>>, %arg22: memref<32x64xbf16, #tpu.memory_space<vmem>>, %arg23: memref<1x64xf32, #tpu.memory_space<vmem>>, %arg24: memref<64x32xbf16, #tpu.memory_space<vmem>>, %arg25: memref<1x32xf32, #tpu.memory_space<vmem>>, %arg26: memref<1x32xf32, #tpu.memory_space<vmem>>, %arg27: memref<1x32xf32, #tpu.memory_space<vmem>>, %arg28: memref<1x8x32xf32, #tpu.memory_space<vmem>>) attributes {dimension_semantics = [#tpu.dimension_semantics<parallel>], iteration_bounds = array<i64: 2>, scalar_prefetch = 0 : i64, scratch_operands = 0 : i64, tpu.core_type = #tpu.core_type<tc>, window_params = [{transform_indices = @transform_0, window_bounds = array<i64: 1, 8, 32>}, {transform_indices = @transform_1, window_bounds = array<i64: 1, 8, 32>}, {pipeline_mode = #tpu.pipeline_mode<synchronous>, transform_indices = @transform_2, window_bounds = array<i64: 8, 8>}, {transform_indices = @transform_3, window_bounds = array<i64: 1, 1, 8>}, {transform_indices = @transform_4, window_bounds = array<i64: 1, 1, 8>}, {pipeline_mode = #tpu.pipeline_mode<synchronous>, transform_indices = @transform_5, window_bounds = array<i64: 1, 32>}, {pipeline_mode = #tpu.pipeline_mode<synchronous>, transform_indices = @transform_6, window_bounds = array<i64: 1, 32>}, {pipeline_mode = #tpu.pipeline_mode<synchronous>, transform_indices = @transform_7, window_bounds = array<i64: 32, 96>}, {pipeline_mode = #tpu.pipeline_mode<synchronous>, transform_indices = @transform_8, window_bounds = array<i64: 1, 96>}, {pipeline_mode = #tpu.pipeline_mode<synchronous>, transform_indices = @transform_9, window_bounds = array<i64: 4, 8, 32>}, {pipeline_mode = #tpu.pipeline_mode<synchronous>, transform_indices = @transform_10, window_bounds = array<i64: 1, 32>}, {pipeline_mode = #tpu.pipeline_mode<synchronous>, transform_indices = @transform_11, window_bounds = array<i64: 1, 32>}, {pipeline_mode = #tpu.pipeline_mode<synchronous>, transform_indices = @transform_12, window_bounds = array<i64: 1, 32>}, {pipeline_mode = #tpu.pipeline_mode<synchronous>, transform_indices = @transform_13, window_bounds = array<i64: 32, 32>}, {pipeline_mode = #tpu.pipeline_mode<synchronous>, transform_indices = @transform_14, window_bounds = array<i64: 1, 32>}, {pipeline_mode = #tpu.pipeline_mode<synchronous>, transform_indices = @transform_15, window_bounds = array<i64: 32, 64>}, {pipeline_mode = #tpu.pipeline_mode<synchronous>, transform_indices = @transform_16, window_bounds = array<i64: 1, 64>}, {pipeline_mode = #tpu.pipeline_mode<synchronous>, transform_indices = @transform_17, window_bounds = array<i64: 4, 8, 32>}, {pipeline_mode = #tpu.pipeline_mode<synchronous>, transform_indices = @transform_18, window_bounds = array<i64: 1, 32>}, {pipeline_mode = #tpu.pipeline_mode<synchronous>, transform_indices = @transform_19, window_bounds = array<i64: 1, 32>}, {pipeline_mode = #tpu.pipeline_mode<synchronous>, transform_indices = @transform_20, window_bounds = array<i64: 1, 32>}, {pipeline_mode = #tpu.pipeline_mode<synchronous>, transform_indices = @transform_21, window_bounds = array<i64: 32, 64>}, {pipeline_mode = #tpu.pipeline_mode<synchronous>, transform_indices = @transform_22, window_bounds = array<i64: 1, 64>}, {pipeline_mode = #tpu.pipeline_mode<synchronous>, transform_indices = @transform_23, window_bounds = array<i64: 64, 32>}, {pipeline_mode = #tpu.pipeline_mode<synchronous>, transform_indices = @transform_24, window_bounds = array<i64: 1, 32>}, {pipeline_mode = #tpu.pipeline_mode<synchronous>, transform_indices = @transform_25, window_bounds = array<i64: 1, 32>}, {pipeline_mode = #tpu.pipeline_mode<synchronous>, transform_indices = @transform_26, window_bounds = array<i64: 1, 32>}, {transform_indices = @transform_27, window_bounds = array<i64: 1, 8, 32>}]} {
    %c0 = arith.constant 0 : index
    %c0_0 = arith.constant 0 : index
    %c0_1 = arith.constant 0 : index
    %0 = vector.load %arg1[%c0, %c0_0, %c0_1] : memref<1x8x32xf32, #tpu.memory_space<vmem>>, vector<1x8x32xf32>
    %1 = vector.shape_cast %0 : vector<1x8x32xf32> to vector<8x32xf32>
    %c0_2 = arith.constant 0 : index
    %c0_3 = arith.constant 0 : index
    %c0_4 = arith.constant 0 : index
    %2 = vector.load %arg2[%c0_2, %c0_3, %c0_4] : memref<1x8x32xf32, #tpu.memory_space<vmem>>, vector<1x8x32xf32>
    %3 = vector.shape_cast %2 : vector<1x8x32xf32> to vector<8x32xf32>
    %c0_5 = arith.constant 0 : index
    %c0_6 = arith.constant 0 : index
    %4 = vector.load %arg3[%c0_5, %c0_6] : memref<8x8xf32, #tpu.memory_space<vmem>>, vector<8x8xf32>
    %c0_7 = arith.constant 0 : index
    %c0_8 = arith.constant 0 : index
    %c0_9 = arith.constant 0 : index
    %5 = vector.load %arg4[%c0_7, %c0_8, %c0_9] : memref<1x1x8xf32, #tpu.memory_space<vmem>>, vector<1x1x8xf32>
    %6 = vector.shape_cast %5 : vector<1x1x8xf32> to vector<1x8xf32>
    %7 = vector.broadcast %6 : vector<1x8xf32> to vector<8x8xf32>
    %8 = arith.addf %4, %7 : vector<8x8xf32>
    %c0_10 = arith.constant 0 : index
    %c0_11 = arith.constant 0 : index
    %c0_12 = arith.constant 0 : index
    %9 = vector.load %arg5[%c0_10, %c0_11, %c0_12] : memref<1x1x8xf32, #tpu.memory_space<vmem>>, vector<1x1x8xf32>
    %10 = vector.shape_cast %9 : vector<1x1x8xf32> to vector<1x8xf32>
    %c0_13 = arith.constant 0 : index
    %c0_14 = arith.constant 0 : index
    %11 = vector.load %arg6[%c0_13, %c0_14] : memref<1x32xf32, #tpu.memory_space<vmem>>, vector<1x32xf32>
    %c0_15 = arith.constant 0 : index
    %c0_16 = arith.constant 0 : index
    %12 = vector.load %arg7[%c0_15, %c0_16] : memref<1x32xf32, #tpu.memory_space<vmem>>, vector<1x32xf32>
    %cst = arith.constant dense<0.000000e+00> : vector<8xf32>
    %13 = vector.multi_reduction <add>, %1, %cst [1] : vector<8x32xf32> to vector<8xf32>
    %14 = vector.shape_cast %13 : vector<8xf32> to vector<8x1xf32>
    %cst_17 = arith.constant 3.200000e+01 : f32
    %15 = vector.broadcast %cst_17 : f32 to vector<8x1xf32>
    %16 = arith.divf %14, %15 : vector<8x1xf32>
    %17 = vector.broadcast %16 : vector<8x1xf32> to vector<8x32xf32>
    %18 = arith.subf %1, %17 : vector<8x32xf32>
    %19 = arith.mulf %18, %18 : vector<8x32xf32>
    %cst_18 = arith.constant dense<0.000000e+00> : vector<8xf32>
    %20 = vector.multi_reduction <add>, %19, %cst_18 [1] : vector<8x32xf32> to vector<8xf32>
    %21 = vector.shape_cast %20 : vector<8xf32> to vector<8x1xf32>
    %cst_19 = arith.constant 3.200000e+01 : f32
    %22 = vector.broadcast %cst_19 : f32 to vector<8x1xf32>
    %23 = arith.divf %21, %22 : vector<8x1xf32>
    %24 = vector.broadcast %16 : vector<8x1xf32> to vector<8x32xf32>
    %25 = arith.subf %1, %24 : vector<8x32xf32>
    %cst_20 = arith.constant 9.99999974E-6 : f32
    %26 = vector.broadcast %cst_20 : f32 to vector<8x1xf32>
    %27 = arith.addf %23, %26 : vector<8x1xf32>
    %28 = math.rsqrt %27 : vector<8x1xf32>
    %29 = vector.broadcast %28 : vector<8x1xf32> to vector<8x32xf32>
    %30 = arith.mulf %25, %29 : vector<8x32xf32>
    %31 = vector.broadcast %11 : vector<1x32xf32> to vector<8x32xf32>
    %32 = arith.mulf %30, %31 : vector<8x32xf32>
    %33 = vector.broadcast %12 : vector<1x32xf32> to vector<8x32xf32>
    %34 = arith.addf %32, %33 : vector<8x32xf32>
    %c0_21 = arith.constant 0 : index
    %c0_22 = arith.constant 0 : index
    %35 = vector.load %arg8[%c0_21, %c0_22] : memref<32x96xbf16, #tpu.memory_space<vmem>>, vector<32x96xbf16>
    %36 = arith.truncf %34 : vector<8x32xf32> to vector<8x32xbf16>
    %cst_23 = arith.constant dense<0.000000e+00> : vector<8x96xf32>
    %37 = tpu.matmul %36, %35, %cst_23 {dimension_numbers = #tpu.dot_dimension_numbers<[1], [0], [0], [1], [0, 0, 1, 1], [], []>} : vector<8x32xbf16>, vector<32x96xbf16>, vector<8x96xf32> -> vector<8x96xf32>
    %c0_24 = arith.constant 0 : index
    %c0_25 = arith.constant 0 : index
    %38 = vector.load %arg9[%c0_24, %c0_25] : memref<1x96xf32, #tpu.memory_space<vmem>>, vector<1x96xf32>
    %39 = vector.broadcast %38 : vector<1x96xf32> to vector<8x96xf32>
    %40 = arith.addf %37, %39 : vector<8x96xf32>
    %41 = vector.extract_strided_slice %40 {offsets = [0, 0], sizes = [8, 32], strides = [1, 1]} : vector<8x96xf32> to vector<8x32xf32>
    %42 = vector.extract_strided_slice %40 {offsets = [0, 32], sizes = [8, 32], strides = [1, 1]} : vector<8x96xf32> to vector<8x32xf32>
    %43 = vector.extract_strided_slice %40 {offsets = [0, 64], sizes = [8, 32], strides = [1, 1]} : vector<8x96xf32> to vector<8x32xf32>
    %cst_26 = arith.constant 0.000000e+00 : f32
    %44 = vector.broadcast %cst_26 : f32 to vector<8x32xf32>
    %45 = vector.extract_strided_slice %41 {offsets = [0, 0], sizes = [8, 8], strides = [1, 1]} : vector<8x32xf32> to vector<8x8xf32>
    %46 = arith.truncf %45 : vector<8x8xf32> to vector<8x8xbf16>
    %47 = vector.extract_strided_slice %42 {offsets = [0, 0], sizes = [8, 8], strides = [1, 1]} : vector<8x32xf32> to vector<8x8xf32>
    %48 = arith.truncf %47 : vector<8x8xf32> to vector<8x8xbf16>
    %49 = vector.extract_strided_slice %43 {offsets = [0, 0], sizes = [8, 8], strides = [1, 1]} : vector<8x32xf32> to vector<8x8xf32>
    %50 = arith.truncf %49 : vector<8x8xf32> to vector<8x8xbf16>
    %cst_27 = arith.constant dense<0.000000e+00> : vector<8x8xf32>
    %51 = tpu.matmul %46, %48, %cst_27 {dimension_numbers = #tpu.dot_dimension_numbers<[1], [1], [0], [0], [0, 0, 1, 0], [], []>} : vector<8x8xbf16>, vector<8x8xbf16>, vector<8x8xf32> -> vector<8x8xf32>
    %52 = arith.addf %51, %8 : vector<8x8xf32>
    %cst_28 = arith.constant dense<0xFF800000> : vector<8xf32>
    %53 = vector.multi_reduction <maximumf>, %52, %cst_28 [1] : vector<8x8xf32> to vector<8xf32>
    %54 = vector.shape_cast %53 : vector<8xf32> to vector<8x1xf32>
    %55 = vector.broadcast %54 : vector<8x1xf32> to vector<8x8xf32>
    %56 = arith.subf %52, %55 : vector<8x8xf32>
    %57 = math.exp %56 : vector<8x8xf32>
    %cst_29 = arith.constant dense<0.000000e+00> : vector<8xf32>
    %58 = vector.multi_reduction <add>, %57, %cst_29 [1] : vector<8x8xf32> to vector<8xf32>
    %59 = vector.shape_cast %58 : vector<8xf32> to vector<8x1xf32>
    %60 = tpu.reciprocal %59 {approx = true} : vector<8x1xf32> -> vector<8x1xf32>
    %61 = vector.broadcast %60 : vector<8x1xf32> to vector<8x8xf32>
    %62 = arith.mulf %57, %61 : vector<8x8xf32>
    %63 = arith.truncf %62 : vector<8x8xf32> to vector<8x8xbf16>
    %cst_30 = arith.constant dense<0.000000e+00> : vector<8x8xf32>
    %64 = tpu.matmul %63, %50, %cst_30 {dimension_numbers = #tpu.dot_dimension_numbers<[1], [0], [0], [1], [0, 0, 1, 1], [], []>} : vector<8x8xbf16>, vector<8x8xbf16>, vector<8x8xf32> -> vector<8x8xf32>
    %65 = arith.truncf %64 : vector<8x8xf32> to vector<8x8xbf16>
    %c0_31 = arith.constant 0 : index
    %c0_32 = arith.constant 0 : index
    %c0_33 = arith.constant 0 : index
    %66 = vector.load %arg10[%c0_31, %c0_32, %c0_33] : memref<4x8x32xbf16, #tpu.memory_space<vmem>>, vector<1x8x32xbf16>
    %67 = vector.shape_cast %66 : vector<1x8x32xbf16> to vector<8x32xbf16>
    %cst_34 = arith.constant dense<0.000000e+00> : vector<8x32xf32>
    %68 = tpu.matmul %65, %67, %cst_34 {dimension_numbers = #tpu.dot_dimension_numbers<[1], [0], [0], [1], [0, 0, 1, 1], [], []>} : vector<8x8xbf16>, vector<8x32xbf16>, vector<8x32xf32> -> vector<8x32xf32>
    %69 = arith.addf %44, %68 : vector<8x32xf32>
    %70 = vector.extract_strided_slice %41 {offsets = [0, 8], sizes = [8, 8], strides = [1, 1]} : vector<8x32xf32> to vector<8x8xf32>
    %71 = arith.truncf %70 : vector<8x8xf32> to vector<8x8xbf16>
    %72 = vector.extract_strided_slice %42 {offsets = [0, 8], sizes = [8, 8], strides = [1, 1]} : vector<8x32xf32> to vector<8x8xf32>
    %73 = arith.truncf %72 : vector<8x8xf32> to vector<8x8xbf16>
    %74 = vector.extract_strided_slice %43 {offsets = [0, 8], sizes = [8, 8], strides = [1, 1]} : vector<8x32xf32> to vector<8x8xf32>
    %75 = arith.truncf %74 : vector<8x8xf32> to vector<8x8xbf16>
    %cst_35 = arith.constant dense<0.000000e+00> : vector<8x8xf32>
    %76 = tpu.matmul %71, %73, %cst_35 {dimension_numbers = #tpu.dot_dimension_numbers<[1], [1], [0], [0], [0, 0, 1, 0], [], []>} : vector<8x8xbf16>, vector<8x8xbf16>, vector<8x8xf32> -> vector<8x8xf32>
    %77 = arith.addf %76, %8 : vector<8x8xf32>
    %cst_36 = arith.constant dense<0xFF800000> : vector<8xf32>
    %78 = vector.multi_reduction <maximumf>, %77, %cst_36 [1] : vector<8x8xf32> to vector<8xf32>
    %79 = vector.shape_cast %78 : vector<8xf32> to vector<8x1xf32>
    %80 = vector.broadcast %79 : vector<8x1xf32> to vector<8x8xf32>
    %81 = arith.subf %77, %80 : vector<8x8xf32>
    %82 = math.exp %81 : vector<8x8xf32>
    %cst_37 = arith.constant dense<0.000000e+00> : vector<8xf32>
    %83 = vector.multi_reduction <add>, %82, %cst_37 [1] : vector<8x8xf32> to vector<8xf32>
    %84 = vector.shape_cast %83 : vector<8xf32> to vector<8x1xf32>
    %85 = tpu.reciprocal %84 {approx = true} : vector<8x1xf32> -> vector<8x1xf32>
    %86 = vector.broadcast %85 : vector<8x1xf32> to vector<8x8xf32>
    %87 = arith.mulf %82, %86 : vector<8x8xf32>
    %88 = arith.truncf %87 : vector<8x8xf32> to vector<8x8xbf16>
    %cst_38 = arith.constant dense<0.000000e+00> : vector<8x8xf32>
    %89 = tpu.matmul %88, %75, %cst_38 {dimension_numbers = #tpu.dot_dimension_numbers<[1], [0], [0], [1], [0, 0, 1, 1], [], []>} : vector<8x8xbf16>, vector<8x8xbf16>, vector<8x8xf32> -> vector<8x8xf32>
    %90 = arith.truncf %89 : vector<8x8xf32> to vector<8x8xbf16>
    %c1 = arith.constant 1 : index
    %c0_39 = arith.constant 0 : index
    %c0_40 = arith.constant 0 : index
    %91 = vector.load %arg10[%c1, %c0_39, %c0_40] : memref<4x8x32xbf16, #tpu.memory_space<vmem>>, vector<1x8x32xbf16>
    %92 = vector.shape_cast %91 : vector<1x8x32xbf16> to vector<8x32xbf16>
    %cst_41 = arith.constant dense<0.000000e+00> : vector<8x32xf32>
    %93 = tpu.matmul %90, %92, %cst_41 {dimension_numbers = #tpu.dot_dimension_numbers<[1], [0], [0], [1], [0, 0, 1, 1], [], []>} : vector<8x8xbf16>, vector<8x32xbf16>, vector<8x32xf32> -> vector<8x32xf32>
    %94 = arith.addf %69, %93 : vector<8x32xf32>
    %95 = vector.extract_strided_slice %41 {offsets = [0, 16], sizes = [8, 8], strides = [1, 1]} : vector<8x32xf32> to vector<8x8xf32>
    %96 = arith.truncf %95 : vector<8x8xf32> to vector<8x8xbf16>
    %97 = vector.extract_strided_slice %42 {offsets = [0, 16], sizes = [8, 8], strides = [1, 1]} : vector<8x32xf32> to vector<8x8xf32>
    %98 = arith.truncf %97 : vector<8x8xf32> to vector<8x8xbf16>
    %99 = vector.extract_strided_slice %43 {offsets = [0, 16], sizes = [8, 8], strides = [1, 1]} : vector<8x32xf32> to vector<8x8xf32>
    %100 = arith.truncf %99 : vector<8x8xf32> to vector<8x8xbf16>
    %cst_42 = arith.constant dense<0.000000e+00> : vector<8x8xf32>
    %101 = tpu.matmul %96, %98, %cst_42 {dimension_numbers = #tpu.dot_dimension_numbers<[1], [1], [0], [0], [0, 0, 1, 0], [], []>} : vector<8x8xbf16>, vector<8x8xbf16>, vector<8x8xf32> -> vector<8x8xf32>
    %102 = arith.addf %101, %8 : vector<8x8xf32>
    %cst_43 = arith.constant dense<0xFF800000> : vector<8xf32>
    %103 = vector.multi_reduction <maximumf>, %102, %cst_43 [1] : vector<8x8xf32> to vector<8xf32>
    %104 = vector.shape_cast %103 : vector<8xf32> to vector<8x1xf32>
    %105 = vector.broadcast %104 : vector<8x1xf32> to vector<8x8xf32>
    %106 = arith.subf %102, %105 : vector<8x8xf32>
    %107 = math.exp %106 : vector<8x8xf32>
    %cst_44 = arith.constant dense<0.000000e+00> : vector<8xf32>
    %108 = vector.multi_reduction <add>, %107, %cst_44 [1] : vector<8x8xf32> to vector<8xf32>
    %109 = vector.shape_cast %108 : vector<8xf32> to vector<8x1xf32>
    %110 = tpu.reciprocal %109 {approx = true} : vector<8x1xf32> -> vector<8x1xf32>
    %111 = vector.broadcast %110 : vector<8x1xf32> to vector<8x8xf32>
    %112 = arith.mulf %107, %111 : vector<8x8xf32>
    %113 = arith.truncf %112 : vector<8x8xf32> to vector<8x8xbf16>
    %cst_45 = arith.constant dense<0.000000e+00> : vector<8x8xf32>
    %114 = tpu.matmul %113, %100, %cst_45 {dimension_numbers = #tpu.dot_dimension_numbers<[1], [0], [0], [1], [0, 0, 1, 1], [], []>} : vector<8x8xbf16>, vector<8x8xbf16>, vector<8x8xf32> -> vector<8x8xf32>
    %115 = arith.truncf %114 : vector<8x8xf32> to vector<8x8xbf16>
    %c2 = arith.constant 2 : index
    %c0_46 = arith.constant 0 : index
    %c0_47 = arith.constant 0 : index
    %116 = vector.load %arg10[%c2, %c0_46, %c0_47] : memref<4x8x32xbf16, #tpu.memory_space<vmem>>, vector<1x8x32xbf16>
    %117 = vector.shape_cast %116 : vector<1x8x32xbf16> to vector<8x32xbf16>
    %cst_48 = arith.constant dense<0.000000e+00> : vector<8x32xf32>
    %118 = tpu.matmul %115, %117, %cst_48 {dimension_numbers = #tpu.dot_dimension_numbers<[1], [0], [0], [1], [0, 0, 1, 1], [], []>} : vector<8x8xbf16>, vector<8x32xbf16>, vector<8x32xf32> -> vector<8x32xf32>
    %119 = arith.addf %94, %118 : vector<8x32xf32>
    %120 = vector.extract_strided_slice %41 {offsets = [0, 24], sizes = [8, 8], strides = [1, 1]} : vector<8x32xf32> to vector<8x8xf32>
    %121 = arith.truncf %120 : vector<8x8xf32> to vector<8x8xbf16>
    %122 = vector.extract_strided_slice %42 {offsets = [0, 24], sizes = [8, 8], strides = [1, 1]} : vector<8x32xf32> to vector<8x8xf32>
    %123 = arith.truncf %122 : vector<8x8xf32> to vector<8x8xbf16>
    %124 = vector.extract_strided_slice %43 {offsets = [0, 24], sizes = [8, 8], strides = [1, 1]} : vector<8x32xf32> to vector<8x8xf32>
    %125 = arith.truncf %124 : vector<8x8xf32> to vector<8x8xbf16>
    %cst_49 = arith.constant dense<0.000000e+00> : vector<8x8xf32>
    %126 = tpu.matmul %121, %123, %cst_49 {dimension_numbers = #tpu.dot_dimension_numbers<[1], [1], [0], [0], [0, 0, 1, 0], [], []>} : vector<8x8xbf16>, vector<8x8xbf16>, vector<8x8xf32> -> vector<8x8xf32>
    %127 = arith.addf %126, %8 : vector<8x8xf32>
    %cst_50 = arith.constant dense<0xFF800000> : vector<8xf32>
    %128 = vector.multi_reduction <maximumf>, %127, %cst_50 [1] : vector<8x8xf32> to vector<8xf32>
    %129 = vector.shape_cast %128 : vector<8xf32> to vector<8x1xf32>
    %130 = vector.broadcast %129 : vector<8x1xf32> to vector<8x8xf32>
    %131 = arith.subf %127, %130 : vector<8x8xf32>
    %132 = math.exp %131 : vector<8x8xf32>
    %cst_51 = arith.constant dense<0.000000e+00> : vector<8xf32>
    %133 = vector.multi_reduction <add>, %132, %cst_51 [1] : vector<8x8xf32> to vector<8xf32>
    %134 = vector.shape_cast %133 : vector<8xf32> to vector<8x1xf32>
    %135 = tpu.reciprocal %134 {approx = true} : vector<8x1xf32> -> vector<8x1xf32>
    %136 = vector.broadcast %135 : vector<8x1xf32> to vector<8x8xf32>
    %137 = arith.mulf %132, %136 : vector<8x8xf32>
    %138 = arith.truncf %137 : vector<8x8xf32> to vector<8x8xbf16>
    %cst_52 = arith.constant dense<0.000000e+00> : vector<8x8xf32>
    %139 = tpu.matmul %138, %125, %cst_52 {dimension_numbers = #tpu.dot_dimension_numbers<[1], [0], [0], [1], [0, 0, 1, 1], [], []>} : vector<8x8xbf16>, vector<8x8xbf16>, vector<8x8xf32> -> vector<8x8xf32>
    %140 = arith.truncf %139 : vector<8x8xf32> to vector<8x8xbf16>
    %c3 = arith.constant 3 : index
    %c0_53 = arith.constant 0 : index
    %c0_54 = arith.constant 0 : index
    %141 = vector.load %arg10[%c3, %c0_53, %c0_54] : memref<4x8x32xbf16, #tpu.memory_space<vmem>>, vector<1x8x32xbf16>
    %142 = vector.shape_cast %141 : vector<1x8x32xbf16> to vector<8x32xbf16>
    %cst_55 = arith.constant dense<0.000000e+00> : vector<8x32xf32>
    %143 = tpu.matmul %140, %142, %cst_55 {dimension_numbers = #tpu.dot_dimension_numbers<[1], [0], [0], [1], [0, 0, 1, 1], [], []>} : vector<8x8xbf16>, vector<8x32xbf16>, vector<8x32xf32> -> vector<8x32xf32>
    %144 = arith.addf %119, %143 : vector<8x32xf32>
    %c0_56 = arith.constant 0 : index
    %c0_57 = arith.constant 0 : index
    %145 = vector.load %arg11[%c0_56, %c0_57] : memref<1x32xf32, #tpu.memory_space<vmem>>, vector<1x32xf32>
    %146 = vector.broadcast %145 : vector<1x32xf32> to vector<8x32xf32>
    %147 = arith.addf %144, %146 : vector<8x32xf32>
    %148 = arith.addf %1, %147 : vector<8x32xf32>
    %c0_58 = arith.constant 0 : index
    %c0_59 = arith.constant 0 : index
    %149 = vector.load %arg12[%c0_58, %c0_59] : memref<1x32xf32, #tpu.memory_space<vmem>>, vector<1x32xf32>
    %c0_60 = arith.constant 0 : index
    %c0_61 = arith.constant 0 : index
    %150 = vector.load %arg13[%c0_60, %c0_61] : memref<1x32xf32, #tpu.memory_space<vmem>>, vector<1x32xf32>
    %cst_62 = arith.constant dense<0.000000e+00> : vector<8xf32>
    %151 = vector.multi_reduction <add>, %148, %cst_62 [1] : vector<8x32xf32> to vector<8xf32>
    %152 = vector.shape_cast %151 : vector<8xf32> to vector<8x1xf32>
    %cst_63 = arith.constant 3.200000e+01 : f32
    %153 = vector.broadcast %cst_63 : f32 to vector<8x1xf32>
    %154 = arith.divf %152, %153 : vector<8x1xf32>
    %155 = vector.broadcast %154 : vector<8x1xf32> to vector<8x32xf32>
    %156 = arith.subf %148, %155 : vector<8x32xf32>
    %157 = arith.mulf %156, %156 : vector<8x32xf32>
    %cst_64 = arith.constant dense<0.000000e+00> : vector<8xf32>
    %158 = vector.multi_reduction <add>, %157, %cst_64 [1] : vector<8x32xf32> to vector<8xf32>
    %159 = vector.shape_cast %158 : vector<8xf32> to vector<8x1xf32>
    %cst_65 = arith.constant 3.200000e+01 : f32
    %160 = vector.broadcast %cst_65 : f32 to vector<8x1xf32>
    %161 = arith.divf %159, %160 : vector<8x1xf32>
    %162 = vector.broadcast %154 : vector<8x1xf32> to vector<8x32xf32>
    %163 = arith.subf %148, %162 : vector<8x32xf32>
    %cst_66 = arith.constant 9.99999974E-6 : f32
    %164 = vector.broadcast %cst_66 : f32 to vector<8x1xf32>
    %165 = arith.addf %161, %164 : vector<8x1xf32>
    %166 = math.rsqrt %165 : vector<8x1xf32>
    %167 = vector.broadcast %166 : vector<8x1xf32> to vector<8x32xf32>
    %168 = arith.mulf %163, %167 : vector<8x32xf32>
    %169 = vector.broadcast %149 : vector<1x32xf32> to vector<8x32xf32>
    %170 = arith.mulf %168, %169 : vector<8x32xf32>
    %171 = vector.broadcast %150 : vector<1x32xf32> to vector<8x32xf32>
    %172 = arith.addf %170, %171 : vector<8x32xf32>
    %c0_67 = arith.constant 0 : index
    %c0_68 = arith.constant 0 : index
    %173 = vector.load %arg14[%c0_67, %c0_68] : memref<32x32xbf16, #tpu.memory_space<vmem>>, vector<32x32xbf16>
    %174 = arith.truncf %172 : vector<8x32xf32> to vector<8x32xbf16>
    %cst_69 = arith.constant dense<0.000000e+00> : vector<8x32xf32>
    %175 = tpu.matmul %174, %173, %cst_69 {dimension_numbers = #tpu.dot_dimension_numbers<[1], [0], [0], [1], [0, 0, 1, 1], [], []>} : vector<8x32xbf16>, vector<32x32xbf16>, vector<8x32xf32> -> vector<8x32xf32>
    %c0_70 = arith.constant 0 : index
    %c0_71 = arith.constant 0 : index
    %176 = vector.load %arg15[%c0_70, %c0_71] : memref<1x32xf32, #tpu.memory_space<vmem>>, vector<1x32xf32>
    %177 = vector.broadcast %176 : vector<1x32xf32> to vector<8x32xf32>
    %178 = arith.addf %175, %177 : vector<8x32xf32>
    %c0_72 = arith.constant 0 : index
    %c0_73 = arith.constant 0 : index
    %179 = vector.load %arg16[%c0_72, %c0_73] : memref<32x64xbf16, #tpu.memory_space<vmem>>, vector<32x64xbf16>
    %180 = arith.truncf %3 : vector<8x32xf32> to vector<8x32xbf16>
    %cst_74 = arith.constant dense<0.000000e+00> : vector<8x64xf32>
    %181 = tpu.matmul %180, %179, %cst_74 {dimension_numbers = #tpu.dot_dimension_numbers<[1], [0], [0], [1], [0, 0, 1, 1], [], []>} : vector<8x32xbf16>, vector<32x64xbf16>, vector<8x64xf32> -> vector<8x64xf32>
    %c0_75 = arith.constant 0 : index
    %c0_76 = arith.constant 0 : index
    %182 = vector.load %arg17[%c0_75, %c0_76] : memref<1x64xf32, #tpu.memory_space<vmem>>, vector<1x64xf32>
    %183 = vector.broadcast %182 : vector<1x64xf32> to vector<8x64xf32>
    %184 = arith.addf %181, %183 : vector<8x64xf32>
    %185 = vector.extract_strided_slice %184 {offsets = [0, 0], sizes = [8, 32], strides = [1, 1]} : vector<8x64xf32> to vector<8x32xf32>
    %186 = vector.extract_strided_slice %184 {offsets = [0, 32], sizes = [8, 32], strides = [1, 1]} : vector<8x64xf32> to vector<8x32xf32>
    %cst_77 = arith.constant 0.000000e+00 : f32
    %187 = vector.broadcast %cst_77 : f32 to vector<8x32xf32>
    %188 = vector.extract_strided_slice %178 {offsets = [0, 0], sizes = [8, 8], strides = [1, 1]} : vector<8x32xf32> to vector<8x8xf32>
    %189 = arith.truncf %188 : vector<8x8xf32> to vector<8x8xbf16>
    %190 = vector.extract_strided_slice %185 {offsets = [0, 0], sizes = [8, 8], strides = [1, 1]} : vector<8x32xf32> to vector<8x8xf32>
    %191 = arith.truncf %190 : vector<8x8xf32> to vector<8x8xbf16>
    %192 = vector.extract_strided_slice %186 {offsets = [0, 0], sizes = [8, 8], strides = [1, 1]} : vector<8x32xf32> to vector<8x8xf32>
    %193 = arith.truncf %192 : vector<8x8xf32> to vector<8x8xbf16>
    %cst_78 = arith.constant dense<0.000000e+00> : vector<8x8xf32>
    %194 = tpu.matmul %189, %191, %cst_78 {dimension_numbers = #tpu.dot_dimension_numbers<[1], [1], [0], [0], [0, 0, 1, 0], [], []>} : vector<8x8xbf16>, vector<8x8xbf16>, vector<8x8xf32> -> vector<8x8xf32>
    %195 = vector.broadcast %10 : vector<1x8xf32> to vector<8x8xf32>
    %196 = arith.addf %194, %195 : vector<8x8xf32>
    %cst_79 = arith.constant dense<0xFF800000> : vector<8xf32>
    %197 = vector.multi_reduction <maximumf>, %196, %cst_79 [1] : vector<8x8xf32> to vector<8xf32>
    %198 = vector.shape_cast %197 : vector<8xf32> to vector<8x1xf32>
    %199 = vector.broadcast %198 : vector<8x1xf32> to vector<8x8xf32>
    %200 = arith.subf %196, %199 : vector<8x8xf32>
    %201 = math.exp %200 : vector<8x8xf32>
    %cst_80 = arith.constant dense<0.000000e+00> : vector<8xf32>
    %202 = vector.multi_reduction <add>, %201, %cst_80 [1] : vector<8x8xf32> to vector<8xf32>
    %203 = vector.shape_cast %202 : vector<8xf32> to vector<8x1xf32>
    %204 = tpu.reciprocal %203 {approx = true} : vector<8x1xf32> -> vector<8x1xf32>
    %205 = vector.broadcast %204 : vector<8x1xf32> to vector<8x8xf32>
    %206 = arith.mulf %201, %205 : vector<8x8xf32>
    %207 = arith.truncf %206 : vector<8x8xf32> to vector<8x8xbf16>
    %cst_81 = arith.constant dense<0.000000e+00> : vector<8x8xf32>
    %208 = tpu.matmul %207, %193, %cst_81 {dimension_numbers = #tpu.dot_dimension_numbers<[1], [0], [0], [1], [0, 0, 1, 1], [], []>} : vector<8x8xbf16>, vector<8x8xbf16>, vector<8x8xf32> -> vector<8x8xf32>
    %209 = arith.truncf %208 : vector<8x8xf32> to vector<8x8xbf16>
    %c0_82 = arith.constant 0 : index
    %c0_83 = arith.constant 0 : index
    %c0_84 = arith.constant 0 : index
    %210 = vector.load %arg18[%c0_82, %c0_83, %c0_84] : memref<4x8x32xbf16, #tpu.memory_space<vmem>>, vector<1x8x32xbf16>
    %211 = vector.shape_cast %210 : vector<1x8x32xbf16> to vector<8x32xbf16>
    %cst_85 = arith.constant dense<0.000000e+00> : vector<8x32xf32>
    %212 = tpu.matmul %209, %211, %cst_85 {dimension_numbers = #tpu.dot_dimension_numbers<[1], [0], [0], [1], [0, 0, 1, 1], [], []>} : vector<8x8xbf16>, vector<8x32xbf16>, vector<8x32xf32> -> vector<8x32xf32>
    %213 = arith.addf %187, %212 : vector<8x32xf32>
    %214 = vector.extract_strided_slice %178 {offsets = [0, 8], sizes = [8, 8], strides = [1, 1]} : vector<8x32xf32> to vector<8x8xf32>
    %215 = arith.truncf %214 : vector<8x8xf32> to vector<8x8xbf16>
    %216 = vector.extract_strided_slice %185 {offsets = [0, 8], sizes = [8, 8], strides = [1, 1]} : vector<8x32xf32> to vector<8x8xf32>
    %217 = arith.truncf %216 : vector<8x8xf32> to vector<8x8xbf16>
    %218 = vector.extract_strided_slice %186 {offsets = [0, 8], sizes = [8, 8], strides = [1, 1]} : vector<8x32xf32> to vector<8x8xf32>
    %219 = arith.truncf %218 : vector<8x8xf32> to vector<8x8xbf16>
    %cst_86 = arith.constant dense<0.000000e+00> : vector<8x8xf32>
    %220 = tpu.matmul %215, %217, %cst_86 {dimension_numbers = #tpu.dot_dimension_numbers<[1], [1], [0], [0], [0, 0, 1, 0], [], []>} : vector<8x8xbf16>, vector<8x8xbf16>, vector<8x8xf32> -> vector<8x8xf32>
    %221 = vector.broadcast %10 : vector<1x8xf32> to vector<8x8xf32>
    %222 = arith.addf %220, %221 : vector<8x8xf32>
    %cst_87 = arith.constant dense<0xFF800000> : vector<8xf32>
    %223 = vector.multi_reduction <maximumf>, %222, %cst_87 [1] : vector<8x8xf32> to vector<8xf32>
    %224 = vector.shape_cast %223 : vector<8xf32> to vector<8x1xf32>
    %225 = vector.broadcast %224 : vector<8x1xf32> to vector<8x8xf32>
    %226 = arith.subf %222, %225 : vector<8x8xf32>
    %227 = math.exp %226 : vector<8x8xf32>
    %cst_88 = arith.constant dense<0.000000e+00> : vector<8xf32>
    %228 = vector.multi_reduction <add>, %227, %cst_88 [1] : vector<8x8xf32> to vector<8xf32>
    %229 = vector.shape_cast %228 : vector<8xf32> to vector<8x1xf32>
    %230 = tpu.reciprocal %229 {approx = true} : vector<8x1xf32> -> vector<8x1xf32>
    %231 = vector.broadcast %230 : vector<8x1xf32> to vector<8x8xf32>
    %232 = arith.mulf %227, %231 : vector<8x8xf32>
    %233 = arith.truncf %232 : vector<8x8xf32> to vector<8x8xbf16>
    %cst_89 = arith.constant dense<0.000000e+00> : vector<8x8xf32>
    %234 = tpu.matmul %233, %219, %cst_89 {dimension_numbers = #tpu.dot_dimension_numbers<[1], [0], [0], [1], [0, 0, 1, 1], [], []>} : vector<8x8xbf16>, vector<8x8xbf16>, vector<8x8xf32> -> vector<8x8xf32>
    %235 = arith.truncf %234 : vector<8x8xf32> to vector<8x8xbf16>
    %c1_90 = arith.constant 1 : index
    %c0_91 = arith.constant 0 : index
    %c0_92 = arith.constant 0 : index
    %236 = vector.load %arg18[%c1_90, %c0_91, %c0_92] : memref<4x8x32xbf16, #tpu.memory_space<vmem>>, vector<1x8x32xbf16>
    %237 = vector.shape_cast %236 : vector<1x8x32xbf16> to vector<8x32xbf16>
    %cst_93 = arith.constant dense<0.000000e+00> : vector<8x32xf32>
    %238 = tpu.matmul %235, %237, %cst_93 {dimension_numbers = #tpu.dot_dimension_numbers<[1], [0], [0], [1], [0, 0, 1, 1], [], []>} : vector<8x8xbf16>, vector<8x32xbf16>, vector<8x32xf32> -> vector<8x32xf32>
    %239 = arith.addf %213, %238 : vector<8x32xf32>
    %240 = vector.extract_strided_slice %178 {offsets = [0, 16], sizes = [8, 8], strides = [1, 1]} : vector<8x32xf32> to vector<8x8xf32>
    %241 = arith.truncf %240 : vector<8x8xf32> to vector<8x8xbf16>
    %242 = vector.extract_strided_slice %185 {offsets = [0, 16], sizes = [8, 8], strides = [1, 1]} : vector<8x32xf32> to vector<8x8xf32>
    %243 = arith.truncf %242 : vector<8x8xf32> to vector<8x8xbf16>
    %244 = vector.extract_strided_slice %186 {offsets = [0, 16], sizes = [8, 8], strides = [1, 1]} : vector<8x32xf32> to vector<8x8xf32>
    %245 = arith.truncf %244 : vector<8x8xf32> to vector<8x8xbf16>
    %cst_94 = arith.constant dense<0.000000e+00> : vector<8x8xf32>
    %246 = tpu.matmul %241, %243, %cst_94 {dimension_numbers = #tpu.dot_dimension_numbers<[1], [1], [0], [0], [0, 0, 1, 0], [], []>} : vector<8x8xbf16>, vector<8x8xbf16>, vector<8x8xf32> -> vector<8x8xf32>
    %247 = vector.broadcast %10 : vector<1x8xf32> to vector<8x8xf32>
    %248 = arith.addf %246, %247 : vector<8x8xf32>
    %cst_95 = arith.constant dense<0xFF800000> : vector<8xf32>
    %249 = vector.multi_reduction <maximumf>, %248, %cst_95 [1] : vector<8x8xf32> to vector<8xf32>
    %250 = vector.shape_cast %249 : vector<8xf32> to vector<8x1xf32>
    %251 = vector.broadcast %250 : vector<8x1xf32> to vector<8x8xf32>
    %252 = arith.subf %248, %251 : vector<8x8xf32>
    %253 = math.exp %252 : vector<8x8xf32>
    %cst_96 = arith.constant dense<0.000000e+00> : vector<8xf32>
    %254 = vector.multi_reduction <add>, %253, %cst_96 [1] : vector<8x8xf32> to vector<8xf32>
    %255 = vector.shape_cast %254 : vector<8xf32> to vector<8x1xf32>
    %256 = tpu.reciprocal %255 {approx = true} : vector<8x1xf32> -> vector<8x1xf32>
    %257 = vector.broadcast %256 : vector<8x1xf32> to vector<8x8xf32>
    %258 = arith.mulf %253, %257 : vector<8x8xf32>
    %259 = arith.truncf %258 : vector<8x8xf32> to vector<8x8xbf16>
    %cst_97 = arith.constant dense<0.000000e+00> : vector<8x8xf32>
    %260 = tpu.matmul %259, %245, %cst_97 {dimension_numbers = #tpu.dot_dimension_numbers<[1], [0], [0], [1], [0, 0, 1, 1], [], []>} : vector<8x8xbf16>, vector<8x8xbf16>, vector<8x8xf32> -> vector<8x8xf32>
    %261 = arith.truncf %260 : vector<8x8xf32> to vector<8x8xbf16>
    %c2_98 = arith.constant 2 : index
    %c0_99 = arith.constant 0 : index
    %c0_100 = arith.constant 0 : index
    %262 = vector.load %arg18[%c2_98, %c0_99, %c0_100] : memref<4x8x32xbf16, #tpu.memory_space<vmem>>, vector<1x8x32xbf16>
    %263 = vector.shape_cast %262 : vector<1x8x32xbf16> to vector<8x32xbf16>
    %cst_101 = arith.constant dense<0.000000e+00> : vector<8x32xf32>
    %264 = tpu.matmul %261, %263, %cst_101 {dimension_numbers = #tpu.dot_dimension_numbers<[1], [0], [0], [1], [0, 0, 1, 1], [], []>} : vector<8x8xbf16>, vector<8x32xbf16>, vector<8x32xf32> -> vector<8x32xf32>
    %265 = arith.addf %239, %264 : vector<8x32xf32>
    %266 = vector.extract_strided_slice %178 {offsets = [0, 24], sizes = [8, 8], strides = [1, 1]} : vector<8x32xf32> to vector<8x8xf32>
    %267 = arith.truncf %266 : vector<8x8xf32> to vector<8x8xbf16>
    %268 = vector.extract_strided_slice %185 {offsets = [0, 24], sizes = [8, 8], strides = [1, 1]} : vector<8x32xf32> to vector<8x8xf32>
    %269 = arith.truncf %268 : vector<8x8xf32> to vector<8x8xbf16>
    %270 = vector.extract_strided_slice %186 {offsets = [0, 24], sizes = [8, 8], strides = [1, 1]} : vector<8x32xf32> to vector<8x8xf32>
    %271 = arith.truncf %270 : vector<8x8xf32> to vector<8x8xbf16>
    %cst_102 = arith.constant dense<0.000000e+00> : vector<8x8xf32>
    %272 = tpu.matmul %267, %269, %cst_102 {dimension_numbers = #tpu.dot_dimension_numbers<[1], [1], [0], [0], [0, 0, 1, 0], [], []>} : vector<8x8xbf16>, vector<8x8xbf16>, vector<8x8xf32> -> vector<8x8xf32>
    %273 = vector.broadcast %10 : vector<1x8xf32> to vector<8x8xf32>
    %274 = arith.addf %272, %273 : vector<8x8xf32>
    %cst_103 = arith.constant dense<0xFF800000> : vector<8xf32>
    %275 = vector.multi_reduction <maximumf>, %274, %cst_103 [1] : vector<8x8xf32> to vector<8xf32>
    %276 = vector.shape_cast %275 : vector<8xf32> to vector<8x1xf32>
    %277 = vector.broadcast %276 : vector<8x1xf32> to vector<8x8xf32>
    %278 = arith.subf %274, %277 : vector<8x8xf32>
    %279 = math.exp %278 : vector<8x8xf32>
    %cst_104 = arith.constant dense<0.000000e+00> : vector<8xf32>
    %280 = vector.multi_reduction <add>, %279, %cst_104 [1] : vector<8x8xf32> to vector<8xf32>
    %281 = vector.shape_cast %280 : vector<8xf32> to vector<8x1xf32>
    %282 = tpu.reciprocal %281 {approx = true} : vector<8x1xf32> -> vector<8x1xf32>
    %283 = vector.broadcast %282 : vector<8x1xf32> to vector<8x8xf32>
    %284 = arith.mulf %279, %283 : vector<8x8xf32>
    %285 = arith.truncf %284 : vector<8x8xf32> to vector<8x8xbf16>
    %cst_105 = arith.constant dense<0.000000e+00> : vector<8x8xf32>
    %286 = tpu.matmul %285, %271, %cst_105 {dimension_numbers = #tpu.dot_dimension_numbers<[1], [0], [0], [1], [0, 0, 1, 1], [], []>} : vector<8x8xbf16>, vector<8x8xbf16>, vector<8x8xf32> -> vector<8x8xf32>
    %287 = arith.truncf %286 : vector<8x8xf32> to vector<8x8xbf16>
    %c3_106 = arith.constant 3 : index
    %c0_107 = arith.constant 0 : index
    %c0_108 = arith.constant 0 : index
    %288 = vector.load %arg18[%c3_106, %c0_107, %c0_108] : memref<4x8x32xbf16, #tpu.memory_space<vmem>>, vector<1x8x32xbf16>
    %289 = vector.shape_cast %288 : vector<1x8x32xbf16> to vector<8x32xbf16>
    %cst_109 = arith.constant dense<0.000000e+00> : vector<8x32xf32>
    %290 = tpu.matmul %287, %289, %cst_109 {dimension_numbers = #tpu.dot_dimension_numbers<[1], [0], [0], [1], [0, 0, 1, 1], [], []>} : vector<8x8xbf16>, vector<8x32xbf16>, vector<8x32xf32> -> vector<8x32xf32>
    %291 = arith.addf %265, %290 : vector<8x32xf32>
    %c0_110 = arith.constant 0 : index
    %c0_111 = arith.constant 0 : index
    %292 = vector.load %arg19[%c0_110, %c0_111] : memref<1x32xf32, #tpu.memory_space<vmem>>, vector<1x32xf32>
    %293 = vector.broadcast %292 : vector<1x32xf32> to vector<8x32xf32>
    %294 = arith.addf %291, %293 : vector<8x32xf32>
    %295 = arith.addf %148, %294 : vector<8x32xf32>
    %c0_112 = arith.constant 0 : index
    %c0_113 = arith.constant 0 : index
    %296 = vector.load %arg20[%c0_112, %c0_113] : memref<1x32xf32, #tpu.memory_space<vmem>>, vector<1x32xf32>
    %c0_114 = arith.constant 0 : index
    %c0_115 = arith.constant 0 : index
    %297 = vector.load %arg21[%c0_114, %c0_115] : memref<1x32xf32, #tpu.memory_space<vmem>>, vector<1x32xf32>
    %cst_116 = arith.constant dense<0.000000e+00> : vector<8xf32>
    %298 = vector.multi_reduction <add>, %295, %cst_116 [1] : vector<8x32xf32> to vector<8xf32>
    %299 = vector.shape_cast %298 : vector<8xf32> to vector<8x1xf32>
    %cst_117 = arith.constant 3.200000e+01 : f32
    %300 = vector.broadcast %cst_117 : f32 to vector<8x1xf32>
    %301 = arith.divf %299, %300 : vector<8x1xf32>
    %302 = vector.broadcast %301 : vector<8x1xf32> to vector<8x32xf32>
    %303 = arith.subf %295, %302 : vector<8x32xf32>
    %304 = arith.mulf %303, %303 : vector<8x32xf32>
    %cst_118 = arith.constant dense<0.000000e+00> : vector<8xf32>
    %305 = vector.multi_reduction <add>, %304, %cst_118 [1] : vector<8x32xf32> to vector<8xf32>
    %306 = vector.shape_cast %305 : vector<8xf32> to vector<8x1xf32>
    %cst_119 = arith.constant 3.200000e+01 : f32
    %307 = vector.broadcast %cst_119 : f32 to vector<8x1xf32>
    %308 = arith.divf %306, %307 : vector<8x1xf32>
    %309 = vector.broadcast %301 : vector<8x1xf32> to vector<8x32xf32>
    %310 = arith.subf %295, %309 : vector<8x32xf32>
    %cst_120 = arith.constant 9.99999974E-6 : f32
    %311 = vector.broadcast %cst_120 : f32 to vector<8x1xf32>
    %312 = arith.addf %308, %311 : vector<8x1xf32>
    %313 = math.rsqrt %312 : vector<8x1xf32>
    %314 = vector.broadcast %313 : vector<8x1xf32> to vector<8x32xf32>
    %315 = arith.mulf %310, %314 : vector<8x32xf32>
    %316 = vector.broadcast %296 : vector<1x32xf32> to vector<8x32xf32>
    %317 = arith.mulf %315, %316 : vector<8x32xf32>
    %318 = vector.broadcast %297 : vector<1x32xf32> to vector<8x32xf32>
    %319 = arith.addf %317, %318 : vector<8x32xf32>
    %c0_121 = arith.constant 0 : index
    %c0_122 = arith.constant 0 : index
    %320 = vector.load %arg22[%c0_121, %c0_122] : memref<32x64xbf16, #tpu.memory_space<vmem>>, vector<32x64xbf16>
    %321 = arith.truncf %319 : vector<8x32xf32> to vector<8x32xbf16>
    %cst_123 = arith.constant dense<0.000000e+00> : vector<8x64xf32>
    %322 = tpu.matmul %321, %320, %cst_123 {dimension_numbers = #tpu.dot_dimension_numbers<[1], [0], [0], [1], [0, 0, 1, 1], [], []>} : vector<8x32xbf16>, vector<32x64xbf16>, vector<8x64xf32> -> vector<8x64xf32>
    %c0_124 = arith.constant 0 : index
    %c0_125 = arith.constant 0 : index
    %323 = vector.load %arg23[%c0_124, %c0_125] : memref<1x64xf32, #tpu.memory_space<vmem>>, vector<1x64xf32>
    %324 = vector.broadcast %323 : vector<1x64xf32> to vector<8x64xf32>
    %325 = arith.addf %322, %324 : vector<8x64xf32>
    %cst_126 = arith.constant 0.000000e+00 : f32
    %326 = vector.broadcast %cst_126 : f32 to vector<8x64xf32>
    %327 = arith.maximumf %325, %326 : vector<8x64xf32>
    %c0_127 = arith.constant 0 : index
    %c0_128 = arith.constant 0 : index
    %328 = vector.load %arg24[%c0_127, %c0_128] : memref<64x32xbf16, #tpu.memory_space<vmem>>, vector<64x32xbf16>
    %329 = arith.truncf %327 : vector<8x64xf32> to vector<8x64xbf16>
    %cst_129 = arith.constant dense<0.000000e+00> : vector<8x32xf32>
    %330 = tpu.matmul %329, %328, %cst_129 {dimension_numbers = #tpu.dot_dimension_numbers<[1], [0], [0], [1], [0, 0, 1, 1], [], []>} : vector<8x64xbf16>, vector<64x32xbf16>, vector<8x32xf32> -> vector<8x32xf32>
    %c0_130 = arith.constant 0 : index
    %c0_131 = arith.constant 0 : index
    %331 = vector.load %arg25[%c0_130, %c0_131] : memref<1x32xf32, #tpu.memory_space<vmem>>, vector<1x32xf32>
    %332 = vector.broadcast %331 : vector<1x32xf32> to vector<8x32xf32>
    %333 = arith.addf %330, %332 : vector<8x32xf32>
    %334 = arith.addf %295, %333 : vector<8x32xf32>
    %c0_132 = arith.constant 0 : index
    %c0_133 = arith.constant 0 : index
    %c0_134 = arith.constant 0 : index
    %335 = vector.load %arg28[%c0_132, %c0_133, %c0_134] : memref<1x8x32xf32, #tpu.memory_space<vmem>>, vector<1x8x32xf32>
    %336 = vector.shape_cast %335 : vector<1x8x32xf32> to vector<8x32xf32>
    %337 = vector.shape_cast %334 : vector<8x32xf32> to vector<1x8x32xf32>
    tpu.vector_store %arg28[%c0_132, %c0_133, %c0_134], %337 {strides = array<i32>} : memref<1x8x32xf32, #tpu.memory_space<vmem>>, vector<1x8x32xf32>,
    return
  }
  func.func @transform_0(%arg0: i32) -> (i32, i32, i32) {
    %c0_i32 = arith.constant 0 : i32
    %c0_i32_0 = arith.constant 0 : i32
    %c0_i32_1 = arith.constant 0 : i32
    return %arg0, %c0_i32, %c0_i32_0 : i32, i32, i32
  }
  func.func @transform_1(%arg0: i32) -> (i32, i32, i32) {
    %c0_i32 = arith.constant 0 : i32
    %c0_i32_0 = arith.constant 0 : i32
    %c0_i32_1 = arith.constant 0 : i32
    return %arg0, %c0_i32, %c0_i32_0 : i32, i32, i32
  }
  func.func @transform_2(%arg0: i32) -> (i32, i32) {
    %c0_i32 = arith.constant 0 : i32
    %c0_i32_0 = arith.constant 0 : i32
    %c0_i32_1 = arith.constant 0 : i32
    return %c0_i32, %c0_i32_0 : i32, i32
  }
  func.func @transform_3(%arg0: i32) -> (i32, i32, i32) {
    %c0_i32 = arith.constant 0 : i32
    %c0_i32_0 = arith.constant 0 : i32
    %c0_i32_1 = arith.constant 0 : i32
    return %arg0, %c0_i32, %c0_i32_0 : i32, i32, i32
  }
  func.func @transform_4(%arg0: i32) -> (i32, i32, i32) {
    %c0_i32 = arith.constant 0 : i32
    %c0_i32_0 = arith.constant 0 : i32
    %c0_i32_1 = arith.constant 0 : i32
    return %arg0, %c0_i32, %c0_i32_0 : i32, i32, i32
  }
  func.func @transform_5(%arg0: i32) -> (i32, i32) {
    %c0_i32 = arith.constant 0 : i32
    %c0_i32_0 = arith.constant 0 : i32
    %c0_i32_1 = arith.constant 0 : i32
    return %c0_i32, %c0_i32_0 : i32, i32
  }
  func.func @transform_6(%arg0: i32) -> (i32, i32) {
    %c0_i32 = arith.constant 0 : i32
    %c0_i32_0 = arith.constant 0 : i32
    %c0_i32_1 = arith.constant 0 : i32
    return %c0_i32, %c0_i32_0 : i32, i32
  }
  func.func @transform_7(%arg0: i32) -> (i32, i32) {
    %c0_i32 = arith.constant 0 : i32
    %c0_i32_0 = arith.constant 0 : i32
    %c0_i32_1 = arith.constant 0 : i32
    return %c0_i32, %c0_i32_0 : i32, i32
  }
  func.func @transform_8(%arg0: i32) -> (i32, i32) {
    %c0_i32 = arith.constant 0 : i32
    %c0_i32_0 = arith.constant 0 : i32
    %c0_i32_1 = arith.constant 0 : i32
    return %c0_i32, %c0_i32_0 : i32, i32
  }
  func.func @transform_9(%arg0: i32) -> (i32, i32, i32) {
    %c0_i32 = arith.constant 0 : i32
    %c0_i32_0 = arith.constant 0 : i32
    %c0_i32_1 = arith.constant 0 : i32
    %c0_i32_2 = arith.constant 0 : i32
    return %c0_i32, %c0_i32_0, %c0_i32_1 : i32, i32, i32
  }
  func.func @transform_10(%arg0: i32) -> (i32, i32) {
    %c0_i32 = arith.constant 0 : i32
    %c0_i32_0 = arith.constant 0 : i32
    %c0_i32_1 = arith.constant 0 : i32
    return %c0_i32, %c0_i32_0 : i32, i32
  }
  func.func @transform_11(%arg0: i32) -> (i32, i32) {
    %c0_i32 = arith.constant 0 : i32
    %c0_i32_0 = arith.constant 0 : i32
    %c0_i32_1 = arith.constant 0 : i32
    return %c0_i32, %c0_i32_0 : i32, i32
  }
  func.func @transform_12(%arg0: i32) -> (i32, i32) {
    %c0_i32 = arith.constant 0 : i32
    %c0_i32_0 = arith.constant 0 : i32
    %c0_i32_1 = arith.constant 0 : i32
    return %c0_i32, %c0_i32_0 : i32, i32
  }
  func.func @transform_13(%arg0: i32) -> (i32, i32) {
    %c0_i32 = arith.constant 0 : i32
    %c0_i32_0 = arith.constant 0 : i32
    %c0_i32_1 = arith.constant 0 : i32
    return %c0_i32, %c0_i32_0 : i32, i32
  }
  func.func @transform_14(%arg0: i32) -> (i32, i32) {
    %c0_i32 = arith.constant 0 : i32
    %c0_i32_0 = arith.constant 0 : i32
    %c0_i32_1 = arith.constant 0 : i32
    return %c0_i32, %c0_i32_0 : i32, i32
  }
  func.func @transform_15(%arg0: i32) -> (i32, i32) {
    %c0_i32 = arith.constant 0 : i32
    %c0_i32_0 = arith.constant 0 : i32
    %c0_i32_1 = arith.constant 0 : i32
    return %c0_i32, %c0_i32_0 : i32, i32
  }
  func.func @transform_16(%arg0: i32) -> (i32, i32) {
    %c0_i32 = arith.constant 0 : i32
    %c0_i32_0 = arith.constant 0 : i32
    %c0_i32_1 = arith.constant 0 : i32
    return %c0_i32, %c0_i32_0 : i32, i32
  }
  func.func @transform_17(%arg0: i32) -> (i32, i32, i32) {
    %c0_i32 = arith.constant 0 : i32
    %c0_i32_0 = arith.constant 0 : i32
    %c0_i32_1 = arith.constant 0 : i32
    %c0_i32_2 = arith.constant 0 : i32
    return %c0_i32, %c0_i32_0, %c0_i32_1 : i32, i32, i32
  }
  func.func @transform_18(%arg0: i32) -> (i32, i32) {
    %c0_i32 = arith.constant 0 : i32
    %c0_i32_0 = arith.constant 0 : i32
    %c0_i32_1 = arith.constant 0 : i32
    return %c0_i32, %c0_i32_0 : i32, i32
  }
  func.func @transform_19(%arg0: i32) -> (i32, i32) {
    %c0_i32 = arith.constant 0 : i32
    %c0_i32_0 = arith.constant 0 : i32
    %c0_i32_1 = arith.constant 0 : i32
    return %c0_i32, %c0_i32_0 : i32, i32
  }
  func.func @transform_20(%arg0: i32) -> (i32, i32) {
    %c0_i32 = arith.constant 0 : i32
    %c0_i32_0 = arith.constant 0 : i32
    %c0_i32_1 = arith.constant 0 : i32
    return %c0_i32, %c0_i32_0 : i32, i32
  }
  func.func @transform_21(%arg0: i32) -> (i32, i32) {
    %c0_i32 = arith.constant 0 : i32
    %c0_i32_0 = arith.constant 0 : i32
    %c0_i32_1 = arith.constant 0 : i32
    return %c0_i32, %c0_i32_0 : i32, i32
  }
  func.func @transform_22(%arg0: i32) -> (i32, i32) {
    %c0_i32 = arith.constant 0 : i32
    %c0_i32_0 = arith.constant 0 : i32
    %c0_i32_1 = arith.constant 0 : i32
    return %c0_i32, %c0_i32_0 : i32, i32
  }
  func.func @transform_23(%arg0: i32) -> (i32, i32) {
    %c0_i32 = arith.constant 0 : i32
    %c0_i32_0 = arith.constant 0 : i32
    %c0_i32_1 = arith.constant 0 : i32
    return %c0_i32, %c0_i32_0 : i32, i32
  }
  func.func @transform_24(%arg0: i32) -> (i32, i32) {
    %c0_i32 = arith.constant 0 : i32
    %c0_i32_0 = arith.constant 0 : i32
    %c0_i32_1 = arith.constant 0 : i32
    return %c0_i32, %c0_i32_0 : i32, i32
  }
  func.func @transform_25(%arg0: i32) -> (i32, i32) {
    %c0_i32 = arith.constant 0 : i32
    %c0_i32_0 = arith.constant 0 : i32
    %c0_i32_1 = arith.constant 0 : i32
    return %c0_i32, %c0_i32_0 : i32, i32
  }
  func.func @transform_26(%arg0: i32) -> (i32, i32) {
    %c0_i32 = arith.constant 0 : i32
    %c0_i32_0 = arith.constant 0 : i32
    %c0_i32_1 = arith.constant 0 : i32
    return %c0_i32, %c0_i32_0 : i32, i32
  }
  func.func @transform_27(%arg0: i32) -> (i32, i32, i32) {
    %c0_i32 = arith.constant 0 : i32
    %c0_i32_0 = arith.constant 0 : i32
    %c0_i32_1 = arith.constant 0 : i32
    return %arg0, %c0_i32, %c0_i32_0 : i32, i32, i32
  }
}

</mosaic_0001>

<llo_original>
// kernel: tpu_custom_call.1
$region0: #{tpu_custom_call.1}
  #allocation0 [shape = 'u32[]', space=smem, size = 0x4, offset = 0x4, fixed_abs, tag = 'smem constant byte address 0x4 - core index']
  #allocation1 [shape = 'u32[144,128]{1,0:T(1,128)}', space=vmem, size = 0x12000, scoped, tag = 'internal scratch']
  %s0 = inlined_call_operand.vmem [shape: f32[2,8,32], index: 0, kind: input, shape index: {}]
  %s1 = inlined_call_operand.vmem [shape: f32[2,8,32], index: 1, kind: input, shape index: {}]
  %s2 = inlined_call_operand.hbm [shape: f32[8,8], index: 2, kind: input, shape index: {}]
  %s3 = inlined_call_operand.hbm [shape: f32[2,1,8], index: 3, kind: input, shape index: {}]
  %s4 = inlined_call_operand.hbm [shape: f32[2,1,8], index: 4, kind: input, shape index: {}]
  %s5 = inlined_call_operand.hbm [shape: f32[1,32], index: 5, kind: input, shape index: {}]
  %s6 = inlined_call_operand.hbm [shape: f32[1,32], index: 6, kind: input, shape index: {}]
  %s7 = inlined_call_operand.vmem [shape: bf16[32,96], index: 7, kind: input, shape index: {}]
  %s8 = inlined_call_operand.hbm [shape: f32[1,96], index: 8, kind: input, shape index: {}]
  %s9 = inlined_call_operand.vmem [shape: bf16[4,8,32], index: 9, kind: input, shape index: {}]
  %s10 = inlined_call_operand.hbm [shape: f32[1,32], index: 10, kind: input, shape index: {}]
  %s11 = inlined_call_operand.hbm [shape: f32[1,32], index: 11, kind: input, shape index: {}]
  %s12 = inlined_call_operand.hbm [shape: f32[1,32], index: 12, kind: input, shape index: {}]
  %s13 = inlined_call_operand.vmem [shape: bf16[32,32], index: 13, kind: input, shape index: {}]
  %s14 = inlined_call_operand.hbm [shape: f32[1,32], index: 14, kind: input, shape index: {}]
  %s15 = inlined_call_operand.hbm [shape: bf16[32,64], index: 15, kind: input, shape index: {}]
  %s16 = inlined_call_operand.hbm [shape: f32[1,64], index: 16, kind: input, shape index: {}]
  %s17 = inlined_call_operand.vmem [shape: bf16[4,8,32], index: 17, kind: input, shape index: {}]
  %s18 = inlined_call_operand.vmem [shape: f32[1,32], index: 18, kind: input, shape index: {}]
  %s19 = inlined_call_operand.vmem [shape: f32[1,32], index: 19, kind: input, shape index: {}]
  %s20 = inlined_call_operand.vmem [shape: f32[1,32], index: 20, kind: input, shape index: {}]
  %s21 = inlined_call_operand.hbm [shape: bf16[32,64], index: 21, kind: input, shape index: {}]
  %s22 = inlined_call_operand.vmem [shape: f32[1,64], index: 22, kind: input, shape index: {}]
  %s23 = inlined_call_operand.vmem [shape: bf16[64,32], index: 23, kind: input, shape index: {}]
  %s24 = inlined_call_operand.vmem [shape: f32[1,32], index: 24, kind: input, shape index: {}]
  %s25 = inlined_call_operand.vmem [shape: f32[1,32], index: 25, kind: input, shape index: {}]
  %s26 = inlined_call_operand.vmem [shape: f32[1,32], index: 26, kind: input, shape index: {}]
  %s27 = inlined_call_operand.hbm [shape: f32[2,8,32], index: 27, kind: output, shape index: {}]
  %s28 = sld [smem:[#allocation0]]
  $region193: #{tpu_custom_call.1} parent=0
    _
  %s30 = ssub.s32 1, %s28
  %s31 = scalar_select 0, %s30, %s28
  $region1: #{tpu_custom_call.1} parent=0
    #allocation2 [shape = 'u8[4096]{0}', space=vmem, size = 0x1000, scoped, tag = 'input window, operand 2, single buffered']
    #allocation3 [shape = 's32[2]{0}', space=sflag, size = 0x8, scoped, tag = 'scoped memory for tpu_custom_call.1']
    #allocation4 [shape = 's32[2]{0}', space=sflag, size = 0x8, scoped, tag = 'scoped memory for tpu_custom_call.1']
    #allocation5 [shape = 'u8[1024]{0}', space=vmem, size = 0x400, scoped, tag = 'input window, operand 3']
    #allocation6 [shape = 's32[2]{0}', space=sflag, size = 0x8, scoped, tag = 'scoped memory for tpu_custom_call.1']
    #allocation7 [shape = 'u8[1024]{0}', space=vmem, size = 0x400, scoped, tag = 'input window, operand 4']
    #allocation8 [shape = 'u8[512]{0}', space=vmem, size = 0x400, scoped, tag = 'input window, operand 5, single buffered']
    #allocation9 [shape = 's32[1]{0}', space=sflag, size = 0x4, scoped, tag = 'scoped memory for tpu_custom_call.1']
    #allocation10 [shape = 'u8[512]{0}', space=vmem, size = 0x400, scoped, tag = 'input window, operand 6, single buffered']
    #allocation11 [shape = 'u8[512]{0}', space=vmem, size = 0x400, scoped, tag = 'input window, operand 8, single buffered']
    #allocation12 [shape = 's32[1]{0}', space=sflag, size = 0x4, scoped, tag = 'scoped memory for tpu_custom_call.1']
    #allocation13 [shape = 'u8[512]{0}', space=vmem, size = 0x400, scoped, tag = 'input window, operand 10, single buffered']
    #allocation14 [shape = 'u8[512]{0}', space=vmem, size = 0x400, scoped, tag = 'input window, operand 11, single buffered']
    #allocation15 [shape = 's32[1]{0}', space=sflag, size = 0x4, scoped, tag = 'scoped memory for tpu_custom_call.1']
    #allocation16 [shape = 'u8[512]{0}', space=vmem, size = 0x400, scoped, tag = 'input window, operand 12, single buffered']
    #allocation17 [shape = 'u8[512]{0}', space=vmem, size = 0x400, scoped, tag = 'input window, operand 14, single buffered']
    #allocation18 [shape = 's32[1]{0}', space=sflag, size = 0x4, scoped, tag = 'scoped memory for tpu_custom_call.1']
    #allocation19 [shape = 'u8[8192]{0}', space=vmem, size = 0x2000, scoped, tag = 'input window, operand 15, single buffered']
    #allocation20 [shape = 'u8[512]{0}', space=vmem, size = 0x400, scoped, tag = 'input window, operand 16, single buffered']
    #allocation21 [shape = 's32[1]{0}', space=sflag, size = 0x4, scoped, tag = 'scoped memory for tpu_custom_call.1']
    #allocation22 [shape = 'u8[8192]{0}', space=vmem, size = 0x2000, scoped, tag = 'input window, operand 21, single buffered']
    #allocation23 [shape = 'u8[8192]{0}', space=vmem, size = 0x2000, scoped, tag = 'output window, operand 0']
    %32 = vsyncpa [#allocation3], 0
    %33 = vsyncpa [#allocation6], 0
    %s34 = scalar_lea.sflag [#allocation6], 1
    %35 = vsyncpa %s34, 0
    %36 = vsyncpa [#allocation9], 0
    %37 = vsyncpa [#allocation12], 0
    %38 = vsyncpa [#allocation15], 0
    %39 = vsyncpa [#allocation18], 0
    %40 = vsyncpa [#allocation21], 0
    %41 = vsyncpa [#allocation4], 0
    %s42 = scalar_lea.sflag [#allocation4], 1
    %43 = vsyncpa %s42, 0
    loop: start=0, step=1, limit=4
    $region2: #{tpu_custom_call.1} parent=1 // loop_pre_header
      _
    $region3: #{tpu_custom_call.1} parent=1 // loop_header
      %s45 = sphi 0, %s49
      %p46 = scmp.ge.s32.totalorder %s45, 4
      %s55 = sphi 0, %s57
      %s58 = sphi 0, %s55
      %s59 = sphi 0, %s58
      %s75 = sphi 0, %s59
      %s81 = sphi 0, %s83
      %s84 = sphi 0, %s81
      %s85 = sphi 0, %s84
      %s101 = sphi 0, %s85
      %s105 = sphi 0, %s105
      %s107 = sphi 0, %s105
      %s108 = sphi 0, %s107
      %s122 = sphi 0, %s108
      %s128 = sphi 0, %s130
      %s131 = sphi 0, %s128
      %s132 = sphi 0, %s131
      %s148 = sphi 0, %s132
      %s154 = sphi 0, %s156
      %s157 = sphi 0, %s154
      %s158 = sphi 0, %s157
      %s174 = sphi 0, %s158
      %s178 = sphi 0, %s178
      %s180 = sphi 0, %s178
      %s181 = sphi 0, %s180
      %s195 = sphi 0, %s181
      %s199 = sphi 0, %s199
      %s201 = sphi 0, %s199
      %s202 = sphi 0, %s201
      %s216 = sphi 0, %s202
      %s220 = sphi 0, %s220
      %s222 = sphi 0, %s220
      %s223 = sphi 0, %s222
      %s237 = sphi 0, %s223
      %s241 = sphi 0, %s241
      %s243 = sphi 0, %s241
      %s244 = sphi 0, %s243
      %s258 = sphi 0, %s244
      %s262 = sphi 0, %s262
      %s264 = sphi 0, %s262
      %s265 = sphi 0, %s264
      %s279 = sphi 0, %s265
      %s283 = sphi 0, %s283
      %s285 = sphi 0, %s283
      %s286 = sphi 0, %s285
      %s300 = sphi 0, %s286
      %s304 = sphi 0, %s304
      %s306 = sphi 0, %s304
      %s307 = sphi 0, %s306
      %s321 = sphi 0, %s307
      %s325 = sphi 0, %s325
      %s327 = sphi 0, %s325
      %s328 = sphi 0, %s327
      %s342 = sphi 0, %s328
      %s346 = sphi 0, %s346
      %s348 = sphi 0, %s346
      %s349 = sphi 0, %s348
      %s363 = sphi 0, %s349
      %s367 = sphi 0, %s367
      %s369 = sphi 0, %s367
      %s370 = sphi 0, %s369
      %s384 = sphi 0, %s370
      %s388 = sphi 0, %s388
      %s390 = sphi 0, %s388
      %s391 = sphi 0, %s390
      %s405 = sphi 0, %s391
      %s409 = sphi 0, %s409
      %s411 = sphi 0, %s409
      %s412 = sphi 0, %s411
      %s426 = sphi 0, %s412
      %s430 = sphi 0, %s430
      %s432 = sphi 0, %s430
      %s433 = sphi 0, %s432
      %s447 = sphi 0, %s433
      %s451 = sphi 0, %s451
      %s453 = sphi 0, %s451
      %s454 = sphi 0, %s453
      %s468 = sphi 0, %s454
      %s472 = sphi 0, %s472
      %s474 = sphi 0, %s472
      %s475 = sphi 0, %s474
      %s489 = sphi 0, %s475
      %s493 = sphi 0, %s493
      %s495 = sphi 0, %s493
      %s496 = sphi 0, %s495
      %s510 = sphi 0, %s496
      %s514 = sphi 0, %s514
      %s516 = sphi 0, %s514
      %s517 = sphi 0, %s516
      %s531 = sphi 0, %s517
      %s535 = sphi 0, %s535
      %s537 = sphi 0, %s535
      %s538 = sphi 0, %s537
      %s552 = sphi 0, %s538
      %s556 = sphi 0, %s556
      %s558 = sphi 0, %s556
      %s559 = sphi 0, %s558
      %s573 = sphi 0, %s559
      %s577 = sphi 0, %s577
      %s579 = sphi 0, %s577
      %s580 = sphi 0, %s579
      %s594 = sphi 0, %s580
      %s598 = sphi 0, %s598
      %s600 = sphi 0, %s598
      %s601 = sphi 0, %s600
      %s615 = sphi 0, %s601
      %s619 = sphi 0, %s619
      %s621 = sphi 0, %s619
      %s622 = sphi 0, %s621
      %s636 = sphi 0, %s622
      %s642 = sphi 0, %s644
      %s645 = sphi 0, %s642
      %s646 = sphi 0, %s645
      %s662 = sphi 0, %s646
    $region4: #{tpu_custom_call.1} parent=1 // loop_header_branch
      %48 = sbr.rel (%p46) target = $region8
    $region5: #{tpu_custom_call.1} parent=1 // loop_body
      %s50 = ssub.s32 %s45, 1
      %s51 = ssub.s32 %s45, 2
      %s52 = sadd.s32 %s45, 1
      %s53 = ssub.s32 %s45, %s52
      %p54 = scmp.eq.s32.totalorder %s53, 0
      %s56 = sadd.s32 %s55, 1
      %s57 = scalar_select %p54, %s55, %s56
      %p60 = pneg %p54
      %p61 = scmp.eq.s32.totalorder %s45, 1
      %p62 = por %p60, %p61
      %p63 = scmp.ne.s32.totalorder %s55, %s58
      %p64 = scmp.eq.s32.totalorder %s45, 0
      %p65 = por %p63, %p64
      %p66 = scmp.ne.s32.totalorder %s55, %s58
      %p67 = scmp.eq.s32.totalorder %s50, 1
      %p68 = por %p66, %p67
      %p69 = scmp.ne.s32.totalorder %s58, %s59
      %p70 = scmp.eq.s32.totalorder %s50, 0
      %p71 = por %p69, %p70
      %p72 = scmp.ne.s32.totalorder %s58, %s59
      %p73 = scmp.eq.s32.totalorder %s51, 1
      %p74 = por %p72, %p73
      %p76 = scmp.ne.s32.totalorder %s59, %s75
      %p77 = scmp.eq.s32.totalorder %s51, 0
      %p78 = por %p76, %p77
      %s79 = ssub.s32 %s45, %s52
      %p80 = scmp.eq.s32.totalorder %s79, 0
      %s82 = sadd.s32 %s81, 1
      %s83 = scalar_select %p80, %s81, %s82
      %p86 = pneg %p80
      %p87 = scmp.eq.s32.totalorder %s45, 1
      %p88 = por %p86, %p87
      %p89 = scmp.ne.s32.totalorder %s81, %s84
      %p90 = scmp.eq.s32.totalorder %s45, 0
      %p91 = por %p89, %p90
      %p92 = scmp.ne.s32.totalorder %s81, %s84
      %p93 = scmp.eq.s32.totalorder %s50, 1
      %p94 = por %p92, %p93
      %p95 = scmp.ne.s32.totalorder %s84, %s85
      %p96 = scmp.eq.s32.totalorder %s50, 0
      %p97 = por %p95, %p96
      %p98 = scmp.ne.s32.totalorder %s84, %s85
      %p99 = scmp.eq.s32.totalorder %s51, 1
      %p100 = por %p98, %p99
      %p102 = scmp.ne.s32.totalorder %s85, %s101
      %p103 = scmp.eq.s32.totalorder %s51, 0
      %p104 = por %p102, %p103
      %s106 = sadd.s32 %s105, 1
      %p109 = scmp.eq.s32.totalorder %s45, 1
      %p110 = scmp.ne.s32.totalorder %s105, %s107
      %p111 = scmp.eq.s32.totalorder %s45, 0
      %p112 = por %p110, %p111
      %p113 = scmp.ne.s32.totalorder %s105, %s107
      %p114 = scmp.eq.s32.totalorder %s50, 1
      %p115 = por %p113, %p114
      %p116 = scmp.ne.s32.totalorder %s107, %s108
      %p117 = scmp.eq.s32.totalorder %s50, 0
      %p118 = por %p116, %p117
      %p119 = scmp.ne.s32.totalorder %s107, %s108
      %p120 = scmp.eq.s32.totalorder %s51, 1
      %p121 = por %p119, %p120
      %p123 = scmp.ne.s32.totalorder %s108, %s122
      %p124 = scmp.eq.s32.totalorder %s51, 0
      %p125 = por %p123, %p124
      %s126 = ssub.s32 %s45, %s52
      %p127 = scmp.eq.s32.totalorder %s126, 0
      %s129 = sadd.s32 %s128, 1
      %s130 = scalar_select %p127, %s128, %s129
      %p133 = pneg %p127
      %p134 = scmp.eq.s32.totalorder %s45, 1
      %p135 = por %p133, %p134
      %p136 = scmp.ne.s32.totalorder %s128, %s131
      %p137 = scmp.eq.s32.totalorder %s45, 0
      %p138 = por %p136, %p137
      %p139 = scmp.ne.s32.totalorder %s128, %s131
      %p140 = scmp.eq.s32.totalorder %s50, 1
      %p141 = por %p139, %p140
      %p142 = scmp.ne.s32.totalorder %s131, %s132
      %p143 = scmp.eq.s32.totalorder %s50, 0
      %p144 = por %p142, %p143
      %p145 = scmp.ne.s32.totalorder %s131, %s132
      %p146 = scmp.eq.s32.totalorder %s51, 1
      %p147 = por %p145, %p146
      %p149 = scmp.ne.s32.totalorder %s132, %s148
      %p150 = scmp.eq.s32.totalorder %s51, 0
      %p151 = por %p149, %p150
      %s152 = ssub.s32 %s45, %s52
      %p153 = scmp.eq.s32.totalorder %s152, 0
      %s155 = sadd.s32 %s154, 1
      %s156 = scalar_select %p153, %s154, %s155
      %p159 = pneg %p153
      %p160 = scmp.eq.s32.totalorder %s45, 1
      %p161 = por %p159, %p160
      %p162 = scmp.ne.s32.totalorder %s154, %s157
      %p163 = scmp.eq.s32.totalorder %s45, 0
      %p164 = por %p162, %p163
      %p165 = scmp.ne.s32.totalorder %s154, %s157
      %p166 = scmp.eq.s32.totalorder %s50, 1
      %p167 = por %p165, %p166
      %p168 = scmp.ne.s32.totalorder %s157, %s158
      %p169 = scmp.eq.s32.totalorder %s50, 0
      %p170 = por %p168, %p169
      %p171 = scmp.ne.s32.totalorder %s157, %s158
      %p172 = scmp.eq.s32.totalorder %s51, 1
      %p173 = por %p171, %p172
      %p175 = scmp.ne.s32.totalorder %s158, %s174
      %p176 = scmp.eq.s32.totalorder %s51, 0
      %p177 = por %p175, %p176
      %s179 = sadd.s32 %s178, 1
      %p182 = scmp.eq.s32.totalorder %s45, 1
      %p183 = scmp.ne.s32.totalorder %s178, %s180
      %p184 = scmp.eq.s32.totalorder %s45, 0
      %p185 = por %p183, %p184
      %p186 = scmp.ne.s32.totalorder %s178, %s180
      %p187 = scmp.eq.s32.totalorder %s50, 1
      %p188 = por %p186, %p187
      %p189 = scmp.ne.s32.totalorder %s180, %s181
      %p190 = scmp.eq.s32.totalorder %s50, 0
      %p191 = por %p189, %p190
      %p192 = scmp.ne.s32.totalorder %s180, %s181
      %p193 = scmp.eq.s32.totalorder %s51, 1
      %p194 = por %p192, %p193
      %p196 = scmp.ne.s32.totalorder %s181, %s195
      %p197 = scmp.eq.s32.totalorder %s51, 0
      %p198 = por %p196, %p197
      %s200 = sadd.s32 %s199, 1
      %p203 = scmp.eq.s32.totalorder %s45, 1
      %p204 = scmp.ne.s32.totalorder %s199, %s201
      %p205 = scmp.eq.s32.totalorder %s45, 0
      %p206 = por %p204, %p205
      %p207 = scmp.ne.s32.totalorder %s199, %s201
      %p208 = scmp.eq.s32.totalorder %s50, 1
      %p209 = por %p207, %p208
      %p210 = scmp.ne.s32.totalorder %s201, %s202
      %p211 = scmp.eq.s32.totalorder %s50, 0
      %p212 = por %p210, %p211
      %p213 = scmp.ne.s32.totalorder %s201, %s202
      %p214 = scmp.eq.s32.totalorder %s51, 1
      %p215 = por %p213, %p214
      %p217 = scmp.ne.s32.totalorder %s202, %s216
      %p218 = scmp.eq.s32.totalorder %s51, 0
      %p219 = por %p217, %p218
      %s221 = sadd.s32 %s220, 1
      %p224 = scmp.eq.s32.totalorder %s45, 1
      %p225 = scmp.ne.s32.totalorder %s220, %s222
      %p226 = scmp.eq.s32.totalorder %s45, 0
      %p227 = por %p225, %p226
      %p228 = scmp.ne.s32.totalorder %s220, %s222
      %p229 = scmp.eq.s32.totalorder %s50, 1
      %p230 = por %p228, %p229
      %p231 = scmp.ne.s32.totalorder %s222, %s223
      %p232 = scmp.eq.s32.totalorder %s50, 0
      %p233 = por %p231, %p232
      %p234 = scmp.ne.s32.totalorder %s222, %s223
      %p235 = scmp.eq.s32.totalorder %s51, 1
      %p236 = por %p234, %p235
      %p238 = scmp.ne.s32.totalorder %s223, %s237
      %p239 = scmp.eq.s32.totalorder %s51, 0
      %p240 = por %p238, %p239
      %s242 = sadd.s32 %s241, 1
      %p245 = scmp.eq.s32.totalorder %s45, 1
      %p246 = scmp.ne.s32.totalorder %s241, %s243
      %p247 = scmp.eq.s32.totalorder %s45, 0
      %p248 = por %p246, %p247
      %p249 = scmp.ne.s32.totalorder %s241, %s243
      %p250 = scmp.eq.s32.totalorder %s50, 1
      %p251 = por %p249, %p250
      %p252 = scmp.ne.s32.totalorder %s243, %s244
      %p253 = scmp.eq.s32.totalorder %s50, 0
      %p254 = por %p252, %p253
      %p255 = scmp.ne.s32.totalorder %s243, %s244
      %p256 = scmp.eq.s32.totalorder %s51, 1
      %p257 = por %p255, %p256
      %p259 = scmp.ne.s32.totalorder %s244, %s258
      %p260 = scmp.eq.s32.totalorder %s51, 0
      %p261 = por %p259, %p260
      %s263 = sadd.s32 %s262, 1
      %p266 = scmp.eq.s32.totalorder %s45, 1
      %p267 = scmp.ne.s32.totalorder %s262, %s264
      %p268 = scmp.eq.s32.totalorder %s45, 0
      %p269 = por %p267, %p268
      %p270 = scmp.ne.s32.totalorder %s262, %s264
      %p271 = scmp.eq.s32.totalorder %s50, 1
      %p272 = por %p270, %p271
      %p273 = scmp.ne.s32.totalorder %s264, %s265
      %p274 = scmp.eq.s32.totalorder %s50, 0
      %p275 = por %p273, %p274
      %p276 = scmp.ne.s32.totalorder %s264, %s265
      %p277 = scmp.eq.s32.totalorder %s51, 1
      %p278 = por %p276, %p277
      %p280 = scmp.ne.s32.totalorder %s265, %s279
      %p281 = scmp.eq.s32.totalorder %s51, 0
      %p282 = por %p280, %p281
      %s284 = sadd.s32 %s283, 1
      %p287 = scmp.eq.s32.totalorder %s45, 1
      %p288 = scmp.ne.s32.totalorder %s283, %s285
      %p289 = scmp.eq.s32.totalorder %s45, 0
      %p290 = por %p288, %p289
      %p291 = scmp.ne.s32.totalorder %s283, %s285
      %p292 = scmp.eq.s32.totalorder %s50, 1
      %p293 = por %p291, %p292
      %p294 = scmp.ne.s32.totalorder %s285, %s286
      %p295 = scmp.eq.s32.totalorder %s50, 0
      %p296 = por %p294, %p295
      %p297 = scmp.ne.s32.totalorder %s285, %s286
      %p298 = scmp.eq.s32.totalorder %s51, 1
      %p299 = por %p297, %p298
      %p301 = scmp.ne.s32.totalorder %s286, %s300
      %p302 = scmp.eq.s32.totalorder %s51, 0
      %p303 = por %p301, %p302
      %s305 = sadd.s32 %s304, 1
      %p308 = scmp.eq.s32.totalorder %s45, 1
      %p309 = scmp.ne.s32.totalorder %s304, %s306
      %p310 = scmp.eq.s32.totalorder %s45, 0
      %p311 = por %p309, %p310
      %p312 = scmp.ne.s32.totalorder %s304, %s306
      %p313 = scmp.eq.s32.totalorder %s50, 1
      %p314 = por %p312, %p313
      %p315 = scmp.ne.s32.totalorder %s306, %s307
      %p316 = scmp.eq.s32.totalorder %s50, 0
      %p317 = por %p315, %p316
      %p318 = scmp.ne.s32.totalorder %s306, %s307
      %p319 = scmp.eq.s32.totalorder %s51, 1
      %p320 = por %p318, %p319
      %p322 = scmp.ne.s32.totalorder %s307, %s321
      %p323 = scmp.eq.s32.totalorder %s51, 0
      %p324 = por %p322, %p323
      %s326 = sadd.s32 %s325, 1
      %p329 = scmp.eq.s32.totalorder %s45, 1
      %p330 = scmp.ne.s32.totalorder %s325, %s327
      %p331 = scmp.eq.s32.totalorder %s45, 0
      %p332 = por %p330, %p331
      %p333 = scmp.ne.s32.totalorder %s325, %s327
      %p334 = scmp.eq.s32.totalorder %s50, 1
      %p335 = por %p333, %p334
      %p336 = scmp.ne.s32.totalorder %s327, %s328
      %p337 = scmp.eq.s32.totalorder %s50, 0
      %p338 = por %p336, %p337
      %p339 = scmp.ne.s32.totalorder %s327, %s328
      %p340 = scmp.eq.s32.totalorder %s51, 1
      %p341 = por %p339, %p340
      %p343 = scmp.ne.s32.totalorder %s328, %s342
      %p344 = scmp.eq.s32.totalorder %s51, 0
      %p345 = por %p343, %p344
      %s347 = sadd.s32 %s346, 1
      %p350 = scmp.eq.s32.totalorder %s45, 1
      %p351 = scmp.ne.s32.totalorder %s346, %s348
      %p352 = scmp.eq.s32.totalorder %s45, 0
      %p353 = por %p351, %p352
      %p354 = scmp.ne.s32.totalorder %s346, %s348
      %p355 = scmp.eq.s32.totalorder %s50, 1
      %p356 = por %p354, %p355
      %p357 = scmp.ne.s32.totalorder %s348, %s349
      %p358 = scmp.eq.s32.totalorder %s50, 0
      %p359 = por %p357, %p358
      %p360 = scmp.ne.s32.totalorder %s348, %s349
      %p361 = scmp.eq.s32.totalorder %s51, 1
      %p362 = por %p360, %p361
      %p364 = scmp.ne.s32.totalorder %s349, %s363
      %p365 = scmp.eq.s32.totalorder %s51, 0
      %p366 = por %p364, %p365
      %s368 = sadd.s32 %s367, 1
      %p371 = scmp.eq.s32.totalorder %s45, 1
      %p372 = scmp.ne.s32.totalorder %s367, %s369
      %p373 = scmp.eq.s32.totalorder %s45, 0
      %p374 = por %p372, %p373
      %p375 = scmp.ne.s32.totalorder %s367, %s369
      %p376 = scmp.eq.s32.totalorder %s50, 1
      %p377 = por %p375, %p376
      %p378 = scmp.ne.s32.totalorder %s369, %s370
      %p379 = scmp.eq.s32.totalorder %s50, 0
      %p380 = por %p378, %p379
      %p381 = scmp.ne.s32.totalorder %s369, %s370
      %p382 = scmp.eq.s32.totalorder %s51, 1
      %p383 = por %p381, %p382
      %p385 = scmp.ne.s32.totalorder %s370, %s384
      %p386 = scmp.eq.s32.totalorder %s51, 0
      %p387 = por %p385, %p386
      %s389 = sadd.s32 %s388, 1
      %p392 = scmp.eq.s32.totalorder %s45, 1
      %p393 = scmp.ne.s32.totalorder %s388, %s390
      %p394 = scmp.eq.s32.totalorder %s45, 0
      %p395 = por %p393, %p394
      %p396 = scmp.ne.s32.totalorder %s388, %s390
      %p397 = scmp.eq.s32.totalorder %s50, 1
      %p398 = por %p396, %p397
      %p399 = scmp.ne.s32.totalorder %s390, %s391
      %p400 = scmp.eq.s32.totalorder %s50, 0
      %p401 = por %p399, %p400
      %p402 = scmp.ne.s32.totalorder %s390, %s391
      %p403 = scmp.eq.s32.totalorder %s51, 1
      %p404 = por %p402, %p403
      %p406 = scmp.ne.s32.totalorder %s391, %s405
      %p407 = scmp.eq.s32.totalorder %s51, 0
      %p408 = por %p406, %p407
      %s410 = sadd.s32 %s409, 1
      %p413 = scmp.eq.s32.totalorder %s45, 1
      %p414 = scmp.ne.s32.totalorder %s409, %s411
      %p415 = scmp.eq.s32.totalorder %s45, 0
      %p416 = por %p414, %p415
      %p417 = scmp.ne.s32.totalorder %s409, %s411
      %p418 = scmp.eq.s32.totalorder %s50, 1
      %p419 = por %p417, %p418
      %p420 = scmp.ne.s32.totalorder %s411, %s412
      %p421 = scmp.eq.s32.totalorder %s50, 0
      %p422 = por %p420, %p421
      %p423 = scmp.ne.s32.totalorder %s411, %s412
      %p424 = scmp.eq.s32.totalorder %s51, 1
      %p425 = por %p423, %p424
      %p427 = scmp.ne.s32.totalorder %s412, %s426
      %p428 = scmp.eq.s32.totalorder %s51, 0
      %p429 = por %p427, %p428
      %s431 = sadd.s32 %s430, 1
      %p434 = scmp.eq.s32.totalorder %s45, 1
      %p435 = scmp.ne.s32.totalorder %s430, %s432
      %p436 = scmp.eq.s32.totalorder %s45, 0
      %p437 = por %p435, %p436
      %p438 = scmp.ne.s32.totalorder %s430, %s432
      %p439 = scmp.eq.s32.totalorder %s50, 1
      %p440 = por %p438, %p439
      %p441 = scmp.ne.s32.totalorder %s432, %s433
      %p442 = scmp.eq.s32.totalorder %s50, 0
      %p443 = por %p441, %p442
      %p444 = scmp.ne.s32.totalorder %s432, %s433
      %p445 = scmp.eq.s32.totalorder %s51, 1
      %p446 = por %p444, %p445
      %p448 = scmp.ne.s32.totalorder %s433, %s447
      %p449 = scmp.eq.s32.totalorder %s51, 0
      %p450 = por %p448, %p449
      %s452 = sadd.s32 %s451, 1
      %p455 = scmp.eq.s32.totalorder %s45, 1
      %p456 = scmp.ne.s32.totalorder %s451, %s453
      %p457 = scmp.eq.s32.totalorder %s45, 0
      %p458 = por %p456, %p457
      %p459 = scmp.ne.s32.totalorder %s451, %s453
      %p460 = scmp.eq.s32.totalorder %s50, 1
      %p461 = por %p459, %p460
      %p462 = scmp.ne.s32.totalorder %s453, %s454
      %p463 = scmp.eq.s32.totalorder %s50, 0
      %p464 = por %p462, %p463
      %p465 = scmp.ne.s32.totalorder %s453, %s454
      %p466 = scmp.eq.s32.totalorder %s51, 1
      %p467 = por %p465, %p466
      %p469 = scmp.ne.s32.totalorder %s454, %s468
      %p470 = scmp.eq.s32.totalorder %s51, 0
      %p471 = por %p469, %p470
      %s473 = sadd.s32 %s472, 1
      %p476 = scmp.eq.s32.totalorder %s45, 1
      %p477 = scmp.ne.s32.totalorder %s472, %s474
      %p478 = scmp.eq.s32.totalorder %s45, 0
      %p479 = por %p477, %p478
      %p480 = scmp.ne.s32.totalorder %s472, %s474
      %p481 = scmp.eq.s32.totalorder %s50, 1
      %p482 = por %p480, %p481
      %p483 = scmp.ne.s32.totalorder %s474, %s475
      %p484 = scmp.eq.s32.totalorder %s50, 0
      %p485 = por %p483, %p484
      %p486 = scmp.ne.s32.totalorder %s474, %s475
      %p487 = scmp.eq.s32.totalorder %s51, 1
      %p488 = por %p486, %p487
      %p490 = scmp.ne.s32.totalorder %s475, %s489
      %p491 = scmp.eq.s32.totalorder %s51, 0
      %p492 = por %p490, %p491
      %s494 = sadd.s32 %s493, 1
      %p497 = scmp.eq.s32.totalorder %s45, 1
      %p498 = scmp.ne.s32.totalorder %s493, %s495
      %p499 = scmp.eq.s32.totalorder %s45, 0
      %p500 = por %p498, %p499
      %p501 = scmp.ne.s32.totalorder %s493, %s495
      %p502 = scmp.eq.s32.totalorder %s50, 1
      %p503 = por %p501, %p502
      %p504 = scmp.ne.s32.totalorder %s495, %s496
      %p505 = scmp.eq.s32.totalorder %s50, 0
      %p506 = por %p504, %p505
      %p507 = scmp.ne.s32.totalorder %s495, %s496
      %p508 = scmp.eq.s32.totalorder %s51, 1
      %p509 = por %p507, %p508
      %p511 = scmp.ne.s32.totalorder %s496, %s510
      %p512 = scmp.eq.s32.totalorder %s51, 0
      %p513 = por %p511, %p512
      %s515 = sadd.s32 %s514, 1
      %p518 = scmp.eq.s32.totalorder %s45, 1
      %p519 = scmp.ne.s32.totalorder %s514, %s516
      %p520 = scmp.eq.s32.totalorder %s45, 0
      %p521 = por %p519, %p520
      %p522 = scmp.ne.s32.totalorder %s514, %s516
      %p523 = scmp.eq.s32.totalorder %s50, 1
      %p524 = por %p522, %p523
      %p525 = scmp.ne.s32.totalorder %s516, %s517
      %p526 = scmp.eq.s32.totalorder %s50, 0
      %p527 = por %p525, %p526
      %p528 = scmp.ne.s32.totalorder %s516, %s517
      %p529 = scmp.eq.s32.totalorder %s51, 1
      %p530 = por %p528, %p529
      %p532 = scmp.ne.s32.totalorder %s517, %s531
      %p533 = scmp.eq.s32.totalorder %s51, 0
      %p534 = por %p532, %p533
      %s536 = sadd.s32 %s535, 1
      %p539 = scmp.eq.s32.totalorder %s45, 1
      %p540 = scmp.ne.s32.totalorder %s535, %s537
      %p541 = scmp.eq.s32.totalorder %s45, 0
      %p542 = por %p540, %p541
      %p543 = scmp.ne.s32.totalorder %s535, %s537
      %p544 = scmp.eq.s32.totalorder %s50, 1
      %p545 = por %p543, %p544
      %p546 = scmp.ne.s32.totalorder %s537, %s538
      %p547 = scmp.eq.s32.totalorder %s50, 0
      %p548 = por %p546, %p547
      %p549 = scmp.ne.s32.totalorder %s537, %s538
      %p550 = scmp.eq.s32.totalorder %s51, 1
      %p551 = por %p549, %p550
      %p553 = scmp.ne.s32.totalorder %s538, %s552
      %p554 = scmp.eq.s32.totalorder %s51, 0
      %p555 = por %p553, %p554
      %s557 = sadd.s32 %s556, 1
      %p560 = scmp.eq.s32.totalorder %s45, 1
      %p561 = scmp.ne.s32.totalorder %s556, %s558
      %p562 = scmp.eq.s32.totalorder %s45, 0
      %p563 = por %p561, %p562
      %p564 = scmp.ne.s32.totalorder %s556, %s558
      %p565 = scmp.eq.s32.totalorder %s50, 1
      %p566 = por %p564, %p565
      %p567 = scmp.ne.s32.totalorder %s558, %s559
      %p568 = scmp.eq.s32.totalorder %s50, 0
      %p569 = por %p567, %p568
      %p570 = scmp.ne.s32.totalorder %s558, %s559
      %p571 = scmp.eq.s32.totalorder %s51, 1
      %p572 = por %p570, %p571
      %p574 = scmp.ne.s32.totalorder %s559, %s573
      %p575 = scmp.eq.s32.totalorder %s51, 0
      %p576 = por %p574, %p575
      %s578 = sadd.s32 %s577, 1
      %p581 = scmp.eq.s32.totalorder %s45, 1
      %p582 = scmp.ne.s32.totalorder %s577, %s579
      %p583 = scmp.eq.s32.totalorder %s45, 0
      %p584 = por %p582, %p583
      %p585 = scmp.ne.s32.totalorder %s577, %s579
      %p586 = scmp.eq.s32.totalorder %s50, 1
      %p587 = por %p585, %p586
      %p588 = scmp.ne.s32.totalorder %s579, %s580
      %p589 = scmp.eq.s32.totalorder %s50, 0
      %p590 = por %p588, %p589
      %p591 = scmp.ne.s32.totalorder %s579, %s580
      %p592 = scmp.eq.s32.totalorder %s51, 1
      %p593 = por %p591, %p592
      %p595 = scmp.ne.s32.totalorder %s580, %s594
      %p596 = scmp.eq.s32.totalorder %s51, 0
      %p597 = por %p595, %p596
      %s599 = sadd.s32 %s598, 1
      %p602 = scmp.eq.s32.totalorder %s45, 1
      %p603 = scmp.ne.s32.totalorder %s598, %s600
      %p604 = scmp.eq.s32.totalorder %s45, 0
      %p605 = por %p603, %p604
      %p606 = scmp.ne.s32.totalorder %s598, %s600
      %p607 = scmp.eq.s32.totalorder %s50, 1
      %p608 = por %p606, %p607
      %p609 = scmp.ne.s32.totalorder %s600, %s601
      %p610 = scmp.eq.s32.totalorder %s50, 0
      %p611 = por %p609, %p610
      %p612 = scmp.ne.s32.totalorder %s600, %s601
      %p613 = scmp.eq.s32.totalorder %s51, 1
      %p614 = por %p612, %p613
      %p616 = scmp.ne.s32.totalorder %s601, %s615
      %p617 = scmp.eq.s32.totalorder %s51, 0
      %p618 = por %p616, %p617
      %s620 = sadd.s32 %s619, 1
      %p623 = scmp.eq.s32.totalorder %s45, 1
      %p624 = scmp.ne.s32.totalorder %s619, %s621
      %p625 = scmp.eq.s32.totalorder %s45, 0
      %p626 = por %p624, %p625
      %p627 = scmp.ne.s32.totalorder %s619, %s621
      %p628 = scmp.eq.s32.totalorder %s50, 1
      %p629 = por %p627, %p628
      %p630 = scmp.ne.s32.totalorder %s621, %s622
      %p631 = scmp.eq.s32.totalorder %s50, 0
      %p632 = por %p630, %p631
      %p633 = scmp.ne.s32.totalorder %s621, %s622
      %p634 = scmp.eq.s32.totalorder %s51, 1
      %p635 = por %p633, %p634
      %p637 = scmp.ne.s32.totalorder %s622, %s636
      %p638 = scmp.eq.s32.totalorder %s51, 0
      %p639 = por %p637, %p638
      %s640 = ssub.s32 %s45, %s52
      %p641 = scmp.eq.s32.totalorder %s640, 0
      %s643 = sadd.s32 %s642, 1
      %s644 = scalar_select %p641, %s642, %s643
      %p647 = pneg %p641
      %p648 = scmp.eq.s32.totalorder %s45, 1
      %p649 = por %p647, %p648
      %p650 = scmp.ne.s32.totalorder %s642, %s645
      %p651 = scmp.eq.s32.totalorder %s45, 0
      %p652 = por %p650, %p651
      %p653 = scmp.ne.s32.totalorder %s642, %s645
      %p654 = scmp.eq.s32.totalorder %s50, 1
      %p655 = por %p653, %p654
      %p656 = scmp.ne.s32.totalorder %s645, %s646
      %p657 = scmp.eq.s32.totalorder %s50, 0
      %p658 = por %p656, %p657
      %p659 = scmp.ne.s32.totalorder %s645, %s646
      %p660 = scmp.eq.s32.totalorder %s51, 1
      %p661 = por %p659, %p660
      %p663 = scmp.ne.s32.totalorder %s646, %s662
      %p664 = scmp.eq.s32.totalorder %s51, 0
      %p665 = por %p663, %p664
      %p666 = scmp.le.s32.totalorder 1, %s45
      %p667 = scmp.lt.s32.totalorder %s45, 3
      %p668 = pnand %p666, %p667
      %p669 = pneg %p668
      // Predicated region
      $region9: #{tpu_custom_call.1} parent=5 // pred_check
        _
      $region10: #{tpu_custom_call.1} parent=5 // pred_check_branch
        %671 = sbr.rel (%p668) target = $region12
      $region11: #{tpu_custom_call.1} parent=5 // pred_region
        %s672 = ssub.s32 %s45, 1
        // Predicated region
        $region13: #{tpu_custom_call.1} parent=11 // pred_check
          %p673 = pneg %p118
        $region14: #{tpu_custom_call.1} parent=11 // pred_check_branch
          %675 = sbr.rel (%p673) target = $region16
        $region15: #{tpu_custom_call.1} parent=11 // pred_region
          %s677 = ssub.s32 128, 128
          %678 = vsyncadd [#allocation3], %s677
          %s680 = sshll.u32 [#allocation2], 4
          %s681 = int_to_ptr.vmem [resolvable:$true] %s680
          %683 = dma.hbm_to_vmem [thread:$0]  %s2, 128, %s681, [#allocation3]
        $region16: #{tpu_custom_call.1} parent=11 // pred_fallthru
          _
        // Predicated region
        $region17: #{tpu_custom_call.1} parent=11 // pred_check
          %p684 = pneg %p191
        $region18: #{tpu_custom_call.1} parent=11 // pred_check_branch
          %686 = sbr.rel (%p684) target = $region20
        $region19: #{tpu_custom_call.1} parent=11 // pred_region
          %s688 = ssub.s32 16, 16
          %689 = vsyncadd [#allocation9], %s688
          %s691 = sshll.u32 [#allocation8], 4
          %s692 = int_to_ptr.vmem [resolvable:$true] %s691
          %694 = dma.hbm_to_vmem [thread:$0]  %s5, 16, %s692, [#allocation9]
        $region20: #{tpu_custom_call.1} parent=11 // pred_fallthru
          _
        // Predicated region
        $region21: #{tpu_custom_call.1} parent=11 // pred_check
          %p695 = pneg %p212
        $region22: #{tpu_custom_call.1} parent=11 // pred_check_branch
          %697 = sbr.rel (%p695) target = $region24
        $region23: #{tpu_custom_call.1} parent=11 // pred_region
          %s699 = ssub.s32 16, 16
          %700 = vsyncadd [#allocation9], %s699
          %s702 = sshll.u32 [#allocation10], 4
          %s703 = int_to_ptr.vmem [resolvable:$true] %s702
          %705 = dma.hbm_to_vmem [thread:$0]  %s6, 16, %s703, [#allocation9]
        $region24: #{tpu_custom_call.1} parent=11 // pred_fallthru
          _
        // Predicated region
        $region25: #{tpu_custom_call.1} parent=11 // pred_check
          %p706 = pneg %p233
        $region26: #{tpu_custom_call.1} parent=11 // pred_check_branch
          %708 = sbr.rel (%p706) target = $region28
        $region27: #{tpu_custom_call.1} parent=11 // pred_region
          _
        $region28: #{tpu_custom_call.1} parent=11 // pred_fallthru
          _
        // Predicated region
        $region29: #{tpu_custom_call.1} parent=11 // pred_check
          %p709 = pneg %p254
        $region30: #{tpu_custom_call.1} parent=11 // pred_check_branch
          %711 = sbr.rel (%p709) target = $region32
        $region31: #{tpu_custom_call.1} parent=11 // pred_region
          %s713 = ssub.s32 16, 16
          %714 = vsyncadd [#allocation12], %s713
          %s716 = sshll.u32 [#allocation11], 4
          %s717 = int_to_ptr.vmem [resolvable:$true] %s716
          %719 = dma.hbm_to_vmem [thread:$0]  %s8, 16, %s717, [#allocation12]
        $region32: #{tpu_custom_call.1} parent=11 // pred_fallthru
          _
        // Predicated region
        $region33: #{tpu_custom_call.1} parent=11 // pred_check
          %p720 = pneg %p275
        $region34: #{tpu_custom_call.1} parent=11 // pred_check_branch
          %722 = sbr.rel (%p720) target = $region36
        $region35: #{tpu_custom_call.1} parent=11 // pred_region
          _
        $region36: #{tpu_custom_call.1} parent=11 // pred_fallthru
          _
        // Predicated region
        $region37: #{tpu_custom_call.1} parent=11 // pred_check
          %p723 = pneg %p296
        $region38: #{tpu_custom_call.1} parent=11 // pred_check_branch
          %725 = sbr.rel (%p723) target = $region40
        $region39: #{tpu_custom_call.1} parent=11 // pred_region
          %s727 = ssub.s32 16, 16
          %728 = vsyncadd [#allocation12], %s727
          %s730 = sshll.u32 [#allocation13], 4
          %s731 = int_to_ptr.vmem [resolvable:$true] %s730
          %733 = dma.hbm_to_vmem [thread:$0]  %s10, 16, %s731, [#allocation12]
        $region40: #{tpu_custom_call.1} parent=11 // pred_fallthru
          _
        // Predicated region
        $region41: #{tpu_custom_call.1} parent=11 // pred_check
          %p734 = pneg %p317
        $region42: #{tpu_custom_call.1} parent=11 // pred_check_branch
          %736 = sbr.rel (%p734) target = $region44
        $region43: #{tpu_custom_call.1} parent=11 // pred_region
          %s738 = ssub.s32 16, 16
          %739 = vsyncadd [#allocation15], %s738
          %s741 = sshll.u32 [#allocation14], 4
          %s742 = int_to_ptr.vmem [resolvable:$true] %s741
          %744 = dma.hbm_to_vmem [thread:$0]  %s11, 16, %s742, [#allocation15]
        $region44: #{tpu_custom_call.1} parent=11 // pred_fallthru
          _
        // Predicated region
        $region45: #{tpu_custom_call.1} parent=11 // pred_check
          %p745 = pneg %p338
        $region46: #{tpu_custom_call.1} parent=11 // pred_check_branch
          %747 = sbr.rel (%p745) target = $region48
        $region47: #{tpu_custom_call.1} parent=11 // pred_region
          %s749 = ssub.s32 16, 16
          %750 = vsyncadd [#allocation15], %s749
          %s752 = sshll.u32 [#allocation16], 4
          %s753 = int_to_ptr.vmem [resolvable:$true] %s752
          %755 = dma.hbm_to_vmem [thread:$0]  %s12, 16, %s753, [#allocation15]
        $region48: #{tpu_custom_call.1} parent=11 // pred_fallthru
          _
        // Predicated region
        $region49: #{tpu_custom_call.1} parent=11 // pred_check
          %p756 = pneg %p359
        $region50: #{tpu_custom_call.1} parent=11 // pred_check_branch
          %758 = sbr.rel (%p756) target = $region52
        $region51: #{tpu_custom_call.1} parent=11 // pred_region
          _
        $region52: #{tpu_custom_call.1} parent=11 // pred_fallthru
          _
        // Predicated region
        $region53: #{tpu_custom_call.1} parent=11 // pred_check
          %p759 = pneg %p380
        $region54: #{tpu_custom_call.1} parent=11 // pred_check_branch
          %761 = sbr.rel (%p759) target = $region56
        $region55: #{tpu_custom_call.1} parent=11 // pred_region
          %s763 = ssub.s32 16, 16
          %764 = vsyncadd [#allocation18], %s763
          %s766 = sshll.u32 [#allocation17], 4
          %s767 = int_to_ptr.vmem [resolvable:$true] %s766
          %769 = dma.hbm_to_vmem [thread:$0]  %s14, 16, %s767, [#allocation18]
        $region56: #{tpu_custom_call.1} parent=11 // pred_fallthru
          _
        // Predicated region
        $region57: #{tpu_custom_call.1} parent=11 // pred_check
          %p770 = pneg %p401
        $region58: #{tpu_custom_call.1} parent=11 // pred_check_branch
          %772 = sbr.rel (%p770) target = $region60
        $region59: #{tpu_custom_call.1} parent=11 // pred_region
          %s774 = ssub.s32 256, 256
          %775 = vsyncadd [#allocation18], %s774
          %s776 = sshll.u32 [#allocation19], 4
          %s777 = int_to_ptr.vmem [resolvable:$true] %s776
          %782 = dma.hbm_to_vmem [thread:$0]  %s15, 256, %s777, [#allocation18], 64, 64, 4
        $region60: #{tpu_custom_call.1} parent=11 // pred_fallthru
          _
        // Predicated region
        $region61: #{tpu_custom_call.1} parent=11 // pred_check
          %p783 = pneg %p422
        $region62: #{tpu_custom_call.1} parent=11 // pred_check_branch
          %785 = sbr.rel (%p783) target = $region64
        $region63: #{tpu_custom_call.1} parent=11 // pred_region
          %s787 = ssub.s32 16, 16
          %788 = vsyncadd [#allocation21], %s787
          %s790 = sshll.u32 [#allocation20], 4
          %s791 = int_to_ptr.vmem [resolvable:$true] %s790
          %793 = dma.hbm_to_vmem [thread:$0]  %s16, 16, %s791, [#allocation21]
        $region64: #{tpu_custom_call.1} parent=11 // pred_fallthru
          _
        // Predicated region
        $region65: #{tpu_custom_call.1} parent=11 // pred_check
          %p794 = pneg %p443
        $region66: #{tpu_custom_call.1} parent=11 // pred_check_branch
          %796 = sbr.rel (%p794) target = $region68
        $region67: #{tpu_custom_call.1} parent=11 // pred_region
          _
        $region68: #{tpu_custom_call.1} parent=11 // pred_fallthru
          _
        // Predicated region
        $region69: #{tpu_custom_call.1} parent=11 // pred_check
          %p797 = pneg %p464
        $region70: #{tpu_custom_call.1} parent=11 // pred_check_branch
          %799 = sbr.rel (%p797) target = $region72
        $region71: #{tpu_custom_call.1} parent=11 // pred_region
          _
        $region72: #{tpu_custom_call.1} parent=11 // pred_fallthru
          _
        // Predicated region
        $region73: #{tpu_custom_call.1} parent=11 // pred_check
          %p800 = pneg %p485
        $region74: #{tpu_custom_call.1} parent=11 // pred_check_branch
          %802 = sbr.rel (%p800) target = $region76
        $region75: #{tpu_custom_call.1} parent=11 // pred_region
          _
        $region76: #{tpu_custom_call.1} parent=11 // pred_fallthru
          _
        // Predicated region
        $region77: #{tpu_custom_call.1} parent=11 // pred_check
          %p803 = pneg %p506
        $region78: #{tpu_custom_call.1} parent=11 // pred_check_branch
          %805 = sbr.rel (%p803) target = $region80
        $region79: #{tpu_custom_call.1} parent=11 // pred_region
          _
        $region80: #{tpu_custom_call.1} parent=11 // pred_fallthru
          _
        // Predicated region
        $region81: #{tpu_custom_call.1} parent=11 // pred_check
          %p806 = pneg %p527
        $region82: #{tpu_custom_call.1} parent=11 // pred_check_branch
          %808 = sbr.rel (%p806) target = $region84
        $region83: #{tpu_custom_call.1} parent=11 // pred_region
          %s810 = ssub.s32 256, 256
          %811 = vsyncadd [#allocation21], %s810
          %s812 = sshll.u32 [#allocation22], 4
          %s813 = int_to_ptr.vmem [resolvable:$true] %s812
          %818 = dma.hbm_to_vmem [thread:$0]  %s21, 256, %s813, [#allocation21], 64, 64, 4
        $region84: #{tpu_custom_call.1} parent=11 // pred_fallthru
          _
        // Predicated region
        $region85: #{tpu_custom_call.1} parent=11 // pred_check
          %p819 = pneg %p548
        $region86: #{tpu_custom_call.1} parent=11 // pred_check_branch
          %821 = sbr.rel (%p819) target = $region88
        $region87: #{tpu_custom_call.1} parent=11 // pred_region
          _
        $region88: #{tpu_custom_call.1} parent=11 // pred_fallthru
          _
        // Predicated region
        $region89: #{tpu_custom_call.1} parent=11 // pred_check
          %p822 = pneg %p569
        $region90: #{tpu_custom_call.1} parent=11 // pred_check_branch
          %824 = sbr.rel (%p822) target = $region92
        $region91: #{tpu_custom_call.1} parent=11 // pred_region
          _
        $region92: #{tpu_custom_call.1} parent=11 // pred_fallthru
          _
        // Predicated region
        $region93: #{tpu_custom_call.1} parent=11 // pred_check
          %p825 = pneg %p590
        $region94: #{tpu_custom_call.1} parent=11 // pred_check_branch
          %827 = sbr.rel (%p825) target = $region96
        $region95: #{tpu_custom_call.1} parent=11 // pred_region
          _
        $region96: #{tpu_custom_call.1} parent=11 // pred_fallthru
          _
        // Predicated region
        $region97: #{tpu_custom_call.1} parent=11 // pred_check
          %p828 = pneg %p611
        $region98: #{tpu_custom_call.1} parent=11 // pred_check_branch
          %830 = sbr.rel (%p828) target = $region100
        $region99: #{tpu_custom_call.1} parent=11 // pred_region
          _
        $region100: #{tpu_custom_call.1} parent=11 // pred_fallthru
          _
        // Predicated region
        $region101: #{tpu_custom_call.1} parent=11 // pred_check
          %p831 = pneg %p632
        $region102: #{tpu_custom_call.1} parent=11 // pred_check_branch
          %833 = sbr.rel (%p831) target = $region104
        $region103: #{tpu_custom_call.1} parent=11 // pred_region
          _
        $region104: #{tpu_custom_call.1} parent=11 // pred_fallthru
          _
      $region12: #{tpu_custom_call.1} parent=5 // pred_fallthru
        _
      %p834 = scmp.lt.s32.totalorder %s45, 2
      // Predicated region
      $region105: #{tpu_custom_call.1} parent=5 // pred_check
        %p835 = pneg %p834
      $region106: #{tpu_custom_call.1} parent=5 // pred_check_branch
        %837 = sbr.rel (%p835) target = $region108
      $region107: #{tpu_custom_call.1} parent=5 // pred_region
        // Predicated region
        $region109: #{tpu_custom_call.1} parent=107 // pred_check
          %p838 = pneg %p65
        $region110: #{tpu_custom_call.1} parent=107 // pred_check_branch
          %840 = sbr.rel (%p838) target = $region112
        $region111: #{tpu_custom_call.1} parent=107 // pred_region
          %p841 = scmp.lt.s32.totalorder %s45, 1
          %s842 = scalar_select %p841, %s45, 1
          %s843 = smul.addr %s842, 8
          %s844 = scalar_lea.vmem %s0, %s843
        $region112: #{tpu_custom_call.1} parent=107 // pred_fallthru
          _
        // Predicated region
        $region113: #{tpu_custom_call.1} parent=107 // pred_check
          %p845 = pneg %p91
        $region114: #{tpu_custom_call.1} parent=107 // pred_check_branch
          %847 = sbr.rel (%p845) target = $region116
        $region115: #{tpu_custom_call.1} parent=107 // pred_region
          %p848 = scmp.lt.s32.totalorder %s45, 1
          %s849 = scalar_select %p848, %s45, 1
          %s850 = smul.addr %s849, 8
          %s851 = scalar_lea.vmem %s1, %s850
        $region116: #{tpu_custom_call.1} parent=107 // pred_fallthru
          _
        // Predicated region
        $region117: #{tpu_custom_call.1} parent=107 // pred_check
          %p852 = pneg %p138
        $region118: #{tpu_custom_call.1} parent=107 // pred_check_branch
          %854 = sbr.rel (%p852) target = $region120
        $region119: #{tpu_custom_call.1} parent=107 // pred_region
          %s855 = sand.u32 %s45, 1
          %s856 = scalar_lea.sflag [#allocation6], %s855
          %s857 = sand.u32 %s128, 1
          %s858 = scalar_lea.vmem [#allocation5], %s857
          %s860 = ssub.s32 16, 16
          %861 = vsyncadd %s856, %s860
          %s862 = smul.addr %s45, 16
          %s863 = scalar_lea.hbm %s3, %s862
          %s865 = sshll.u32 %s858, 4
          %s866 = int_to_ptr.vmem [resolvable:$true] %s865
          %868 = dma.hbm_to_vmem [thread:$0]  %s863, 16, %s866, %s856
        $region120: #{tpu_custom_call.1} parent=107 // pred_fallthru
          _
        // Predicated region
        $region121: #{tpu_custom_call.1} parent=107 // pred_check
          %p869 = pneg %p164
        $region122: #{tpu_custom_call.1} parent=107 // pred_check_branch
          %871 = sbr.rel (%p869) target = $region124
        $region123: #{tpu_custom_call.1} parent=107 // pred_region
          %s872 = sand.u32 %s45, 1
          %s873 = scalar_lea.sflag [#allocation6], %s872
          %s874 = sand.u32 %s154, 1
          %s875 = scalar_lea.vmem [#allocation7], %s874
          %s877 = ssub.s32 16, 16
          %878 = vsyncadd %s873, %s877
          %s879 = smul.addr %s45, 16
          %s880 = scalar_lea.hbm %s4, %s879
          %s882 = sshll.u32 %s875, 4
          %s883 = int_to_ptr.vmem [resolvable:$true] %s882
          %885 = dma.hbm_to_vmem [thread:$0]  %s880, 16, %s883, %s873
        $region124: #{tpu_custom_call.1} parent=107 // pred_fallthru
          _
      $region108: #{tpu_custom_call.1} parent=5 // pred_fallthru
        _
      %p886 = scmp.le.s32.totalorder 1, %s45
      %p887 = scmp.lt.s32.totalorder %s45, 3
      %p888 = pnand %p886, %p887
      %p889 = pneg %p888
      // Predicated region
      $region125: #{tpu_custom_call.1} parent=5 // pred_check
        _
      $region126: #{tpu_custom_call.1} parent=5 // pred_check_branch
        %891 = sbr.rel (%p888) target = $region128
      $region127: #{tpu_custom_call.1} parent=5 // pred_region
        %s892 = ssub.s32 %s45, 1
        // Predicated region
        $region129: #{tpu_custom_call.1} parent=127 // pred_check
          %p893 = pneg %p118
        $region130: #{tpu_custom_call.1} parent=127 // pred_check_branch
          %895 = sbr.rel (%p893) target = $region132
        $region131: #{tpu_custom_call.1} parent=127 // pred_region
          %896 = dma.done [#allocation3], 128
        $region132: #{tpu_custom_call.1} parent=127 // pred_fallthru
          _
        %s897 = sand.u32 %s50, 1
        %s898 = scalar_lea.sflag [#allocation6], %s897
        %s899 = sand.u32 %s131, 1
        %s900 = scalar_lea.vmem [#allocation5], %s899
        // Predicated region
        $region133: #{tpu_custom_call.1} parent=127 // pred_check
          %p901 = pneg %p144
        $region134: #{tpu_custom_call.1} parent=127 // pred_check_branch
          %903 = sbr.rel (%p901) target = $region136
        $region135: #{tpu_custom_call.1} parent=127 // pred_region
          %904 = dma.done %s898, 16
        $region136: #{tpu_custom_call.1} parent=127 // pred_fallthru
          _
        %s905 = sand.u32 %s50, 1
        %s906 = scalar_lea.sflag [#allocation6], %s905
        %s907 = sand.u32 %s157, 1
        %s908 = scalar_lea.vmem [#allocation7], %s907
        // Predicated region
        $region137: #{tpu_custom_call.1} parent=127 // pred_check
          %p909 = pneg %p170
        $region138: #{tpu_custom_call.1} parent=127 // pred_check_branch
          %911 = sbr.rel (%p909) target = $region140
        $region139: #{tpu_custom_call.1} parent=127 // pred_region
          %912 = dma.done %s906, 16
        $region140: #{tpu_custom_call.1} parent=127 // pred_fallthru
          _
        // Predicated region
        $region141: #{tpu_custom_call.1} parent=127 // pred_check
          %p913 = pneg %p191
        $region142: #{tpu_custom_call.1} parent=127 // pred_check_branch
          %915 = sbr.rel (%p913) target = $region144
        $region143: #{tpu_custom_call.1} parent=127 // pred_region
          %916 = dma.done [#allocation9], 16
        $region144: #{tpu_custom_call.1} parent=127 // pred_fallthru
          _
        // Predicated region
        $region145: #{tpu_custom_call.1} parent=127 // pred_check
          %p917 = pneg %p212
        $region146: #{tpu_custom_call.1} parent=127 // pred_check_branch
          %919 = sbr.rel (%p917) target = $region148
        $region147: #{tpu_custom_call.1} parent=127 // pred_region
          %920 = dma.done [#allocation9], 16
        $region148: #{tpu_custom_call.1} parent=127 // pred_fallthru
          _
        // Predicated region
        $region149: #{tpu_custom_call.1} parent=127 // pred_check
          %p921 = pneg %p254
        $region150: #{tpu_custom_call.1} parent=127 // pred_check_branch
          %923 = sbr.rel (%p921) target = $region152
        $region151: #{tpu_custom_call.1} parent=127 // pred_region
          %924 = dma.done [#allocation12], 16
        $region152: #{tpu_custom_call.1} parent=127 // pred_fallthru
          _
        // Predicated region
        $region153: #{tpu_custom_call.1} parent=127 // pred_check
          %p925 = pneg %p296
        $region154: #{tpu_custom_call.1} parent=127 // pred_check_branch
          %927 = sbr.rel (%p925) target = $region156
        $region155: #{tpu_custom_call.1} parent=127 // pred_region
          %928 = dma.done [#allocation12], 16
        $region156: #{tpu_custom_call.1} parent=127 // pred_fallthru
          _
        // Predicated region
        $region157: #{tpu_custom_call.1} parent=127 // pred_check
          %p929 = pneg %p317
        $region158: #{tpu_custom_call.1} parent=127 // pred_check_branch
          %931 = sbr.rel (%p929) target = $region160
        $region159: #{tpu_custom_call.1} parent=127 // pred_region
          %932 = dma.done [#allocation15], 16
        $region160: #{tpu_custom_call.1} parent=127 // pred_fallthru
          _
        // Predicated region
        $region161: #{tpu_custom_call.1} parent=127 // pred_check
          %p933 = pneg %p338
        $region162: #{tpu_custom_call.1} parent=127 // pred_check_branch
          %935 = sbr.rel (%p933) target = $region164
        $region163: #{tpu_custom_call.1} parent=127 // pred_region
          %936 = dma.done [#allocation15], 16
        $region164: #{tpu_custom_call.1} parent=127 // pred_fallthru
          _
        // Predicated region
        $region165: #{tpu_custom_call.1} parent=127 // pred_check
          %p937 = pneg %p380
        $region166: #{tpu_custom_call.1} parent=127 // pred_check_branch
          %939 = sbr.rel (%p937) target = $region168
        $region167: #{tpu_custom_call.1} parent=127 // pred_region
          %940 = dma.done [#allocation18], 16
        $region168: #{tpu_custom_call.1} parent=127 // pred_fallthru
          _
        // Predicated region
        $region169: #{tpu_custom_call.1} parent=127 // pred_check
          %p941 = pneg %p401
        $region170: #{tpu_custom_call.1} parent=127 // pred_check_branch
          %943 = sbr.rel (%p941) target = $region172
        $region171: #{tpu_custom_call.1} parent=127 // pred_region
          %944 = dma.done [#allocation18], 256
        $region172: #{tpu_custom_call.1} parent=127 // pred_fallthru
          _
        // Predicated region
        $region173: #{tpu_custom_call.1} parent=127 // pred_check
          %p945 = pneg %p422
        $region174: #{tpu_custom_call.1} parent=127 // pred_check_branch
          %947 = sbr.rel (%p945) target = $region176
        $region175: #{tpu_custom_call.1} parent=127 // pred_region
          %948 = dma.done [#allocation21], 16
        $region176: #{tpu_custom_call.1} parent=127 // pred_fallthru
          _
        // Predicated region
        $region177: #{tpu_custom_call.1} parent=127 // pred_check
          %p949 = pneg %p527
        $region178: #{tpu_custom_call.1} parent=127 // pred_check_branch
          %951 = sbr.rel (%p949) target = $region180
        $region179: #{tpu_custom_call.1} parent=127 // pred_region
          %952 = dma.done [#allocation21], 256
        $region180: #{tpu_custom_call.1} parent=127 // pred_fallthru
          _
        %p953 = scmp.lt.s32.totalorder %s50, 1
        %s954 = scalar_select %p953, %s50, 1
        %s955 = smul.addr %s954, 8
        %s956 = scalar_lea.vmem %s0, %s955
        %p957 = pneg %p71
        %p958 = pneg %p68
        %p959 = scmp.lt.s32.totalorder %s50, 1
        %s960 = scalar_select %p959, %s50, 1
        %s961 = smul.addr %s960, 8
        %s962 = scalar_lea.vmem %s1, %s961
        %p963 = pneg %p97
        %p964 = pneg %p94
        %p965 = pneg %p118
        %p966 = pneg %p115
        %s967 = sand.u32 %s50, 1
        %s968 = scalar_lea.sflag [#allocation6], %s967
        %s969 = sand.u32 %s131, 1
        %s970 = scalar_lea.vmem [#allocation5], %s969
        %p971 = pneg %p144
        %p972 = pneg %p141
        %s973 = sand.u32 %s50, 1
        %s974 = scalar_lea.sflag [#allocation6], %s973
        %s975 = sand.u32 %s157, 1
        %s976 = scalar_lea.vmem [#allocation7], %s975
        %p977 = pneg %p170
        %p978 = pneg %p167
        %p979 = pneg %p191
        %p980 = pneg %p188
        %p981 = pneg %p212
        %p982 = pneg %p209
        %p983 = pneg %p233
        %p984 = pneg %p230
        %p985 = pneg %p254
        %p986 = pneg %p251
        %p987 = pneg %p275
        %p988 = pneg %p272
        %p989 = pneg %p296
        %p990 = pneg %p293
        %p991 = pneg %p317
        %p992 = pneg %p314
        %p993 = pneg %p338
        %p994 = pneg %p335
        %p995 = pneg %p359
        %p996 = pneg %p356
        %p997 = pneg %p380
        %p998 = pneg %p377
        %p999 = pneg %p401
        %p1000 = pneg %p398
        %p1001 = pneg %p422
        %p1002 = pneg %p419
        %p1003 = pneg %p443
        %p1004 = pneg %p440
        %p1005 = pneg %p464
        %p1006 = pneg %p461
        %p1007 = pneg %p485
        %p1008 = pneg %p482
        %p1009 = pneg %p506
        %p1010 = pneg %p503
        %p1011 = pneg %p527
        %p1012 = pneg %p524
        %p1013 = pneg %p548
        %p1014 = pneg %p545
        %p1015 = pneg %p569
        %p1016 = pneg %p566
        %p1017 = pneg %p590
        %p1018 = pneg %p587
        %p1019 = pneg %p611
        %p1020 = pneg %p608
        %p1021 = pneg %p632
        %p1022 = pneg %p629
        %p1023 = pneg %p658
        %p1024 = pneg %p655
        %s1025 = sand.u32 %s645, 1
        %s1026 = scalar_lea.sflag [#allocation4], %s1025
        %s1027 = sand.u32 %s645, 1
        %s1028 = smul.addr %s1027, 8
        %s1029 = scalar_lea.vmem [#allocation23], %s1028
        %p1030 = scmp.lt.s32.totalorder %s50, 1
        %s1031 = scalar_select %p1030, %s50, 1
        %s1032 = smul.addr %s1031, 8
        %s1033 = scalar_lea.vmem %s0, %s1032
        %p1034 = scmp.lt.s32.totalorder %s50, 1
        %s1035 = scalar_select %p1034, %s50, 1
        %s1036 = smul.addr %s1035, 8
        %s1037 = scalar_lea.vmem %s1, %s1036
        %v1039 = vld [vmem:[%s1033] sm:$0xff]
        %v1040 = vld [vmem:[%s1037] sm:$0xff]
        %v1041 = vld [vmem:[#allocation2] sm:$0xff]
        %v1042 = vld [vmem:[%s900] sm:$0x1]
        %v1044 = vlaneseq
        %v1045 = vshrl.u32 %v1044, 7
        %v1046 = vsub.s32 0, %v1045
        %v1047 = vrot.slane %v1042, %v1046
        %v1049 = vadd.f32 %v1041, %v1047
        %v1050 = vld [vmem:[%s908] sm:$0x1]
        %v1051 = vld [vmem:[#allocation8] sm:$0x1]
        %v1052 = vld [vmem:[#allocation10] sm:$0x1]
        %vm1053 = vcmask 261120
        %v1054 = vsel %vm1053, %v1039, 0.0
        %1055 = vadd.xlane.f32.xlu0 %v1054
        %v1056 = vpop.xlane.xlu0 %1055
        %v1057 = vrcp.pop 32.0
        %v1058 = vmul.f32 %v1056, %v1057
        %v1059 = vsub.f32 %v1039, %v1058
        %v1060 = vmul.f32 %v1059, %v1059
        %v1061 = vsel %vm1053, %v1060, 0.0
        %1062 = vadd.xlane.f32.xlu0 %v1061
        %v1063 = vpop.xlane.xlu0 %1062
        %v1064 = vmul.f32 %v1063, %v1057
        %v1065 = vadd.f32 %v1064, 1e-05
        %v1066 = vrsqrt.pop %v1065
        %v1067 = vmul.f32 %v1059, %v1066
        %v1069 = vlaneseq
        %v1070 = vshrl.u32 %v1069, 7
        %v1071 = vsub.s32 0, %v1070
        %v1072 = vrot.slane %v1051, %v1071
        %v1074 = vmul.f32 %v1067, %v1072
        %v1076 = vlaneseq
        %v1077 = vshrl.u32 %v1076, 7
        %v1078 = vsub.s32 0, %v1077
        %v1079 = vrot.slane %v1052, %v1078
        %v1081 = vadd.f32 %v1074, %v1079
        %v1082 = vld [vmem:[%s7] sm:$0xf]
        %v1083 = vld [vmem:[%s7 + $0x4] sm:$0xf]
        %v1084 = vld [vmem:[%s7 + $0x8] sm:$0xf]
        %v1085 = vld [vmem:[%s7 + $0xc] sm:$0xf]
        %v1086 = vpack.c.bf16 %v1081, %v1081
        %v1087 = vld [vmem:[#allocation11] sm:$0x1]
        %v1089 = vlaneseq
        %v1090 = vshrl.u32 %v1089, 7
        %v1091 = vsub.s32 0, %v1090
        %v1092 = vrot.slane %v1087, %v1091
        %v1098 = vunpack.c.l.b16 %v1082
        %v1099 = vunpack.c.l.b16 %v1083
        %v1100 = vunpack.c.l.b16 %v1084
        %v1101 = vunpack.c.l.b16 %v1085
        %v1102 = vpack.c.b16 %v1099, %v1098
        %v1103 = vpack.c.b16 %v1101, %v1100
        %v1107 = vsel %vm1053, %v1086, 0
        %1109 = vmatprep.subr.bf16.mxu0 0
        %1110 = vmatpush1.bf16.msra.mxu0 %v1102
        %1111 = vmatprep.subr.bf16.mxu0 0
        %1112 = vmatpush1.bf16.msra.mxu0 %v1103
        %1113 = vmatprep.subr.bf16.mxu0 0
        %1114 = vmatpush1.bf16.msra.mxu0 0
        %1115 = vmatprep.subr.bf16.mxu0 0
        %1116 = vmatpush1.bf16.msra.mxu0 0
        %1117 = vmatprep.subr.bf16.mxu0 0
        %1118 = vmatpush1.bf16.msra.mxu0 0
        %1119 = vmatprep.subr.bf16.mxu0 0
        %1120 = vmatpush1.bf16.msra.mxu0 0
        %1121 = vmatprep.subr.bf16.mxu0 0
        %1122 = vmatpush1.bf16.msra.mxu0 0
        %1123 = vmatprep.subr.bf16.mxu0 0
        %1124 = vmatpush1.bf16.msra.mxu0 0
        %1125 = vmatprep.subr.bf16.mxu0 0
        %1126 = vmatpush1.bf16.msra.mxu0 0
        %1127 = vmatprep.subr.bf16.mxu0 0
        %1128 = vmatpush1.bf16.msra.mxu0 0
        %1129 = vmatprep.subr.bf16.mxu0 0
        %1130 = vmatpush1.bf16.msra.mxu0 0
        %1131 = vmatprep.subr.bf16.mxu0 0
        %1132 = vmatpush1.bf16.msra.mxu0 0
        %1133 = vmatprep.subr.bf16.mxu0 0
        %1134 = vmatpush1.bf16.msra.mxu0 0
        %1135 = vmatprep.subr.bf16.mxu0 0
        %1136 = vmatpush1.bf16.msra.mxu0 0
        %1137 = vmatprep.subr.bf16.mxu0 0
        %1138 = vmatpush1.bf16.msra.mxu0 0
        %1139 = vmatprep.subr.bf16.mxu0 0
        %1140 = vmatpush1.bf16.msra.mxu0 0
        %1141 = vmatprep.mubr.bf16.mxu0 0
        %1142 = vmatmul.mubr.bf16.gmra.mrb[0].mxu0 %v1107
        %v1143 = vpop.f32.mrb[0].mxu0
        %v1144 = vadd.f32 %v1092, %v1143
        %v1145 = vpop.f32.mrb[0].mxu0
        %v1146 = vpop.f32.mrb[0].mxu0
        %v1147 = vpop.f32.mrb[0].mxu0
        %1148 = vdwg.mxu0
        %v1149 = vpack.c.bf16 %v1144, %v1144
        %1151 = vrot.lane.b32.xlu0 %v1149, 96
        %v1152 = vpop.permute.xlu0 %1151
        %vm1153 = vcmask 64512
        %v1155 = vsel %vm1153, %v1149, 0
        %v1158 = vsel %vm1153, %v1152, 0
        %1160 = vmatprep.subr.bf16.mxu0 0
        %1161 = vmatpush1.bf16.xpose.msra.mxu0 %v1158
        %1162 = vmatprep.subr.bf16.mxu0 0
        %1163 = vmatpush1.bf16.xpose.msra.mxu0 0
        %1164 = vmatprep.subr.bf16.mxu0 0
        %1165 = vmatpush1.bf16.xpose.msra.mxu0 0
        %1166 = vmatprep.subr.bf16.mxu0 0
        %1167 = vmatpush1.bf16.xpose.msra.mxu0 0
        %1168 = vmatprep.subr.bf16.mxu0 0
        %1169 = vmatpush1.bf16.xpose.msra.mxu0 0
        %1170 = vmatprep.subr.bf16.mxu0 0
        %1171 = vmatpush1.bf16.xpose.msra.mxu0 0
        %1172 = vmatprep.subr.bf16.mxu0 0
        %1173 = vmatpush1.bf16.xpose.msra.mxu0 0
        %1174 = vmatprep.subr.bf16.mxu0 0
        %1175 = vmatpush1.bf16.xpose.msra.mxu0 0
        %1176 = vmatprep.subr.bf16.mxu0 0
        %1177 = vmatpush1.bf16.xpose.msra.mxu0 0
        %1178 = vmatprep.subr.bf16.mxu0 0
        %1179 = vmatpush1.bf16.xpose.msra.mxu0 0
        %1180 = vmatprep.subr.bf16.mxu0 0
        %1181 = vmatpush1.bf16.xpose.msra.mxu0 0
        %1182 = vmatprep.subr.bf16.mxu0 0
        %1183 = vmatpush1.bf16.xpose.msra.mxu0 0
        %1184 = vmatprep.subr.bf16.mxu0 0
        %1185 = vmatpush1.bf16.xpose.msra.mxu0 0
        %1186 = vmatprep.subr.bf16.mxu0 0
        %1187 = vmatpush1.bf16.xpose.msra.mxu0 0
        %1188 = vmatprep.subr.bf16.mxu0 0
        %1189 = vmatpush1.bf16.xpose.msra.mxu0 0
        %1190 = vmatprep.subr.bf16.mxu0 0
        %1191 = vmatpush1.bf16.xpose.msra.mxu0 0
        %1192 = vmatprep.mubr.bf16.mxu0 0
        %1193 = vmatmul.mubr.bf16.gmra.mrb[0].mxu0 %v1155
        %v1194 = vpop.f32.mrb[0].mxu0
        %v1195 = vadd.f32 %v1049, %v1194
        %v1196 = vpop.f32.mrb[0].mxu0
        %v1197 = vpop.f32.mrb[0].mxu0
        %v1198 = vpop.f32.mrb[0].mxu0
        %1199 = vdwg.mxu0
        %v1200 = vsel %vm1153, %v1195, -inf
        %1201 = vmax.xlane.f32.xlu0 %v1200
        %v1202 = vpop.xlane.xlu0 %1201
        %v1203 = vsub.f32 %v1195, %v1202
        %v1204 = vmul.f32 %v1203, 1.442695
        %v1205 = vpow.pop %v1204
        %v1206 = vsel %vm1153, %v1205, 0.0
        %1207 = vadd.xlane.f32.xlu0 %v1206
        %v1208 = vpop.xlane.xlu0 %1207
        %v1209 = vrcp.pop %v1208
        %v1210 = vmul.f32 %v1205, %v1209
        %v1211 = vpack.c.bf16 %v1210, %v1210
        %1212 = vrot.lane.b32.xlu0 %v1149, 64
        %v1213 = vpop.permute.xlu0 %1212
        %v1215 = vsel %vm1153, %v1211, 0
        %vm1217 = vcmask 1043456
        %v1219 = vsel %vm1217, %v1213, 0
        %1221 = vmatprep.subr.bf16.mxu0 0
        %1222 = vmatpush1.bf16.msra.mxu0 %v1219
        %1223 = vmatprep.subr.bf16.mxu0 0
        %1224 = vmatpush1.bf16.msra.mxu0 0
        %1225 = vmatprep.subr.bf16.mxu0 0
        %1226 = vmatpush1.bf16.msra.mxu0 0
        %1227 = vmatprep.subr.bf16.mxu0 0
        %1228 = vmatpush1.bf16.msra.mxu0 0
        %1229 = vmatprep.subr.bf16.mxu0 0
        %1230 = vmatpush1.bf16.msra.mxu0 0
        %1231 = vmatprep.subr.bf16.mxu0 0
        %1232 = vmatpush1.bf16.msra.mxu0 0
        %1233 = vmatprep.subr.bf16.mxu0 0
        %1234 = vmatpush1.bf16.msra.mxu0 0
        %1235 = vmatprep.subr.bf16.mxu0 0
        %1236 = vmatpush1.bf16.msra.mxu0 0
        %1237 = vmatprep.subr.bf16.mxu0 0
        %1238 = vmatpush1.bf16.msra.mxu0 0
        %1239 = vmatprep.subr.bf16.mxu0 0
        %1240 = vmatpush1.bf16.msra.mxu0 0
        %1241 = vmatprep.subr.bf16.mxu0 0
        %1242 = vmatpush1.bf16.msra.mxu0 0
        %1243 = vmatprep.subr.bf16.mxu0 0
        %1244 = vmatpush1.bf16.msra.mxu0 0
        %1245 = vmatprep.subr.bf16.mxu0 0
        %1246 = vmatpush1.bf16.msra.mxu0 0
        %1247 = vmatprep.subr.bf16.mxu0 0
        %1248 = vmatpush1.bf16.msra.mxu0 0
        %1249 = vmatprep.subr.bf16.mxu0 0
        %1250 = vmatpush1.bf16.msra.mxu0 0
        %1251 = vmatprep.subr.bf16.mxu0 0
        %1252 = vmatpush1.bf16.msra.mxu0 0
        %1253 = vmatprep.mubr.bf16.mxu0 0
        %1254 = vmatmul.mubr.bf16.gmra.mrb[0].mxu0 %v1215
        %v1255 = vpop.f32.mrb[0].mxu0
        %v1256 = vadd.f32 0.0, %v1255
        %v1257 = vpop.f32.mrb[0].mxu0
        %v1258 = vpop.f32.mrb[0].mxu0
        %v1259 = vpop.f32.mrb[0].mxu0
        %1260 = vdwg.mxu0
        %v1261 = vpack.c.bf16 %v1256, %v1256
        %v1262 = vld [vmem:[%s9] sm:$0xf]
        %1263 = vrot.lane.b32.xlu0 %v1149, 120
        %v1264 = vpop.permute.xlu0 %1263
        %1265 = vrot.lane.b32.xlu0 %v1149, 88
        %v1266 = vpop.permute.xlu0 %1265
        %v1268 = vsel %vm1153, %v1264, 0
        %v1271 = vsel %vm1153, %v1266, 0
        %1273 = vmatprep.subr.bf16.mxu0 0
        %1274 = vmatpush1.bf16.xpose.msra.mxu0 %v1271
        %1275 = vmatprep.subr.bf16.mxu0 0
        %1276 = vmatpush1.bf16.xpose.msra.mxu0 0
        %1277 = vmatprep.subr.bf16.mxu0 0
        %1278 = vmatpush1.bf16.xpose.msra.mxu0 0
        %1279 = vmatprep.subr.bf16.mxu0 0
        %1280 = vmatpush1.bf16.xpose.msra.mxu0 0
        %1281 = vmatprep.subr.bf16.mxu0 0
        %1282 = vmatpush1.bf16.xpose.msra.mxu0 0
        %1283 = vmatprep.subr.bf16.mxu0 0
        %1284 = vmatpush1.bf16.xpose.msra.mxu0 0
        %1285 = vmatprep.subr.bf16.mxu0 0
        %1286 = vmatpush1.bf16.xpose.msra.mxu0 0
        %1287 = vmatprep.subr.bf16.mxu0 0
        %1288 = vmatpush1.bf16.xpose.msra.mxu0 0
        %1289 = vmatprep.subr.bf16.mxu0 0
        %1290 = vmatpush1.bf16.xpose.msra.mxu0 0
        %1291 = vmatprep.subr.bf16.mxu0 0
        %1292 = vmatpush1.bf16.xpose.msra.mxu0 0
        %1293 = vmatprep.subr.bf16.mxu0 0
        %1294 = vmatpush1.bf16.xpose.msra.mxu0 0
        %1295 = vmatprep.subr.bf16.mxu0 0
        %1296 = vmatpush1.bf16.xpose.msra.mxu0 0
        %1297 = vmatprep.subr.bf16.mxu0 0
        %1298 = vmatpush1.bf16.xpose.msra.mxu0 0
        %1299 = vmatprep.subr.bf16.mxu0 0
        %1300 = vmatpush1.bf16.xpose.msra.mxu0 0
        %1301 = vmatprep.subr.bf16.mxu0 0
        %1302 = vmatpush1.bf16.xpose.msra.mxu0 0
        %1303 = vmatprep.subr.bf16.mxu0 0
        %1304 = vmatpush1.bf16.xpose.msra.mxu0 0
        %1305 = vmatprep.mubr.bf16.mxu0 0
        %1306 = vmatmul.mubr.bf16.gmra.mrb[0].mxu0 %v1268
        %v1307 = vpop.f32.mrb[0].mxu0
        %v1308 = vadd.f32 %v1049, %v1307
        %v1309 = vpop.f32.mrb[0].mxu0
        %v1310 = vpop.f32.mrb[0].mxu0
        %v1311 = vpop.f32.mrb[0].mxu0
        %1312 = vdwg.mxu0
        %v1313 = vsel %vm1153, %v1308, -inf
        %1314 = vmax.xlane.f32.xlu0 %v1313
        %v1315 = vpop.xlane.xlu0 %1314
        %v1316 = vsub.f32 %v1308, %v1315
        %v1317 = vmul.f32 %v1316, 1.442695
        %v1318 = vpow.pop %v1317
        %v1319 = vsel %vm1153, %v1318, 0.0
        %1320 = vadd.xlane.f32.xlu0 %v1319
        %v1321 = vpop.xlane.xlu0 %1320
        %v1322 = vrcp.pop %v1321
        %v1323 = vmul.f32 %v1318, %v1322
        %v1324 = vpack.c.bf16 %v1323, %v1323
        %1325 = vrot.lane.b32.xlu0 %v1149, 56
        %v1326 = vpop.permute.xlu0 %1325
        %v1328 = vsel %vm1153, %v1324, 0
        %v1331 = vsel %vm1217, %v1326, 0
        %1333 = vmatprep.subr.bf16.mxu0 0
        %1334 = vmatpush1.bf16.msra.mxu0 %v1331
        %1335 = vmatprep.subr.bf16.mxu0 0
        %1336 = vmatpush1.bf16.msra.mxu0 0
        %1337 = vmatprep.subr.bf16.mxu0 0
        %1338 = vmatpush1.bf16.msra.mxu0 0
        %1339 = vmatprep.subr.bf16.mxu0 0
        %1340 = vmatpush1.bf16.msra.mxu0 0
        %1341 = vmatprep.subr.bf16.mxu0 0
        %1342 = vmatpush1.bf16.msra.mxu0 0
        %1343 = vmatprep.subr.bf16.mxu0 0
        %1344 = vmatpush1.bf16.msra.mxu0 0
        %1345 = vmatprep.subr.bf16.mxu0 0
        %1346 = vmatpush1.bf16.msra.mxu0 0
        %1347 = vmatprep.subr.bf16.mxu0 0
        %1348 = vmatpush1.bf16.msra.mxu0 0
        %1349 = vmatprep.subr.bf16.mxu0 0
        %1350 = vmatpush1.bf16.msra.mxu0 0
        %1351 = vmatprep.subr.bf16.mxu0 0
        %1352 = vmatpush1.bf16.msra.mxu0 0
        %1353 = vmatprep.subr.bf16.mxu0 0
        %1354 = vmatpush1.bf16.msra.mxu0 0
        %1355 = vmatprep.subr.bf16.mxu0 0
        %1356 = vmatpush1.bf16.msra.mxu0 0
        %1357 = vmatprep.subr.bf16.mxu0 0
        %1358 = vmatpush1.bf16.msra.mxu0 0
        %1359 = vmatprep.subr.bf16.mxu0 0
        %1360 = vmatpush1.bf16.msra.mxu0 0
        %1361 = vmatprep.subr.bf16.mxu0 0
        %1362 = vmatpush1.bf16.msra.mxu0 0
        %1363 = vmatprep.subr.bf16.mxu0 0
        %1364 = vmatpush1.bf16.msra.mxu0 0
        %1365 = vmatprep.mubr.bf16.mxu0 0
        %1366 = vmatmul.mubr.bf16.gmra.mrb[0].mxu0 %v1328
        %v1367 = vpop.f32.mrb[0].mxu0
        %v1368 = vadd.f32 0.0, %v1367
        %v1369 = vpop.f32.mrb[0].mxu0
        %v1370 = vpop.f32.mrb[0].mxu0
        %v1371 = vpop.f32.mrb[0].mxu0
        %1372 = vdwg.mxu0
        %v1373 = vpack.c.bf16 %v1368, %v1368
        %s1374 = scalar_lea.vmem %s9, 4
        %v1375 = vld [vmem:[%s1374] sm:$0xf]
        %v1377 = vsel %vm1153, %v1373, 0
        %v1380 = vsel %vm1217, %v1375, 0
        %1382 = vmatprep.subr.bf16.mxu0 0
        %1383 = vmatpush1.bf16.msra.mxu0 %v1380
        %1384 = vmatprep.subr.bf16.mxu0 0
        %1385 = vmatpush1.bf16.msra.mxu0 0
        %1386 = vmatprep.subr.bf16.mxu0 0
        %1387 = vmatpush1.bf16.msra.mxu0 0
        %1388 = vmatprep.subr.bf16.mxu0 0
        %1389 = vmatpush1.bf16.msra.mxu0 0
        %1390 = vmatprep.subr.bf16.mxu0 0
        %1391 = vmatpush1.bf16.msra.mxu0 0
        %1392 = vmatprep.subr.bf16.mxu0 0
        %1393 = vmatpush1.bf16.msra.mxu0 0
        %1394 = vmatprep.subr.bf16.mxu0 0
        %1395 = vmatpush1.bf16.msra.mxu0 0
        %1396 = vmatprep.subr.bf16.mxu0 0
        %1397 = vmatpush1.bf16.msra.mxu0 0
        %1398 = vmatprep.subr.bf16.mxu0 0
        %1399 = vmatpush1.bf16.msra.mxu0 0
        %1400 = vmatprep.subr.bf16.mxu0 0
        %1401 = vmatpush1.bf16.msra.mxu0 0
        %1402 = vmatprep.subr.bf16.mxu0 0
        %1403 = vmatpush1.bf16.msra.mxu0 0
        %1404 = vmatprep.subr.bf16.mxu0 0
        %1405 = vmatpush1.bf16.msra.mxu0 0
        %1406 = vmatprep.subr.bf16.mxu0 0
        %1407 = vmatpush1.bf16.msra.mxu0 0
        %1408 = vmatprep.subr.bf16.mxu0 0
        %1409 = vmatpush1.bf16.msra.mxu0 0
        %1410 = vmatprep.subr.bf16.mxu0 0
        %1411 = vmatpush1.bf16.msra.mxu0 0
        %1412 = vmatprep.subr.bf16.mxu0 0
        %1413 = vmatpush1.bf16.msra.mxu0 0
        %1414 = vmatprep.mubr.bf16.mxu0 0
        %1415 = vmatmul.mubr.bf16.gmra.mrb[0].mxu0 %v1377
        %v1416 = vpop.f32.mrb[0].mxu0
        %v1417 = vadd.f32 0.0, %v1416
        %v1418 = vpop.f32.mrb[0].mxu0
        %v1419 = vpop.f32.mrb[0].mxu0
        %v1420 = vpop.f32.mrb[0].mxu0
        %1421 = vdwg.mxu0
        %v1423 = vsel %vm1153, %v1261, 0
        %v1426 = vsel %vm1217, %v1262, 0
        %1428 = vmatprep.subr.bf16.mxu0 0
        %1429 = vmatpush1.bf16.msra.mxu0 %v1426
        %1430 = vmatprep.subr.bf16.mxu0 0
        %1431 = vmatpush1.bf16.msra.mxu0 0
        %1432 = vmatprep.subr.bf16.mxu0 0
        %1433 = vmatpush1.bf16.msra.mxu0 0
        %1434 = vmatprep.subr.bf16.mxu0 0
        %1435 = vmatpush1.bf16.msra.mxu0 0
        %1436 = vmatprep.subr.bf16.mxu0 0
        %1437 = vmatpush1.bf16.msra.mxu0 0
        %1438 = vmatprep.subr.bf16.mxu0 0
        %1439 = vmatpush1.bf16.msra.mxu0 0
        %1440 = vmatprep.subr.bf16.mxu0 0
        %1441 = vmatpush1.bf16.msra.mxu0 0
        %1442 = vmatprep.subr.bf16.mxu0 0
        %1443 = vmatpush1.bf16.msra.mxu0 0
        %1444 = vmatprep.subr.bf16.mxu0 0
        %1445 = vmatpush1.bf16.msra.mxu0 0
        %1446 = vmatprep.subr.bf16.mxu0 0
        %1447 = vmatpush1.bf16.msra.mxu0 0
        %1448 = vmatprep.subr.bf16.mxu0 0
        %1449 = vmatpush1.bf16.msra.mxu0 0
        %1450 = vmatprep.subr.bf16.mxu0 0
        %1451 = vmatpush1.bf16.msra.mxu0 0
        %1452 = vmatprep.subr.bf16.mxu0 0
        %1453 = vmatpush1.bf16.msra.mxu0 0
        %1454 = vmatprep.subr.bf16.mxu0 0
        %1455 = vmatpush1.bf16.msra.mxu0 0
        %1456 = vmatprep.subr.bf16.mxu0 0
        %1457 = vmatpush1.bf16.msra.mxu0 0
        %1458 = vmatprep.subr.bf16.mxu0 0
        %1459 = vmatpush1.bf16.msra.mxu0 0
        %1460 = vmatprep.mubr.bf16.mxu0 0
        %1461 = vmatmul.mubr.bf16.gmra.mrb[0].mxu0 %v1423
        %v1462 = vpop.f32.mrb[0].mxu0
        %v1463 = vadd.f32 %v1417, %v1462
        %v1464 = vpop.f32.mrb[0].mxu0
        %v1465 = vpop.f32.mrb[0].mxu0
        %v1466 = vpop.f32.mrb[0].mxu0
        %1467 = vdwg.mxu0
        %1468 = vrot.lane.b32.xlu0 %v1149, 112
        %v1469 = vpop.permute.xlu0 %1468
        %1470 = vrot.lane.b32.xlu0 %v1149, 80
        %v1471 = vpop.permute.xlu0 %1470
        %v1473 = vsel %vm1153, %v1469, 0
        %v1476 = vsel %vm1153, %v1471, 0
        %1478 = vmatprep.subr.bf16.mxu0 0
        %1479 = vmatpush1.bf16.xpose.msra.mxu0 %v1476
        %1480 = vmatprep.subr.bf16.mxu0 0
        %1481 = vmatpush1.bf16.xpose.msra.mxu0 0
        %1482 = vmatprep.subr.bf16.mxu0 0
        %1483 = vmatpush1.bf16.xpose.msra.mxu0 0
        %1484 = vmatprep.subr.bf16.mxu0 0
        %1485 = vmatpush1.bf16.xpose.msra.mxu0 0
        %1486 = vmatprep.subr.bf16.mxu0 0
        %1487 = vmatpush1.bf16.xpose.msra.mxu0 0
        %1488 = vmatprep.subr.bf16.mxu0 0
        %1489 = vmatpush1.bf16.xpose.msra.mxu0 0
        %1490 = vmatprep.subr.bf16.mxu0 0
        %1491 = vmatpush1.bf16.xpose.msra.mxu0 0
        %1492 = vmatprep.subr.bf16.mxu0 0
        %1493 = vmatpush1.bf16.xpose.msra.mxu0 0
        %1494 = vmatprep.subr.bf16.mxu0 0
        %1495 = vmatpush1.bf16.xpose.msra.mxu0 0
        %1496 = vmatprep.subr.bf16.mxu0 0
        %1497 = vmatpush1.bf16.xpose.msra.mxu0 0
        %1498 = vmatprep.subr.bf16.mxu0 0
        %1499 = vmatpush1.bf16.xpose.msra.mxu0 0
        %1500 = vmatprep.subr.bf16.mxu0 0
        %1501 = vmatpush1.bf16.xpose.msra.mxu0 0
        %1502 = vmatprep.subr.bf16.mxu0 0
        %1503 = vmatpush1.bf16.xpose.msra.mxu0 0
        %1504 = vmatprep.subr.bf16.mxu0 0
        %1505 = vmatpush1.bf16.xpose.msra.mxu0 0
        %1506 = vmatprep.subr.bf16.mxu0 0
        %1507 = vmatpush1.bf16.xpose.msra.mxu0 0
        %1508 = vmatprep.subr.bf16.mxu0 0
        %1509 = vmatpush1.bf16.xpose.msra.mxu0 0
        %1510 = vmatprep.mubr.bf16.mxu0 0
        %1511 = vmatmul.mubr.bf16.gmra.mrb[0].mxu0 %v1473
        %v1512 = vpop.f32.mrb[0].mxu0
        %v1513 = vadd.f32 %v1049, %v1512
        %v1514 = vpop.f32.mrb[0].mxu0
        %v1515 = vpop.f32.mrb[0].mxu0
        %v1516 = vpop.f32.mrb[0].mxu0
        %1517 = vdwg.mxu0
        %v1518 = vsel %vm1153, %v1513, -inf
        %1519 = vmax.xlane.f32.xlu0 %v1518
        %v1520 = vpop.xlane.xlu0 %1519
        %v1521 = vsub.f32 %v1513, %v1520
        %v1522 = vmul.f32 %v1521, 1.442695
        %v1523 = vpow.pop %v1522
        %v1524 = vsel %vm1153, %v1523, 0.0
        %1525 = vadd.xlane.f32.xlu0 %v1524
        %v1526 = vpop.xlane.xlu0 %1525
        %v1527 = vrcp.pop %v1526
        %v1528 = vmul.f32 %v1523, %v1527
        %v1529 = vpack.c.bf16 %v1528, %v1528
        %1530 = vrot.lane.b32.xlu0 %v1149, 48
        %v1531 = vpop.permute.xlu0 %1530
        %v1533 = vsel %vm1153, %v1529, 0
        %v1536 = vsel %vm1217, %v1531, 0
        %1538 = vmatprep.subr.bf16.mxu0 0
        %1539 = vmatpush1.bf16.msra.mxu0 %v1536
        %1540 = vmatprep.subr.bf16.mxu0 0
        %1541 = vmatpush1.bf16.msra.mxu0 0
        %1542 = vmatprep.subr.bf16.mxu0 0
        %1543 = vmatpush1.bf16.msra.mxu0 0
        %1544 = vmatprep.subr.bf16.mxu0 0
        %1545 = vmatpush1.bf16.msra.mxu0 0
        %1546 = vmatprep.subr.bf16.mxu0 0
        %1547 = vmatpush1.bf16.msra.mxu0 0
        %1548 = vmatprep.subr.bf16.mxu0 0
        %1549 = vmatpush1.bf16.msra.mxu0 0
        %1550 = vmatprep.subr.bf16.mxu0 0
        %1551 = vmatpush1.bf16.msra.mxu0 0
        %1552 = vmatprep.subr.bf16.mxu0 0
        %1553 = vmatpush1.bf16.msra.mxu0 0
        %1554 = vmatprep.subr.bf16.mxu0 0
        %1555 = vmatpush1.bf16.msra.mxu0 0
        %1556 = vmatprep.subr.bf16.mxu0 0
        %1557 = vmatpush1.bf16.msra.mxu0 0
        %1558 = vmatprep.subr.bf16.mxu0 0
        %1559 = vmatpush1.bf16.msra.mxu0 0
        %1560 = vmatprep.subr.bf16.mxu0 0
        %1561 = vmatpush1.bf16.msra.mxu0 0
        %1562 = vmatprep.subr.bf16.mxu0 0
        %1563 = vmatpush1.bf16.msra.mxu0 0
        %1564 = vmatprep.subr.bf16.mxu0 0
        %1565 = vmatpush1.bf16.msra.mxu0 0
        %1566 = vmatprep.subr.bf16.mxu0 0
        %1567 = vmatpush1.bf16.msra.mxu0 0
        %1568 = vmatprep.subr.bf16.mxu0 0
        %1569 = vmatpush1.bf16.msra.mxu0 0
        %1570 = vmatprep.mubr.bf16.mxu0 0
        %1571 = vmatmul.mubr.bf16.gmra.mrb[0].mxu0 %v1533
        %v1572 = vpop.f32.mrb[0].mxu0
        %v1573 = vadd.f32 0.0, %v1572
        %v1574 = vpop.f32.mrb[0].mxu0
        %v1575 = vpop.f32.mrb[0].mxu0
        %v1576 = vpop.f32.mrb[0].mxu0
        %1577 = vdwg.mxu0
        %v1578 = vpack.c.bf16 %v1573, %v1573
        %s1579 = scalar_lea.vmem %s9, 8
        %v1580 = vld [vmem:[%s1579] sm:$0xf]
        %v1582 = vsel %vm1153, %v1578, 0
        %v1585 = vsel %vm1217, %v1580, 0
        %1587 = vmatprep.subr.bf16.mxu0 0
        %1588 = vmatpush1.bf16.msra.mxu0 %v1585
        %1589 = vmatprep.subr.bf16.mxu0 0
        %1590 = vmatpush1.bf16.msra.mxu0 0
        %1591 = vmatprep.subr.bf16.mxu0 0
        %1592 = vmatpush1.bf16.msra.mxu0 0
        %1593 = vmatprep.subr.bf16.mxu0 0
        %1594 = vmatpush1.bf16.msra.mxu0 0
        %1595 = vmatprep.subr.bf16.mxu0 0
        %1596 = vmatpush1.bf16.msra.mxu0 0
        %1597 = vmatprep.subr.bf16.mxu0 0
        %1598 = vmatpush1.bf16.msra.mxu0 0
        %1599 = vmatprep.subr.bf16.mxu0 0
        %1600 = vmatpush1.bf16.msra.mxu0 0
        %1601 = vmatprep.subr.bf16.mxu0 0
        %1602 = vmatpush1.bf16.msra.mxu0 0
        %1603 = vmatprep.subr.bf16.mxu0 0
        %1604 = vmatpush1.bf16.msra.mxu0 0
        %1605 = vmatprep.subr.bf16.mxu0 0
        %1606 = vmatpush1.bf16.msra.mxu0 0
        %1607 = vmatprep.subr.bf16.mxu0 0
        %1608 = vmatpush1.bf16.msra.mxu0 0
        %1609 = vmatprep.subr.bf16.mxu0 0
        %1610 = vmatpush1.bf16.msra.mxu0 0
        %1611 = vmatprep.subr.bf16.mxu0 0
        %1612 = vmatpush1.bf16.msra.mxu0 0
        %1613 = vmatprep.subr.bf16.mxu0 0
        %1614 = vmatpush1.bf16.msra.mxu0 0
        %1615 = vmatprep.subr.bf16.mxu0 0
        %1616 = vmatpush1.bf16.msra.mxu0 0
        %1617 = vmatprep.subr.bf16.mxu0 0
        %1618 = vmatpush1.bf16.msra.mxu0 0
        %1619 = vmatprep.mubr.bf16.mxu0 0
        %1620 = vmatmul.mubr.bf16.gmra.mrb[0].mxu0 %v1582
        %v1621 = vpop.f32.mrb[0].mxu0
        %v1622 = vadd.f32 0.0, %v1621
        %v1623 = vpop.f32.mrb[0].mxu0
        %v1624 = vpop.f32.mrb[0].mxu0
        %v1625 = vpop.f32.mrb[0].mxu0
        %1626 = vdwg.mxu0
        %v1627 = vadd.f32 %v1463, %v1622
        %1628 = vrot.lane.b32.xlu0 %v1149, 104
        %v1629 = vpop.permute.xlu0 %1628
        %1630 = vrot.lane.b32.xlu0 %v1149, 72
        %v1631 = vpop.permute.xlu0 %1630
        %v1633 = vsel %vm1153, %v1629, 0
        %v1636 = vsel %vm1153, %v1631, 0
        %1638 = vmatprep.subr.bf16.mxu0 0
        %1639 = vmatpush1.bf16.xpose.msra.mxu0 %v1636
        %1640 = vmatprep.subr.bf16.mxu0 0
        %1641 = vmatpush1.bf16.xpose.msra.mxu0 0
        %1642 = vmatprep.subr.bf16.mxu0 0
        %1643 = vmatpush1.bf16.xpose.msra.mxu0 0
        %1644 = vmatprep.subr.bf16.mxu0 0
        %1645 = vmatpush1.bf16.xpose.msra.mxu0 0
        %1646 = vmatprep.subr.bf16.mxu0 0
        %1647 = vmatpush1.bf16.xpose.msra.mxu0 0
        %1648 = vmatprep.subr.bf16.mxu0 0
        %1649 = vmatpush1.bf16.xpose.msra.mxu0 0
        %1650 = vmatprep.subr.bf16.mxu0 0
        %1651 = vmatpush1.bf16.xpose.msra.mxu0 0
        %1652 = vmatprep.subr.bf16.mxu0 0
        %1653 = vmatpush1.bf16.xpose.msra.mxu0 0
        %1654 = vmatprep.subr.bf16.mxu0 0
        %1655 = vmatpush1.bf16.xpose.msra.mxu0 0
        %1656 = vmatprep.subr.bf16.mxu0 0
        %1657 = vmatpush1.bf16.xpose.msra.mxu0 0
        %1658 = vmatprep.subr.bf16.mxu0 0
        %1659 = vmatpush1.bf16.xpose.msra.mxu0 0
        %1660 = vmatprep.subr.bf16.mxu0 0
        %1661 = vmatpush1.bf16.xpose.msra.mxu0 0
        %1662 = vmatprep.subr.bf16.mxu0 0
        %1663 = vmatpush1.bf16.xpose.msra.mxu0 0
        %1664 = vmatprep.subr.bf16.mxu0 0
        %1665 = vmatpush1.bf16.xpose.msra.mxu0 0
        %1666 = vmatprep.subr.bf16.mxu0 0
        %1667 = vmatpush1.bf16.xpose.msra.mxu0 0
        %1668 = vmatprep.subr.bf16.mxu0 0
        %1669 = vmatpush1.bf16.xpose.msra.mxu0 0
        %1670 = vmatprep.mubr.bf16.mxu0 0
        %1671 = vmatmul.mubr.bf16.gmra.mrb[0].mxu0 %v1633
        %v1672 = vpop.f32.mrb[0].mxu0
        %v1673 = vadd.f32 %v1049, %v1672
        %v1674 = vpop.f32.mrb[0].mxu0
        %v1675 = vpop.f32.mrb[0].mxu0
        %v1676 = vpop.f32.mrb[0].mxu0
        %1677 = vdwg.mxu0
        %v1678 = vsel %vm1153, %v1673, -inf
        %1679 = vmax.xlane.f32.xlu0 %v1678
        %v1680 = vpop.xlane.xlu0 %1679
        %v1681 = vsub.f32 %v1673, %v1680
        %v1682 = vmul.f32 %v1681, 1.442695
        %v1683 = vpow.pop %v1682
        %v1684 = vsel %vm1153, %v1683, 0.0
        %1685 = vadd.xlane.f32.xlu0 %v1684
        %v1686 = vpop.xlane.xlu0 %1685
        %v1687 = vrcp.pop %v1686
        %v1688 = vmul.f32 %v1683, %v1687
        %v1689 = vpack.c.bf16 %v1688, %v1688
        %1690 = vrot.lane.b32.xlu0 %v1149, 40
        %v1691 = vpop.permute.xlu0 %1690
        %v1693 = vsel %vm1153, %v1689, 0
        %v1696 = vsel %vm1217, %v1691, 0
        %1698 = vmatprep.subr.bf16.mxu0 0
        %1699 = vmatpush1.bf16.msra.mxu0 %v1696
        %1700 = vmatprep.subr.bf16.mxu0 0
        %1701 = vmatpush1.bf16.msra.mxu0 0
        %1702 = vmatprep.subr.bf16.mxu0 0
        %1703 = vmatpush1.bf16.msra.mxu0 0
        %1704 = vmatprep.subr.bf16.mxu0 0
        %1705 = vmatpush1.bf16.msra.mxu0 0
        %1706 = vmatprep.subr.bf16.mxu0 0
        %1707 = vmatpush1.bf16.msra.mxu0 0
        %1708 = vmatprep.subr.bf16.mxu0 0
        %1709 = vmatpush1.bf16.msra.mxu0 0
        %1710 = vmatprep.subr.bf16.mxu0 0
        %1711 = vmatpush1.bf16.msra.mxu0 0
        %1712 = vmatprep.subr.bf16.mxu0 0
        %1713 = vmatpush1.bf16.msra.mxu0 0
        %1714 = vmatprep.subr.bf16.mxu0 0
        %1715 = vmatpush1.bf16.msra.mxu0 0
        %1716 = vmatprep.subr.bf16.mxu0 0
        %1717 = vmatpush1.bf16.msra.mxu0 0
        %1718 = vmatprep.subr.bf16.mxu0 0
        %1719 = vmatpush1.bf16.msra.mxu0 0
        %1720 = vmatprep.subr.bf16.mxu0 0
        %1721 = vmatpush1.bf16.msra.mxu0 0
        %1722 = vmatprep.subr.bf16.mxu0 0
        %1723 = vmatpush1.bf16.msra.mxu0 0
        %1724 = vmatprep.subr.bf16.mxu0 0
        %1725 = vmatpush1.bf16.msra.mxu0 0
        %1726 = vmatprep.subr.bf16.mxu0 0
        %1727 = vmatpush1.bf16.msra.mxu0 0
        %1728 = vmatprep.subr.bf16.mxu0 0
        %1729 = vmatpush1.bf16.msra.mxu0 0
        %1730 = vmatprep.mubr.bf16.mxu0 0
        %1731 = vmatmul.mubr.bf16.gmra.mrb[0].mxu0 %v1693
        %v1732 = vpop.f32.mrb[0].mxu0
        %v1733 = vadd.f32 0.0, %v1732
        %v1734 = vpop.f32.mrb[0].mxu0
        %v1735 = vpop.f32.mrb[0].mxu0
        %v1736 = vpop.f32.mrb[0].mxu0
        %1737 = vdwg.mxu0
        %v1738 = vpack.c.bf16 %v1733, %v1733
        %s1739 = scalar_lea.vmem %s9, 12
        %v1740 = vld [vmem:[%s1739] sm:$0xf]
        %v1742 = vsel %vm1153, %v1738, 0
        %v1745 = vsel %vm1217, %v1740, 0
        %1747 = vmatprep.subr.bf16.mxu0 0
        %1748 = vmatpush1.bf16.msra.mxu0 %v1745
        %1749 = vmatprep.subr.bf16.mxu0 0
        %1750 = vmatpush1.bf16.msra.mxu0 0
        %1751 = vmatprep.subr.bf16.mxu0 0
        %1752 = vmatpush1.bf16.msra.mxu0 0
        %1753 = vmatprep.subr.bf16.mxu0 0
        %1754 = vmatpush1.bf16.msra.mxu0 0
        %1755 = vmatprep.subr.bf16.mxu0 0
        %1756 = vmatpush1.bf16.msra.mxu0 0
        %1757 = vmatprep.subr.bf16.mxu0 0
        %1758 = vmatpush1.bf16.msra.mxu0 0
        %1759 = vmatprep.subr.bf16.mxu0 0
        %1760 = vmatpush1.bf16.msra.mxu0 0
        %1761 = vmatprep.subr.bf16.mxu0 0
        %1762 = vmatpush1.bf16.msra.mxu0 0
        %1763 = vmatprep.subr.bf16.mxu0 0
        %1764 = vmatpush1.bf16.msra.mxu0 0
        %1765 = vmatprep.subr.bf16.mxu0 0
        %1766 = vmatpush1.bf16.msra.mxu0 0
        %1767 = vmatprep.subr.bf16.mxu0 0
        %1768 = vmatpush1.bf16.msra.mxu0 0
        %1769 = vmatprep.subr.bf16.mxu0 0
        %1770 = vmatpush1.bf16.msra.mxu0 0
        %1771 = vmatprep.subr.bf16.mxu0 0
        %1772 = vmatpush1.bf16.msra.mxu0 0
        %1773 = vmatprep.subr.bf16.mxu0 0
        %1774 = vmatpush1.bf16.msra.mxu0 0
        %1775 = vmatprep.subr.bf16.mxu0 0
        %1776 = vmatpush1.bf16.msra.mxu0 0
        %1777 = vmatprep.subr.bf16.mxu0 0
        %1778 = vmatpush1.bf16.msra.mxu0 0
        %1779 = vmatprep.mubr.bf16.mxu0 0
        %1780 = vmatmul.mubr.bf16.gmra.mrb[0].mxu0 %v1742
        %v1781 = vpop.f32.mrb[0].mxu0
        %v1782 = vadd.f32 0.0, %v1781
        %v1783 = vpop.f32.mrb[0].mxu0
        %v1784 = vpop.f32.mrb[0].mxu0
        %v1785 = vpop.f32.mrb[0].mxu0
        %1786 = vdwg.mxu0
        %v1787 = vadd.f32 %v1627, %v1782
        %v1788 = vld [vmem:[#allocation13] sm:$0x1]
        %v1790 = vlaneseq
        %v1791 = vshrl.u32 %v1790, 7
        %v1792 = vsub.s32 0, %v1791
        %v1793 = vrot.slane %v1788, %v1792
        %v1795 = vadd.f32 %v1787, %v1793
        %v1796 = vadd.f32 %v1039, %v1795
        %v1797 = vld [vmem:[#allocation14] sm:$0x1]
        %v1798 = vld [vmem:[#allocation16] sm:$0x1]
        %v1799 = vsel %vm1053, %v1796, 0.0
        %1800 = vadd.xlane.f32.xlu0 %v1799
        %v1801 = vpop.xlane.xlu0 %1800
        %v1802 = vmul.f32 %v1801, %v1057
        %v1803 = vsub.f32 %v1796, %v1802
        %v1804 = vmul.f32 %v1803, %v1803
        %v1805 = vsel %vm1053, %v1804, 0.0
        %1806 = vadd.xlane.f32.xlu0 %v1805
        %v1807 = vpop.xlane.xlu0 %1806
        %v1808 = vmul.f32 %v1807, %v1057
        %v1809 = vadd.f32 %v1808, 1e-05
        %v1810 = vrsqrt.pop %v1809
        %v1811 = vmul.f32 %v1803, %v1810
        %v1813 = vlaneseq
        %v1814 = vshrl.u32 %v1813, 7
        %v1815 = vsub.s32 0, %v1814
        %v1816 = vrot.slane %v1797, %v1815
        %v1818 = vmul.f32 %v1811, %v1816
        %v1820 = vlaneseq
        %v1821 = vshrl.u32 %v1820, 7
        %v1822 = vsub.s32 0, %v1821
        %v1823 = vrot.slane %v1798, %v1822
        %v1825 = vadd.f32 %v1818, %v1823
        %v1826 = vld [vmem:[%s13] sm:$0xf]
        %v1827 = vld [vmem:[%s13 + $0x4] sm:$0xf]
        %v1828 = vld [vmem:[%s13 + $0x8] sm:$0xf]
        %v1829 = vld [vmem:[%s13 + $0xc] sm:$0xf]
        %v1830 = vpack.c.bf16 %v1825, %v1825
        %v1831 = vld [vmem:[#allocation17] sm:$0x1]
        %v1833 = vlaneseq
        %v1834 = vshrl.u32 %v1833, 7
        %v1835 = vsub.s32 0, %v1834
        %v1836 = vrot.slane %v1831, %v1835
        %v1842 = vunpack.c.l.b16 %v1826
        %v1843 = vunpack.c.l.b16 %v1827
        %v1844 = vunpack.c.l.b16 %v1828
        %v1845 = vunpack.c.l.b16 %v1829
        %v1846 = vpack.c.b16 %v1843, %v1842
        %v1847 = vpack.c.b16 %v1845, %v1844
        %v1851 = vsel %vm1053, %v1830, 0
        %1853 = vmatprep.subr.bf16.mxu0 0
        %1854 = vmatpush1.bf16.msra.mxu0 %v1846
        %1855 = vmatprep.subr.bf16.mxu0 0
        %1856 = vmatpush1.bf16.msra.mxu0 %v1847
        %1857 = vmatprep.subr.bf16.mxu0 0
        %1858 = vmatpush1.bf16.msra.mxu0 0
        %1859 = vmatprep.subr.bf16.mxu0 0
        %1860 = vmatpush1.bf16.msra.mxu0 0
        %1861 = vmatprep.subr.bf16.mxu0 0
        %1862 = vmatpush1.bf16.msra.mxu0 0
        %1863 = vmatprep.subr.bf16.mxu0 0
        %1864 = vmatpush1.bf16.msra.mxu0 0
        %1865 = vmatprep.subr.bf16.mxu0 0
        %1866 = vmatpush1.bf16.msra.mxu0 0
        %1867 = vmatprep.subr.bf16.mxu0 0
        %1868 = vmatpush1.bf16.msra.mxu0 0
        %1869 = vmatprep.subr.bf16.mxu0 0
        %1870 = vmatpush1.bf16.msra.mxu0 0
        %1871 = vmatprep.subr.bf16.mxu0 0
        %1872 = vmatpush1.bf16.msra.mxu0 0
        %1873 = vmatprep.subr.bf16.mxu0 0
        %1874 = vmatpush1.bf16.msra.mxu0 0
        %1875 = vmatprep.subr.bf16.mxu0 0
        %1876 = vmatpush1.bf16.msra.mxu0 0
        %1877 = vmatprep.subr.bf16.mxu0 0
        %1878 = vmatpush1.bf16.msra.mxu0 0
        %1879 = vmatprep.subr.bf16.mxu0 0
        %1880 = vmatpush1.bf16.msra.mxu0 0
        %1881 = vmatprep.subr.bf16.mxu0 0
        %1882 = vmatpush1.bf16.msra.mxu0 0
        %1883 = vmatprep.subr.bf16.mxu0 0
        %1884 = vmatpush1.bf16.msra.mxu0 0
        %1885 = vmatprep.mubr.bf16.mxu0 0
        %1886 = vmatmul.mubr.bf16.gmra.mrb[0].mxu0 %v1851
        %v1887 = vpop.f32.mrb[0].mxu0
        %v1888 = vadd.f32 %v1836, %v1887
        %v1889 = vpop.f32.mrb[0].mxu0
        %v1890 = vpop.f32.mrb[0].mxu0
        %v1891 = vpop.f32.mrb[0].mxu0
        %1892 = vdwg.mxu0
        %v1893 = vld [vmem:[#allocation19] sm:$0xf]
        %v1894 = vld [vmem:[#allocation19 + $0x4] sm:$0xf]
        %v1895 = vld [vmem:[#allocation19 + $0x8] sm:$0xf]
        %v1896 = vld [vmem:[#allocation19 + $0xc] sm:$0xf]
        %v1897 = vpack.c.bf16 %v1040, %v1040
        %v1898 = vld [vmem:[#allocation20] sm:$0x1]
        %v1900 = vlaneseq
        %v1901 = vshrl.u32 %v1900, 7
        %v1902 = vsub.s32 0, %v1901
        %v1903 = vrot.slane %v1898, %v1902
        %v1909 = vunpack.c.l.b16 %v1893
        %v1910 = vunpack.c.l.b16 %v1894
        %v1911 = vunpack.c.l.b16 %v1895
        %v1912 = vunpack.c.l.b16 %v1896
        %v1913 = vpack.c.b16 %v1910, %v1909
        %v1914 = vpack.c.b16 %v1912, %v1911
        %v1918 = vsel %vm1053, %v1897, 0
        %1920 = vmatprep.subr.bf16.mxu0 0
        %1921 = vmatpush1.bf16.msra.mxu0 %v1913
        %1922 = vmatprep.subr.bf16.mxu0 0
        %1923 = vmatpush1.bf16.msra.mxu0 %v1914
        %1924 = vmatprep.subr.bf16.mxu0 0
        %1925 = vmatpush1.bf16.msra.mxu0 0
        %1926 = vmatprep.subr.bf16.mxu0 0
        %1927 = vmatpush1.bf16.msra.mxu0 0
        %1928 = vmatprep.subr.bf16.mxu0 0
        %1929 = vmatpush1.bf16.msra.mxu0 0
        %1930 = vmatprep.subr.bf16.mxu0 0
        %1931 = vmatpush1.bf16.msra.mxu0 0
        %1932 = vmatprep.subr.bf16.mxu0 0
        %1933 = vmatpush1.bf16.msra.mxu0 0
        %1934 = vmatprep.subr.bf16.mxu0 0
        %1935 = vmatpush1.bf16.msra.mxu0 0
        %1936 = vmatprep.subr.bf16.mxu0 0
        %1937 = vmatpush1.bf16.msra.mxu0 0
        %1938 = vmatprep.subr.bf16.mxu0 0
        %1939 = vmatpush1.bf16.msra.mxu0 0
        %1940 = vmatprep.subr.bf16.mxu0 0
        %1941 = vmatpush1.bf16.msra.mxu0 0
        %1942 = vmatprep.subr.bf16.mxu0 0
        %1943 = vmatpush1.bf16.msra.mxu0 0
        %1944 = vmatprep.subr.bf16.mxu0 0
        %1945 = vmatpush1.bf16.msra.mxu0 0
        %1946 = vmatprep.subr.bf16.mxu0 0
        %1947 = vmatpush1.bf16.msra.mxu0 0
        %1948 = vmatprep.subr.bf16.mxu0 0
        %1949 = vmatpush1.bf16.msra.mxu0 0
        %1950 = vmatprep.subr.bf16.mxu0 0
        %1951 = vmatpush1.bf16.msra.mxu0 0
        %1952 = vmatprep.mubr.bf16.mxu0 0
        %1953 = vmatmul.mubr.bf16.gmra.mrb[0].mxu0 %v1918
        %v1954 = vpop.f32.mrb[0].mxu0
        %v1955 = vadd.f32 %v1903, %v1954
        %v1956 = vpop.f32.mrb[0].mxu0
        %v1957 = vpop.f32.mrb[0].mxu0
        %v1958 = vpop.f32.mrb[0].mxu0
        %1959 = vdwg.mxu0
        %v1960 = vpack.c.bf16 %v1888, %v1888
        %v1961 = vpack.c.bf16 %v1955, %v1955
        %v1963 = vlaneseq
        %v1964 = vshrl.u32 %v1963, 7
        %v1965 = vsub.s32 0, %v1964
        %v1966 = vrot.slane %v1050, %v1965
        %v1969 = vsel %vm1153, %v1960, 0
        %v1972 = vsel %vm1153, %v1961, 0
        %1974 = vmatprep.subr.bf16.mxu0 0
        %1975 = vmatpush1.bf16.xpose.msra.mxu0 %v1972
        %1976 = vmatprep.subr.bf16.mxu0 0
        %1977 = vmatpush1.bf16.xpose.msra.mxu0 0
        %1978 = vmatprep.subr.bf16.mxu0 0
        %1979 = vmatpush1.bf16.xpose.msra.mxu0 0
        %1980 = vmatprep.subr.bf16.mxu0 0
        %1981 = vmatpush1.bf16.xpose.msra.mxu0 0
        %1982 = vmatprep.subr.bf16.mxu0 0
        %1983 = vmatpush1.bf16.xpose.msra.mxu0 0
        %1984 = vmatprep.subr.bf16.mxu0 0
        %1985 = vmatpush1.bf16.xpose.msra.mxu0 0
        %1986 = vmatprep.subr.bf16.mxu0 0
        %1987 = vmatpush1.bf16.xpose.msra.mxu0 0
        %1988 = vmatprep.subr.bf16.mxu0 0
        %1989 = vmatpush1.bf16.xpose.msra.mxu0 0
        %1990 = vmatprep.subr.bf16.mxu0 0
        %1991 = vmatpush1.bf16.xpose.msra.mxu0 0
        %1992 = vmatprep.subr.bf16.mxu0 0
        %1993 = vmatpush1.bf16.xpose.msra.mxu0 0
        %1994 = vmatprep.subr.bf16.mxu0 0
        %1995 = vmatpush1.bf16.xpose.msra.mxu0 0
        %1996 = vmatprep.subr.bf16.mxu0 0
        %1997 = vmatpush1.bf16.xpose.msra.mxu0 0
        %1998 = vmatprep.subr.bf16.mxu0 0
        %1999 = vmatpush1.bf16.xpose.msra.mxu0 0
        %2000 = vmatprep.subr.bf16.mxu0 0
        %2001 = vmatpush1.bf16.xpose.msra.mxu0 0
        %2002 = vmatprep.subr.bf16.mxu0 0
        %2003 = vmatpush1.bf16.xpose.msra.mxu0 0
        %2004 = vmatprep.subr.bf16.mxu0 0
        %2005 = vmatpush1.bf16.xpose.msra.mxu0 0
        %2006 = vmatprep.mubr.bf16.mxu0 0
        %2007 = vmatmul.mubr.bf16.gmra.mrb[0].mxu0 %v1969
        %v2008 = vpop.f32.mrb[0].mxu0
        %v2009 = vadd.f32 %v1966, %v2008
        %v2010 = vpop.f32.mrb[0].mxu0
        %v2011 = vpop.f32.mrb[0].mxu0
        %v2012 = vpop.f32.mrb[0].mxu0
        %2013 = vdwg.mxu0
        %v2014 = vsel %vm1153, %v2009, -inf
        %2015 = vmax.xlane.f32.xlu0 %v2014
        %v2016 = vpop.xlane.xlu0 %2015
        %v2017 = vsub.f32 %v2009, %v2016
        %v2018 = vmul.f32 %v2017, 1.442695
        %v2019 = vpow.pop %v2018
        %v2020 = vsel %vm1153, %v2019, 0.0
        %2021 = vadd.xlane.f32.xlu0 %v2020
        %v2022 = vpop.xlane.xlu0 %2021
        %v2023 = vrcp.pop %v2022
        %v2024 = vmul.f32 %v2019, %v2023
        %v2025 = vpack.c.bf16 %v2024, %v2024
        %2027 = vrot.lane.b32.xlu0 %v1961, 96
        %v2028 = vpop.permute.xlu0 %2027
        %v2030 = vsel %vm1153, %v2025, 0
        %v2033 = vsel %vm1217, %v2028, 0
        %2035 = vmatprep.subr.bf16.mxu0 0
        %2036 = vmatpush1.bf16.msra.mxu0 %v2033
        %2037 = vmatprep.subr.bf16.mxu0 0
        %2038 = vmatpush1.bf16.msra.mxu0 0
        %2039 = vmatprep.subr.bf16.mxu0 0
        %2040 = vmatpush1.bf16.msra.mxu0 0
        %2041 = vmatprep.subr.bf16.mxu0 0
        %2042 = vmatpush1.bf16.msra.mxu0 0
        %2043 = vmatprep.subr.bf16.mxu0 0
        %2044 = vmatpush1.bf16.msra.mxu0 0
        %2045 = vmatprep.subr.bf16.mxu0 0
        %2046 = vmatpush1.bf16.msra.mxu0 0
        %2047 = vmatprep.subr.bf16.mxu0 0
        %2048 = vmatpush1.bf16.msra.mxu0 0
        %2049 = vmatprep.subr.bf16.mxu0 0
        %2050 = vmatpush1.bf16.msra.mxu0 0
        %2051 = vmatprep.subr.bf16.mxu0 0
        %2052 = vmatpush1.bf16.msra.mxu0 0
        %2053 = vmatprep.subr.bf16.mxu0 0
        %2054 = vmatpush1.bf16.msra.mxu0 0
        %2055 = vmatprep.subr.bf16.mxu0 0
        %2056 = vmatpush1.bf16.msra.mxu0 0
        %2057 = vmatprep.subr.bf16.mxu0 0
        %2058 = vmatpush1.bf16.msra.mxu0 0
        %2059 = vmatprep.subr.bf16.mxu0 0
        %2060 = vmatpush1.bf16.msra.mxu0 0
        %2061 = vmatprep.subr.bf16.mxu0 0
        %2062 = vmatpush1.bf16.msra.mxu0 0
        %2063 = vmatprep.subr.bf16.mxu0 0
        %2064 = vmatpush1.bf16.msra.mxu0 0
        %2065 = vmatprep.subr.bf16.mxu0 0
        %2066 = vmatpush1.bf16.msra.mxu0 0
        %2067 = vmatprep.mubr.bf16.mxu0 0
        %2068 = vmatmul.mubr.bf16.gmra.mrb[0].mxu0 %v2030
        %v2069 = vpop.f32.mrb[0].mxu0
        %v2070 = vadd.f32 0.0, %v2069
        %v2071 = vpop.f32.mrb[0].mxu0
        %v2072 = vpop.f32.mrb[0].mxu0
        %v2073 = vpop.f32.mrb[0].mxu0
        %2074 = vdwg.mxu0
        %v2075 = vpack.c.bf16 %v2070, %v2070
        %v2076 = vld [vmem:[%s17] sm:$0xf]
        %2078 = vrot.lane.b32.xlu0 %v1960, 120
        %v2079 = vpop.permute.xlu0 %2078
        %2080 = vrot.lane.b32.xlu0 %v1961, 120
        %v2081 = vpop.permute.xlu0 %2080
        %v2083 = vsel %vm1153, %v2079, 0
        %v2086 = vsel %vm1153, %v2081, 0
        %2088 = vmatprep.subr.bf16.mxu0 0
        %2089 = vmatpush1.bf16.xpose.msra.mxu0 %v2086
        %2090 = vmatprep.subr.bf16.mxu0 0
        %2091 = vmatpush1.bf16.xpose.msra.mxu0 0
        %2092 = vmatprep.subr.bf16.mxu0 0
        %2093 = vmatpush1.bf16.xpose.msra.mxu0 0
        %2094 = vmatprep.subr.bf16.mxu0 0
        %2095 = vmatpush1.bf16.xpose.msra.mxu0 0
        %2096 = vmatprep.subr.bf16.mxu0 0
        %2097 = vmatpush1.bf16.xpose.msra.mxu0 0
        %2098 = vmatprep.subr.bf16.mxu0 0
        %2099 = vmatpush1.bf16.xpose.msra.mxu0 0
        %2100 = vmatprep.subr.bf16.mxu0 0
        %2101 = vmatpush1.bf16.xpose.msra.mxu0 0
        %2102 = vmatprep.subr.bf16.mxu0 0
        %2103 = vmatpush1.bf16.xpose.msra.mxu0 0
        %2104 = vmatprep.subr.bf16.mxu0 0
        %2105 = vmatpush1.bf16.xpose.msra.mxu0 0
        %2106 = vmatprep.subr.bf16.mxu0 0
        %2107 = vmatpush1.bf16.xpose.msra.mxu0 0
        %2108 = vmatprep.subr.bf16.mxu0 0
        %2109 = vmatpush1.bf16.xpose.msra.mxu0 0
        %2110 = vmatprep.subr.bf16.mxu0 0
        %2111 = vmatpush1.bf16.xpose.msra.mxu0 0
        %2112 = vmatprep.subr.bf16.mxu0 0
        %2113 = vmatpush1.bf16.xpose.msra.mxu0 0
        %2114 = vmatprep.subr.bf16.mxu0 0
        %2115 = vmatpush1.bf16.xpose.msra.mxu0 0
        %2116 = vmatprep.subr.bf16.mxu0 0
        %2117 = vmatpush1.bf16.xpose.msra.mxu0 0
        %2118 = vmatprep.subr.bf16.mxu0 0
        %2119 = vmatpush1.bf16.xpose.msra.mxu0 0
        %2120 = vmatprep.mubr.bf16.mxu0 0
        %2121 = vmatmul.mubr.bf16.gmra.mrb[0].mxu0 %v2083
        %v2122 = vpop.f32.mrb[0].mxu0
        %v2123 = vadd.f32 %v1966, %v2122
        %v2124 = vpop.f32.mrb[0].mxu0
        %v2125 = vpop.f32.mrb[0].mxu0
        %v2126 = vpop.f32.mrb[0].mxu0
        %2127 = vdwg.mxu0
        %v2128 = vsel %vm1153, %v2123, -inf
        %2129 = vmax.xlane.f32.xlu0 %v2128
        %v2130 = vpop.xlane.xlu0 %2129
        %v2131 = vsub.f32 %v2123, %v2130
        %v2132 = vmul.f32 %v2131, 1.442695
        %v2133 = vpow.pop %v2132
        %v2134 = vsel %vm1153, %v2133, 0.0
        %2135 = vadd.xlane.f32.xlu0 %v2134
        %v2136 = vpop.xlane.xlu0 %2135
        %v2137 = vrcp.pop %v2136
        %v2138 = vmul.f32 %v2133, %v2137
        %v2139 = vpack.c.bf16 %v2138, %v2138
        %2140 = vrot.lane.b32.xlu0 %v1961, 88
        %v2141 = vpop.permute.xlu0 %2140
        %v2143 = vsel %vm1153, %v2139, 0
        %v2146 = vsel %vm1217, %v2141, 0
        %2148 = vmatprep.subr.bf16.mxu0 0
        %2149 = vmatpush1.bf16.msra.mxu0 %v2146
        %2150 = vmatprep.subr.bf16.mxu0 0
        %2151 = vmatpush1.bf16.msra.mxu0 0
        %2152 = vmatprep.subr.bf16.mxu0 0
        %2153 = vmatpush1.bf16.msra.mxu0 0
        %2154 = vmatprep.subr.bf16.mxu0 0
        %2155 = vmatpush1.bf16.msra.mxu0 0
        %2156 = vmatprep.subr.bf16.mxu0 0
        %2157 = vmatpush1.bf16.msra.mxu0 0
        %2158 = vmatprep.subr.bf16.mxu0 0
        %2159 = vmatpush1.bf16.msra.mxu0 0
        %2160 = vmatprep.subr.bf16.mxu0 0
        %2161 = vmatpush1.bf16.msra.mxu0 0
        %2162 = vmatprep.subr.bf16.mxu0 0
        %2163 = vmatpush1.bf16.msra.mxu0 0
        %2164 = vmatprep.subr.bf16.mxu0 0
        %2165 = vmatpush1.bf16.msra.mxu0 0
        %2166 = vmatprep.subr.bf16.mxu0 0
        %2167 = vmatpush1.bf16.msra.mxu0 0
        %2168 = vmatprep.subr.bf16.mxu0 0
        %2169 = vmatpush1.bf16.msra.mxu0 0
        %2170 = vmatprep.subr.bf16.mxu0 0
        %2171 = vmatpush1.bf16.msra.mxu0 0
        %2172 = vmatprep.subr.bf16.mxu0 0
        %2173 = vmatpush1.bf16.msra.mxu0 0
        %2174 = vmatprep.subr.bf16.mxu0 0
        %2175 = vmatpush1.bf16.msra.mxu0 0
        %2176 = vmatprep.subr.bf16.mxu0 0
        %2177 = vmatpush1.bf16.msra.mxu0 0
        %2178 = vmatprep.subr.bf16.mxu0 0
        %2179 = vmatpush1.bf16.msra.mxu0 0
        %2180 = vmatprep.mubr.bf16.mxu0 0
        %2181 = vmatmul.mubr.bf16.gmra.mrb[0].mxu0 %v2143
        %v2182 = vpop.f32.mrb[0].mxu0
        %v2183 = vadd.f32 0.0, %v2182
        %v2184 = vpop.f32.mrb[0].mxu0
        %v2185 = vpop.f32.mrb[0].mxu0
        %v2186 = vpop.f32.mrb[0].mxu0
        %2187 = vdwg.mxu0
        %v2188 = vpack.c.bf16 %v2183, %v2183
        %s2189 = scalar_lea.vmem %s17, 4
        %v2190 = vld [vmem:[%s2189] sm:$0xf]
        %v2192 = vsel %vm1153, %v2188, 0
        %v2195 = vsel %vm1217, %v2190, 0
        %2197 = vmatprep.subr.bf16.mxu0 0
        %2198 = vmatpush1.bf16.msra.mxu0 %v2195
        %2199 = vmatprep.subr.bf16.mxu0 0
        %2200 = vmatpush1.bf16.msra.mxu0 0
        %2201 = vmatprep.subr.bf16.mxu0 0
        %2202 = vmatpush1.bf16.msra.mxu0 0
        %2203 = vmatprep.subr.bf16.mxu0 0
        %2204 = vmatpush1.bf16.msra.mxu0 0
        %2205 = vmatprep.subr.bf16.mxu0 0
        %2206 = vmatpush1.bf16.msra.mxu0 0
        %2207 = vmatprep.subr.bf16.mxu0 0
        %2208 = vmatpush1.bf16.msra.mxu0 0
        %2209 = vmatprep.subr.bf16.mxu0 0
        %2210 = vmatpush1.bf16.msra.mxu0 0
        %2211 = vmatprep.subr.bf16.mxu0 0
        %2212 = vmatpush1.bf16.msra.mxu0 0
        %2213 = vmatprep.subr.bf16.mxu0 0
        %2214 = vmatpush1.bf16.msra.mxu0 0
        %2215 = vmatprep.subr.bf16.mxu0 0
        %2216 = vmatpush1.bf16.msra.mxu0 0
        %2217 = vmatprep.subr.bf16.mxu0 0
        %2218 = vmatpush1.bf16.msra.mxu0 0
        %2219 = vmatprep.subr.bf16.mxu0 0
        %2220 = vmatpush1.bf16.msra.mxu0 0
        %2221 = vmatprep.subr.bf16.mxu0 0
        %2222 = vmatpush1.bf16.msra.mxu0 0
        %2223 = vmatprep.subr.bf16.mxu0 0
        %2224 = vmatpush1.bf16.msra.mxu0 0
        %2225 = vmatprep.subr.bf16.mxu0 0
        %2226 = vmatpush1.bf16.msra.mxu0 0
        %2227 = vmatprep.subr.bf16.mxu0 0
        %2228 = vmatpush1.bf16.msra.mxu0 0
        %2229 = vmatprep.mubr.bf16.mxu0 0
        %2230 = vmatmul.mubr.bf16.gmra.mrb[0].mxu0 %v2192
        %v2231 = vpop.f32.mrb[0].mxu0
        %v2232 = vadd.f32 0.0, %v2231
        %v2233 = vpop.f32.mrb[0].mxu0
        %v2234 = vpop.f32.mrb[0].mxu0
        %v2235 = vpop.f32.mrb[0].mxu0
        %2236 = vdwg.mxu0
        %v2238 = vsel %vm1153, %v2075, 0
        %v2241 = vsel %vm1217, %v2076, 0
        %2243 = vmatprep.subr.bf16.mxu0 0
        %2244 = vmatpush1.bf16.msra.mxu0 %v2241
        %2245 = vmatprep.subr.bf16.mxu0 0
        %2246 = vmatpush1.bf16.msra.mxu0 0
        %2247 = vmatprep.subr.bf16.mxu0 0
        %2248 = vmatpush1.bf16.msra.mxu0 0
        %2249 = vmatprep.subr.bf16.mxu0 0
        %2250 = vmatpush1.bf16.msra.mxu0 0
        %2251 = vmatprep.subr.bf16.mxu0 0
        %2252 = vmatpush1.bf16.msra.mxu0 0
        %2253 = vmatprep.subr.bf16.mxu0 0
        %2254 = vmatpush1.bf16.msra.mxu0 0
        %2255 = vmatprep.subr.bf16.mxu0 0
        %2256 = vmatpush1.bf16.msra.mxu0 0
        %2257 = vmatprep.subr.bf16.mxu0 0
        %2258 = vmatpush1.bf16.msra.mxu0 0
        %2259 = vmatprep.subr.bf16.mxu0 0
        %2260 = vmatpush1.bf16.msra.mxu0 0
        %2261 = vmatprep.subr.bf16.mxu0 0
        %2262 = vmatpush1.bf16.msra.mxu0 0
        %2263 = vmatprep.subr.bf16.mxu0 0
        %2264 = vmatpush1.bf16.msra.mxu0 0
        %2265 = vmatprep.subr.bf16.mxu0 0
        %2266 = vmatpush1.bf16.msra.mxu0 0
        %2267 = vmatprep.subr.bf16.mxu0 0
        %2268 = vmatpush1.bf16.msra.mxu0 0
        %2269 = vmatprep.subr.bf16.mxu0 0
        %2270 = vmatpush1.bf16.msra.mxu0 0
        %2271 = vmatprep.subr.bf16.mxu0 0
        %2272 = vmatpush1.bf16.msra.mxu0 0
        %2273 = vmatprep.subr.bf16.mxu0 0
        %2274 = vmatpush1.bf16.msra.mxu0 0
        %2275 = vmatprep.mubr.bf16.mxu0 0
        %2276 = vmatmul.mubr.bf16.gmra.mrb[0].mxu0 %v2238
        %v2277 = vpop.f32.mrb[0].mxu0
        %v2278 = vadd.f32 %v2232, %v2277
        %v2279 = vpop.f32.mrb[0].mxu0
        %v2280 = vpop.f32.mrb[0].mxu0
        %v2281 = vpop.f32.mrb[0].mxu0
        %2282 = vdwg.mxu0
        %2283 = vrot.lane.b32.xlu0 %v1960, 112
        %v2284 = vpop.permute.xlu0 %2283
        %2285 = vrot.lane.b32.xlu0 %v1961, 112
        %v2286 = vpop.permute.xlu0 %2285
        %v2288 = vsel %vm1153, %v2284, 0
        %v2291 = vsel %vm1153, %v2286, 0
        %2293 = vmatprep.subr.bf16.mxu0 0
        %2294 = vmatpush1.bf16.xpose.msra.mxu0 %v2291
        %2295 = vmatprep.subr.bf16.mxu0 0
        %2296 = vmatpush1.bf16.xpose.msra.mxu0 0
        %2297 = vmatprep.subr.bf16.mxu0 0
        %2298 = vmatpush1.bf16.xpose.msra.mxu0 0
        %2299 = vmatprep.subr.bf16.mxu0 0
        %2300 = vmatpush1.bf16.xpose.msra.mxu0 0
        %2301 = vmatprep.subr.bf16.mxu0 0
        %2302 = vmatpush1.bf16.xpose.msra.mxu0 0
        %2303 = vmatprep.subr.bf16.mxu0 0
        %2304 = vmatpush1.bf16.xpose.msra.mxu0 0
        %2305 = vmatprep.subr.bf16.mxu0 0
        %2306 = vmatpush1.bf16.xpose.msra.mxu0 0
        %2307 = vmatprep.subr.bf16.mxu0 0
        %2308 = vmatpush1.bf16.xpose.msra.mxu0 0
        %2309 = vmatprep.subr.bf16.mxu0 0
        %2310 = vmatpush1.bf16.xpose.msra.mxu0 0
        %2311 = vmatprep.subr.bf16.mxu0 0
        %2312 = vmatpush1.bf16.xpose.msra.mxu0 0
        %2313 = vmatprep.subr.bf16.mxu0 0
        %2314 = vmatpush1.bf16.xpose.msra.mxu0 0
        %2315 = vmatprep.subr.bf16.mxu0 0
        %2316 = vmatpush1.bf16.xpose.msra.mxu0 0
        %2317 = vmatprep.subr.bf16.mxu0 0
        %2318 = vmatpush1.bf16.xpose.msra.mxu0 0
        %2319 = vmatprep.subr.bf16.mxu0 0
        %2320 = vmatpush1.bf16.xpose.msra.mxu0 0
        %2321 = vmatprep.subr.bf16.mxu0 0
        %2322 = vmatpush1.bf16.xpose.msra.mxu0 0
        %2323 = vmatprep.subr.bf16.mxu0 0
        %2324 = vmatpush1.bf16.xpose.msra.mxu0 0
        %2325 = vmatprep.mubr.bf16.mxu0 0
        %2326 = vmatmul.mubr.bf16.gmra.mrb[0].mxu0 %v2288
        %v2327 = vpop.f32.mrb[0].mxu0
        %v2328 = vadd.f32 %v1966, %v2327
        %v2329 = vpop.f32.mrb[0].mxu0
        %v2330 = vpop.f32.mrb[0].mxu0
        %v2331 = vpop.f32.mrb[0].mxu0
        %2332 = vdwg.mxu0
        %v2333 = vsel %vm1153, %v2328, -inf
        %2334 = vmax.xlane.f32.xlu0 %v2333
        %v2335 = vpop.xlane.xlu0 %2334
        %v2336 = vsub.f32 %v2328, %v2335
        %v2337 = vmul.f32 %v2336, 1.442695
        %v2338 = vpow.pop %v2337
        %v2339 = vsel %vm1153, %v2338, 0.0
        %2340 = vadd.xlane.f32.xlu0 %v2339
        %v2341 = vpop.xlane.xlu0 %2340
        %v2342 = vrcp.pop %v2341
        %v2343 = vmul.f32 %v2338, %v2342
        %v2344 = vpack.c.bf16 %v2343, %v2343
        %2345 = vrot.lane.b32.xlu0 %v1961, 80
        %v2346 = vpop.permute.xlu0 %2345
        %v2348 = vsel %vm1153, %v2344, 0
        %v2351 = vsel %vm1217, %v2346, 0
        %2353 = vmatprep.subr.bf16.mxu0 0
        %2354 = vmatpush1.bf16.msra.mxu0 %v2351
        %2355 = vmatprep.subr.bf16.mxu0 0
        %2356 = vmatpush1.bf16.msra.mxu0 0
        %2357 = vmatprep.subr.bf16.mxu0 0
        %2358 = vmatpush1.bf16.msra.mxu0 0
        %2359 = vmatprep.subr.bf16.mxu0 0
        %2360 = vmatpush1.bf16.msra.mxu0 0
        %2361 = vmatprep.subr.bf16.mxu0 0
        %2362 = vmatpush1.bf16.msra.mxu0 0
        %2363 = vmatprep.subr.bf16.mxu0 0
        %2364 = vmatpush1.bf16.msra.mxu0 0
        %2365 = vmatprep.subr.bf16.mxu0 0
        %2366 = vmatpush1.bf16.msra.mxu0 0
        %2367 = vmatprep.subr.bf16.mxu0 0
        %2368 = vmatpush1.bf16.msra.mxu0 0
        %2369 = vmatprep.subr.bf16.mxu0 0
        %2370 = vmatpush1.bf16.msra.mxu0 0
        %2371 = vmatprep.subr.bf16.mxu0 0
        %2372 = vmatpush1.bf16.msra.mxu0 0
        %2373 = vmatprep.subr.bf16.mxu0 0
        %2374 = vmatpush1.bf16.msra.mxu0 0
        %2375 = vmatprep.subr.bf16.mxu0 0
        %2376 = vmatpush1.bf16.msra.mxu0 0
        %2377 = vmatprep.subr.bf16.mxu0 0
        %2378 = vmatpush1.bf16.msra.mxu0 0
        %2379 = vmatprep.subr.bf16.mxu0 0
        %2380 = vmatpush1.bf16.msra.mxu0 0
        %2381 = vmatprep.subr.bf16.mxu0 0
        %2382 = vmatpush1.bf16.msra.mxu0 0
        %2383 = vmatprep.subr.bf16.mxu0 0
        %2384 = vmatpush1.bf16.msra.mxu0 0
        %2385 = vmatprep.mubr.bf16.mxu0 0
        %2386 = vmatmul.mubr.bf16.gmra.mrb[0].mxu0 %v2348
        %v2387 = vpop.f32.mrb[0].mxu0
        %v2388 = vadd.f32 0.0, %v2387
        %v2389 = vpop.f32.mrb[0].mxu0
        %v2390 = vpop.f32.mrb[0].mxu0
        %v2391 = vpop.f32.mrb[0].mxu0
        %2392 = vdwg.mxu0
        %v2393 = vpack.c.bf16 %v2388, %v2388
        %s2394 = scalar_lea.vmem %s17, 8
        %v2395 = vld [vmem:[%s2394] sm:$0xf]
        %v2397 = vsel %vm1153, %v2393, 0
        %v2400 = vsel %vm1217, %v2395, 0
        %2402 = vmatprep.subr.bf16.mxu0 0
        %2403 = vmatpush1.bf16.msra.mxu0 %v2400
        %2404 = vmatprep.subr.bf16.mxu0 0
        %2405 = vmatpush1.bf16.msra.mxu0 0
        %2406 = vmatprep.subr.bf16.mxu0 0
        %2407 = vmatpush1.bf16.msra.mxu0 0
        %2408 = vmatprep.subr.bf16.mxu0 0
        %2409 = vmatpush1.bf16.msra.mxu0 0
        %2410 = vmatprep.subr.bf16.mxu0 0
        %2411 = vmatpush1.bf16.msra.mxu0 0
        %2412 = vmatprep.subr.bf16.mxu0 0
        %2413 = vmatpush1.bf16.msra.mxu0 0
        %2414 = vmatprep.subr.bf16.mxu0 0
        %2415 = vmatpush1.bf16.msra.mxu0 0
        %2416 = vmatprep.subr.bf16.mxu0 0
        %2417 = vmatpush1.bf16.msra.mxu0 0
        %2418 = vmatprep.subr.bf16.mxu0 0
        %2419 = vmatpush1.bf16.msra.mxu0 0
        %2420 = vmatprep.subr.bf16.mxu0 0
        %2421 = vmatpush1.bf16.msra.mxu0 0
        %2422 = vmatprep.subr.bf16.mxu0 0
        %2423 = vmatpush1.bf16.msra.mxu0 0
        %2424 = vmatprep.subr.bf16.mxu0 0
        %2425 = vmatpush1.bf16.msra.mxu0 0
        %2426 = vmatprep.subr.bf16.mxu0 0
        %2427 = vmatpush1.bf16.msra.mxu0 0
        %2428 = vmatprep.subr.bf16.mxu0 0
        %2429 = vmatpush1.bf16.msra.mxu0 0
        %2430 = vmatprep.subr.bf16.mxu0 0
        %2431 = vmatpush1.bf16.msra.mxu0 0
        %2432 = vmatprep.subr.bf16.mxu0 0
        %2433 = vmatpush1.bf16.msra.mxu0 0
        %2434 = vmatprep.mubr.bf16.mxu0 0
        %2435 = vmatmul.mubr.bf16.gmra.mrb[0].mxu0 %v2397
        %v2436 = vpop.f32.mrb[0].mxu0
        %v2437 = vadd.f32 0.0, %v2436
        %v2438 = vpop.f32.mrb[0].mxu0
        %v2439 = vpop.f32.mrb[0].mxu0
        %v2440 = vpop.f32.mrb[0].mxu0
        %2441 = vdwg.mxu0
        %v2442 = vadd.f32 %v2278, %v2437
        %2443 = vrot.lane.b32.xlu0 %v1960, 104
        %v2444 = vpop.permute.xlu0 %2443
        %2445 = vrot.lane.b32.xlu0 %v1961, 104
        %v2446 = vpop.permute.xlu0 %2445
        %v2448 = vsel %vm1153, %v2444, 0
        %v2451 = vsel %vm1153, %v2446, 0
        %2453 = vmatprep.subr.bf16.mxu0 0
        %2454 = vmatpush1.bf16.xpose.msra.mxu0 %v2451
        %2455 = vmatprep.subr.bf16.mxu0 0
        %2456 = vmatpush1.bf16.xpose.msra.mxu0 0
        %2457 = vmatprep.subr.bf16.mxu0 0
        %2458 = vmatpush1.bf16.xpose.msra.mxu0 0
        %2459 = vmatprep.subr.bf16.mxu0 0
        %2460 = vmatpush1.bf16.xpose.msra.mxu0 0
        %2461 = vmatprep.subr.bf16.mxu0 0
        %2462 = vmatpush1.bf16.xpose.msra.mxu0 0
        %2463 = vmatprep.subr.bf16.mxu0 0
        %2464 = vmatpush1.bf16.xpose.msra.mxu0 0
        %2465 = vmatprep.subr.bf16.mxu0 0
        %2466 = vmatpush1.bf16.xpose.msra.mxu0 0
        %2467 = vmatprep.subr.bf16.mxu0 0
        %2468 = vmatpush1.bf16.xpose.msra.mxu0 0
        %2469 = vmatprep.subr.bf16.mxu0 0
        %2470 = vmatpush1.bf16.xpose.msra.mxu0 0
        %2471 = vmatprep.subr.bf16.mxu0 0
        %2472 = vmatpush1.bf16.xpose.msra.mxu0 0
        %2473 = vmatprep.subr.bf16.mxu0 0
        %2474 = vmatpush1.bf16.xpose.msra.mxu0 0
        %2475 = vmatprep.subr.bf16.mxu0 0
        %2476 = vmatpush1.bf16.xpose.msra.mxu0 0
        %2477 = vmatprep.subr.bf16.mxu0 0
        %2478 = vmatpush1.bf16.xpose.msra.mxu0 0
        %2479 = vmatprep.subr.bf16.mxu0 0
        %2480 = vmatpush1.bf16.xpose.msra.mxu0 0
        %2481 = vmatprep.subr.bf16.mxu0 0
        %2482 = vmatpush1.bf16.xpose.msra.mxu0 0
        %2483 = vmatprep.subr.bf16.mxu0 0
        %2484 = vmatpush1.bf16.xpose.msra.mxu0 0
        %2485 = vmatprep.mubr.bf16.mxu0 0
        %2486 = vmatmul.mubr.bf16.gmra.mrb[0].mxu0 %v2448
        %v2487 = vpop.f32.mrb[0].mxu0
        %v2488 = vadd.f32 %v1966, %v2487
        %v2489 = vpop.f32.mrb[0].mxu0
        %v2490 = vpop.f32.mrb[0].mxu0
        %v2491 = vpop.f32.mrb[0].mxu0
        %2492 = vdwg.mxu0
        %v2493 = vsel %vm1153, %v2488, -inf
        %2494 = vmax.xlane.f32.xlu0 %v2493
        %v2495 = vpop.xlane.xlu0 %2494
        %v2496 = vsub.f32 %v2488, %v2495
        %v2497 = vmul.f32 %v2496, 1.442695
        %v2498 = vpow.pop %v2497
        %v2499 = vsel %vm1153, %v2498, 0.0
        %2500 = vadd.xlane.f32.xlu0 %v2499
        %v2501 = vpop.xlane.xlu0 %2500
        %v2502 = vrcp.pop %v2501
        %v2503 = vmul.f32 %v2498, %v2502
        %v2504 = vpack.c.bf16 %v2503, %v2503
        %2505 = vrot.lane.b32.xlu0 %v1961, 72
        %v2506 = vpop.permute.xlu0 %2505
        %v2508 = vsel %vm1153, %v2504, 0
        %v2511 = vsel %vm1217, %v2506, 0
        %2513 = vmatprep.subr.bf16.mxu0 0
        %2514 = vmatpush1.bf16.msra.mxu0 %v2511
        %2515 = vmatprep.subr.bf16.mxu0 0
        %2516 = vmatpush1.bf16.msra.mxu0 0
        %2517 = vmatprep.subr.bf16.mxu0 0
        %2518 = vmatpush1.bf16.msra.mxu0 0
        %2519 = vmatprep.subr.bf16.mxu0 0
        %2520 = vmatpush1.bf16.msra.mxu0 0
        %2521 = vmatprep.subr.bf16.mxu0 0
        %2522 = vmatpush1.bf16.msra.mxu0 0
        %2523 = vmatprep.subr.bf16.mxu0 0
        %2524 = vmatpush1.bf16.msra.mxu0 0
        %2525 = vmatprep.subr.bf16.mxu0 0
        %2526 = vmatpush1.bf16.msra.mxu0 0
        %2527 = vmatprep.subr.bf16.mxu0 0
        %2528 = vmatpush1.bf16.msra.mxu0 0
        %2529 = vmatprep.subr.bf16.mxu0 0
        %2530 = vmatpush1.bf16.msra.mxu0 0
        %2531 = vmatprep.subr.bf16.mxu0 0
        %2532 = vmatpush1.bf16.msra.mxu0 0
        %2533 = vmatprep.subr.bf16.mxu0 0
        %2534 = vmatpush1.bf16.msra.mxu0 0
        %2535 = vmatprep.subr.bf16.mxu0 0
        %2536 = vmatpush1.bf16.msra.mxu0 0
        %2537 = vmatprep.subr.bf16.mxu0 0
        %2538 = vmatpush1.bf16.msra.mxu0 0
        %2539 = vmatprep.subr.bf16.mxu0 0
        %2540 = vmatpush1.bf16.msra.mxu0 0
        %2541 = vmatprep.subr.bf16.mxu0 0
        %2542 = vmatpush1.bf16.msra.mxu0 0
        %2543 = vmatprep.subr.bf16.mxu0 0
        %2544 = vmatpush1.bf16.msra.mxu0 0
        %2545 = vmatprep.mubr.bf16.mxu0 0
        %2546 = vmatmul.mubr.bf16.gmra.mrb[0].mxu0 %v2508
        %v2547 = vpop.f32.mrb[0].mxu0
        %v2548 = vadd.f32 0.0, %v2547
        %v2549 = vpop.f32.mrb[0].mxu0
        %v2550 = vpop.f32.mrb[0].mxu0
        %v2551 = vpop.f32.mrb[0].mxu0
        %2552 = vdwg.mxu0
        %v2553 = vpack.c.bf16 %v2548, %v2548
        %s2554 = scalar_lea.vmem %s17, 12
        %v2555 = vld [vmem:[%s2554] sm:$0xf]
        %v2557 = vsel %vm1153, %v2553, 0
        %v2560 = vsel %vm1217, %v2555, 0
        %2562 = vmatprep.subr.bf16.mxu0 0
        %2563 = vmatpush1.bf16.msra.mxu0 %v2560
        %2564 = vmatprep.subr.bf16.mxu0 0
        %2565 = vmatpush1.bf16.msra.mxu0 0
        %2566 = vmatprep.subr.bf16.mxu0 0
        %2567 = vmatpush1.bf16.msra.mxu0 0
        %2568 = vmatprep.subr.bf16.mxu0 0
        %2569 = vmatpush1.bf16.msra.mxu0 0
        %2570 = vmatprep.subr.bf16.mxu0 0
        %2571 = vmatpush1.bf16.msra.mxu0 0
        %2572 = vmatprep.subr.bf16.mxu0 0
        %2573 = vmatpush1.bf16.msra.mxu0 0
        %2574 = vmatprep.subr.bf16.mxu0 0
        %2575 = vmatpush1.bf16.msra.mxu0 0
        %2576 = vmatprep.subr.bf16.mxu0 0
        %2577 = vmatpush1.bf16.msra.mxu0 0
        %2578 = vmatprep.subr.bf16.mxu0 0
        %2579 = vmatpush1.bf16.msra.mxu0 0
        %2580 = vmatprep.subr.bf16.mxu0 0
        %2581 = vmatpush1.bf16.msra.mxu0 0
        %2582 = vmatprep.subr.bf16.mxu0 0
        %2583 = vmatpush1.bf16.msra.mxu0 0
        %2584 = vmatprep.subr.bf16.mxu0 0
        %2585 = vmatpush1.bf16.msra.mxu0 0
        %2586 = vmatprep.subr.bf16.mxu0 0
        %2587 = vmatpush1.bf16.msra.mxu0 0
        %2588 = vmatprep.subr.bf16.mxu0 0
        %2589 = vmatpush1.bf16.msra.mxu0 0
        %2590 = vmatprep.subr.bf16.mxu0 0
        %2591 = vmatpush1.bf16.msra.mxu0 0
        %2592 = vmatprep.subr.bf16.mxu0 0
        %2593 = vmatpush1.bf16.msra.mxu0 0
        %2594 = vmatprep.mubr.bf16.mxu0 0
        %2595 = vmatmul.mubr.bf16.gmra.mrb[0].mxu0 %v2557
        %v2596 = vpop.f32.mrb[0].mxu0
        %v2597 = vadd.f32 0.0, %v2596
        %v2598 = vpop.f32.mrb[0].mxu0
        %v2599 = vpop.f32.mrb[0].mxu0
        %v2600 = vpop.f32.mrb[0].mxu0
        %2601 = vdwg.mxu0
        %v2602 = vadd.f32 %v2442, %v2597
        %v2603 = vld [vmem:[%s18] sm:$0x1]
        %v2605 = vlaneseq
        %v2606 = vshrl.u32 %v2605, 7
        %v2607 = vsub.s32 0, %v2606
        %v2608 = vrot.slane %v2603, %v2607
        %v2610 = vadd.f32 %v2602, %v2608
        %v2611 = vadd.f32 %v1796, %v2610
        %v2612 = vld [vmem:[%s19] sm:$0x1]
        %v2613 = vld [vmem:[%s20] sm:$0x1]
        %v2614 = vsel %vm1053, %v2611, 0.0
        %2615 = vadd.xlane.f32.xlu0 %v2614
        %v2616 = vpop.xlane.xlu0 %2615
        %v2617 = vmul.f32 %v2616, %v1057
        %v2618 = vsub.f32 %v2611, %v2617
        %v2619 = vmul.f32 %v2618, %v2618
        %v2620 = vsel %vm1053, %v2619, 0.0
        %2621 = vadd.xlane.f32.xlu0 %v2620
        %v2622 = vpop.xlane.xlu0 %2621
        %v2623 = vmul.f32 %v2622, %v1057
        %v2624 = vadd.f32 %v2623, 1e-05
        %v2625 = vrsqrt.pop %v2624
        %v2626 = vmul.f32 %v2618, %v2625
        %v2628 = vlaneseq
        %v2629 = vshrl.u32 %v2628, 7
        %v2630 = vsub.s32 0, %v2629
        %v2631 = vrot.slane %v2612, %v2630
        %v2633 = vmul.f32 %v2626, %v2631
        %v2635 = vlaneseq
        %v2636 = vshrl.u32 %v2635, 7
        %v2637 = vsub.s32 0, %v2636
        %v2638 = vrot.slane %v2613, %v2637
        %v2640 = vadd.f32 %v2633, %v2638
        %v2641 = vld [vmem:[#allocation22] sm:$0xf]
        %v2642 = vld [vmem:[#allocation22 + $0x4] sm:$0xf]
        %v2643 = vld [vmem:[#allocation22 + $0x8] sm:$0xf]
        %v2644 = vld [vmem:[#allocation22 + $0xc] sm:$0xf]
        %v2645 = vpack.c.bf16 %v2640, %v2640
        %v2646 = vld [vmem:[%s22] sm:$0x1]
        %v2648 = vlaneseq
        %v2649 = vshrl.u32 %v2648, 7
        %v2650 = vsub.s32 0, %v2649
        %v2651 = vrot.slane %v2646, %v2650
        %v2657 = vunpack.c.l.b16 %v2641
        %v2658 = vunpack.c.l.b16 %v2642
        %v2659 = vunpack.c.l.b16 %v2643
        %v2660 = vunpack.c.l.b16 %v2644
        %v2661 = vpack.c.b16 %v2658, %v2657
        %v2662 = vpack.c.b16 %v2660, %v2659
        %v2666 = vsel %vm1053, %v2645, 0
        %2668 = vmatprep.subr.bf16.mxu0 0
        %2669 = vmatpush1.bf16.msra.mxu0 %v2661
        %2670 = vmatprep.subr.bf16.mxu0 0
        %2671 = vmatpush1.bf16.msra.mxu0 %v2662
        %2672 = vmatprep.subr.bf16.mxu0 0
        %2673 = vmatpush1.bf16.msra.mxu0 0
        %2674 = vmatprep.subr.bf16.mxu0 0
        %2675 = vmatpush1.bf16.msra.mxu0 0
        %2676 = vmatprep.subr.bf16.mxu0 0
        %2677 = vmatpush1.bf16.msra.mxu0 0
        %2678 = vmatprep.subr.bf16.mxu0 0
        %2679 = vmatpush1.bf16.msra.mxu0 0
        %2680 = vmatprep.subr.bf16.mxu0 0
        %2681 = vmatpush1.bf16.msra.mxu0 0
        %2682 = vmatprep.subr.bf16.mxu0 0
        %2683 = vmatpush1.bf16.msra.mxu0 0
        %2684 = vmatprep.subr.bf16.mxu0 0
        %2685 = vmatpush1.bf16.msra.mxu0 0
        %2686 = vmatprep.subr.bf16.mxu0 0
        %2687 = vmatpush1.bf16.msra.mxu0 0
        %2688 = vmatprep.subr.bf16.mxu0 0
        %2689 = vmatpush1.bf16.msra.mxu0 0
        %2690 = vmatprep.subr.bf16.mxu0 0
        %2691 = vmatpush1.bf16.msra.mxu0 0
        %2692 = vmatprep.subr.bf16.mxu0 0
        %2693 = vmatpush1.bf16.msra.mxu0 0
        %2694 = vmatprep.subr.bf16.mxu0 0
        %2695 = vmatpush1.bf16.msra.mxu0 0
        %2696 = vmatprep.subr.bf16.mxu0 0
        %2697 = vmatpush1.bf16.msra.mxu0 0
        %2698 = vmatprep.subr.bf16.mxu0 0
        %2699 = vmatpush1.bf16.msra.mxu0 0
        %2700 = vmatprep.mubr.bf16.mxu0 0
        %2701 = vmatmul.mubr.bf16.gmra.mrb[0].mxu0 %v2666
        %v2702 = vpop.f32.mrb[0].mxu0
        %v2703 = vadd.f32 %v2651, %v2702
        %v2704 = vpop.f32.mrb[0].mxu0
        %v2705 = vpop.f32.mrb[0].mxu0
        %v2706 = vpop.f32.mrb[0].mxu0
        %2707 = vdwg.mxu0
        %v2708 = vmax.f32 %v2703, 0.0
        %v2709 = vld [vmem:[%s23] sm:$0xf]
        %v2710 = vld [vmem:[%s23 + $0x4] sm:$0xf]
        %v2711 = vld [vmem:[%s23 + $0x8] sm:$0xf]
        %v2712 = vld [vmem:[%s23 + $0xc] sm:$0xf]
        %v2713 = vld [vmem:[%s23 + $0x10] sm:$0xf]
        %v2714 = vld [vmem:[%s23 + $0x14] sm:$0xf]
        %v2715 = vld [vmem:[%s23 + $0x18] sm:$0xf]
        %v2716 = vld [vmem:[%s23 + $0x1c] sm:$0xf]
        %v2717 = vpack.c.bf16 %v2708, %v2708
        %v2718 = vld [vmem:[%s24] sm:$0x1]
        %v2720 = vlaneseq
        %v2721 = vshrl.u32 %v2720, 7
        %v2722 = vsub.s32 0, %v2721
        %v2723 = vrot.slane %v2718, %v2722
        %v2733 = vunpack.c.l.b16 %v2709
        %v2734 = vunpack.c.l.b16 %v2710
        %v2735 = vunpack.c.l.b16 %v2711
        %v2736 = vunpack.c.l.b16 %v2712
        %v2737 = vunpack.c.l.b16 %v2713
        %v2738 = vunpack.c.l.b16 %v2714
        %v2739 = vunpack.c.l.b16 %v2715
        %v2740 = vunpack.c.l.b16 %v2716
        %v2741 = vpack.c.b16 %v2734, %v2733
        %v2742 = vpack.c.b16 %v2736, %v2735
        %v2743 = vpack.c.b16 %v2738, %v2737
        %v2744 = vpack.c.b16 %v2740, %v2739
        %vm2749 = vcmask 523264
        %v2751 = vsel %vm2749, %v2717, 0
        %2753 = vmatprep.subr.bf16.mxu0 0
        %2754 = vmatpush1.bf16.msra.mxu0 %v2741
        %2755 = vmatprep.subr.bf16.mxu0 0
        %2756 = vmatpush1.bf16.msra.mxu0 %v2742
        %2757 = vmatprep.subr.bf16.mxu0 0
        %2758 = vmatpush1.bf16.msra.mxu0 %v2743
        %2759 = vmatprep.subr.bf16.mxu0 0
        %2760 = vmatpush1.bf16.msra.mxu0 %v2744
        %2761 = vmatprep.subr.bf16.mxu0 0
        %2762 = vmatpush1.bf16.msra.mxu0 0
        %2763 = vmatprep.subr.bf16.mxu0 0
        %2764 = vmatpush1.bf16.msra.mxu0 0
        %2765 = vmatprep.subr.bf16.mxu0 0
        %2766 = vmatpush1.bf16.msra.mxu0 0
        %2767 = vmatprep.subr.bf16.mxu0 0
        %2768 = vmatpush1.bf16.msra.mxu0 0
        %2769 = vmatprep.subr.bf16.mxu0 0
        %2770 = vmatpush1.bf16.msra.mxu0 0
        %2771 = vmatprep.subr.bf16.mxu0 0
        %2772 = vmatpush1.bf16.msra.mxu0 0
        %2773 = vmatprep.subr.bf16.mxu0 0
        %2774 = vmatpush1.bf16.msra.mxu0 0
        %2775 = vmatprep.subr.bf16.mxu0 0
        %2776 = vmatpush1.bf16.msra.mxu0 0
        %2777 = vmatprep.subr.bf16.mxu0 0
        %2778 = vmatpush1.bf16.msra.mxu0 0
        %2779 = vmatprep.subr.bf16.mxu0 0
        %2780 = vmatpush1.bf16.msra.mxu0 0
        %2781 = vmatprep.subr.bf16.mxu0 0
        %2782 = vmatpush1.bf16.msra.mxu0 0
        %2783 = vmatprep.subr.bf16.mxu0 0
        %2784 = vmatpush1.bf16.msra.mxu0 0
        %2785 = vmatprep.mubr.bf16.mxu0 0
        %2786 = vmatmul.mubr.bf16.gmra.mrb[0].mxu0 %v2751
        %v2787 = vpop.f32.mrb[0].mxu0
        %v2788 = vadd.f32 %v2723, %v2787
        %v2789 = vpop.f32.mrb[0].mxu0
        %v2790 = vpop.f32.mrb[0].mxu0
        %v2791 = vpop.f32.mrb[0].mxu0
        %2792 = vdwg.mxu0
        %v2793 = vadd.f32 %v2611, %v2788
        %2794 = vst.msk [vmem:[%s1029] sm:$0xff] %vm1053, %v2793
        %s2795 = sand.u32 %s645, 1
        %s2796 = scalar_lea.sflag [#allocation4], %s2795
        %s2797 = sand.u32 %s645, 1
        %s2798 = smul.addr %s2797, 8
        %s2799 = scalar_lea.vmem [#allocation23], %s2798
        // Predicated region
        $region181: #{tpu_custom_call.1} parent=127 // pred_check
          %p2800 = pneg %p655
        $region182: #{tpu_custom_call.1} parent=127 // pred_check_branch
          %2802 = sbr.rel (%p2800) target = $region184
        $region183: #{tpu_custom_call.1} parent=127 // pred_region
          %s2804 = ssub.s32 128, 128
          %2805 = vsyncadd %s2796, %s2804
          %s2806 = smul.addr %s50, 128
          %s2807 = scalar_lea.hbm %s27, %s2806
          %s2809 = sshll.u32 %s2799, 4
          %s2810 = int_to_ptr.vmem [resolvable:$true] %s2809
          %2812 = dma.vmem_to_hbm [thread:$0]  %s2810, 128, %s2807, %s2796
        $region184: #{tpu_custom_call.1} parent=127 // pred_fallthru
          _
      $region128: #{tpu_custom_call.1} parent=5 // pred_fallthru
        _
      %p2813 = scmp.le.s32.totalorder 2, %s45
      // Predicated region
      $region185: #{tpu_custom_call.1} parent=5 // pred_check
        %p2814 = pneg %p2813
      $region186: #{tpu_custom_call.1} parent=5 // pred_check_branch
        %2816 = sbr.rel (%p2814) target = $region188
      $region187: #{tpu_custom_call.1} parent=5 // pred_region
        %s2817 = ssub.s32 %s45, 2
        // Predicated region
        $region189: #{tpu_custom_call.1} parent=187 // pred_check
          %p2818 = pneg %p661
        $region190: #{tpu_custom_call.1} parent=187 // pred_check_branch
          %2820 = sbr.rel (%p2818) target = $region192
        $region191: #{tpu_custom_call.1} parent=187 // pred_region
          %s2821 = sand.u32 %s646, 1
          %s2822 = scalar_lea.sflag [#allocation4], %s2821
          %s2823 = sand.u32 %s646, 1
          %s2824 = smul.addr %s2823, 8
          %s2825 = scalar_lea.vmem [#allocation23], %s2824
          %2826 = dma.done %s2822, 128
        $region192: #{tpu_custom_call.1} parent=187 // pred_fallthru
          _
      $region188: #{tpu_custom_call.1} parent=5 // pred_fallthru
        _
    $region6: #{tpu_custom_call.1} parent=1 // loop_footer
      %s49 = sadd.s32 1, %s45
    $region7: #{tpu_custom_call.1} parent=1 // loop_footer_branch
      %44 = sbr.rel target = $region3
    $region8: #{tpu_custom_call.1} parent=1 // loop_exit
      _
    %2827 = vsyncpa [#allocation3], 1
    %s2828 = scalar_lea.sflag [#allocation3], 1
    %2829 = vsyncpa %s2828, 1
    %2830 = vsyncpa [#allocation6], 1
    %s2831 = scalar_lea.sflag [#allocation6], 1
    %2832 = vsyncpa %s2831, 1
    %2833 = vsyncpa [#allocation9], 1
    %2834 = vsyncpa [#allocation12], 1
    %2835 = vsyncpa [#allocation15], 1
    %2836 = vsyncpa [#allocation18], 1
    %2837 = vsyncpa [#allocation21], 1
    %2838 = vsyncpa [#allocation4], 1
    %s2839 = scalar_lea.sflag [#allocation4], 1
    %2840 = vsyncpa %s2839, 1

</llo_original>
